<compile_context>
chip_gen: v7x
topology: tpu7x:2x2x1
jax: 0.10.0
libtpu: 0.0.40
codegen_flags: <defaults>
</compile_context>

<pallas_src>
import numpy as np
import jax
import jax.numpy as jnp
from jax import lax
from jax.experimental import pallas as pl
from jax.experimental.pallas import tpu as pltpu

EPS = 1e-5

# net3 sequence lengths
L_IN = 694      # raw signal length
L1   = 690      # after Conv1d(1,1,5)
LP1  = 230      # after MaxPool1d(3)
L2   = 228      # after Conv1d(6,6,3)
LP2  = 76       # after MaxPool1d(3)
C1, C2 = 6, 16  # channel counts

VMEM_SPEC = pl.BlockSpec(memory_space=pltpu.MemorySpace.VMEM)
SMEM_SPEC = pl.BlockSpec(memory_space=pltpu.MemorySpace.SMEM)


# --------------------------------------------------------------------------------------
# BatchNorm1d (training mode) for channel-packed rows (C*B, L).
#   chan_sum_mat = kron(eye(C), ones((B,B)))  broadcasts each channel's total back to
#   every row of that channel, so the whole stat computation is vectorized (one pass,
#   one lane reduction, no per-channel Python loop).
# --------------------------------------------------------------------------------------
def _bn_rows(x, chan_sum_mat, n, gamma_col, beta_col):
    cs = jnp.sum(jnp.dot(chan_sum_mat, x, preferred_element_type=jnp.float32),
                 axis=1, keepdims=True)
    css = jnp.sum(jnp.dot(chan_sum_mat, x * x, preferred_element_type=jnp.float32),
                  axis=1, keepdims=True)
    mean = cs / n
    var = css / n - mean * mean                 # biased variance, f32 accumulation
    scale = lax.rsqrt(var + EPS) * gamma_col
    return (x - mean) * scale + beta_col


# --------------------------------------------------------------------------------------
# The single fused kernel: net3 chain + backbone stand-in + feature_layer + classifier
# + softmax.
# --------------------------------------------------------------------------------------
def _convnet_kernel(xp0_ref, xp1_ref, xp2_ref, x1_ref, sc_ref,
                    m2_ref, m3_ref, m4_ref, p6_ref, p16_ref,
                    cols6_ref, cols16_ref, perm2_ref,
                    wr_ref, br_ref, wf1a_ref, wf1b_ref, bf1_ref,
                    wf2_ref, bf2_ref, wc_ref, bc_ref,
                    x1f_ref, x2f_ref, fc_ref, logits_ref, probas_ref):
    B = xp0_ref.shape[0]
    xph = (xp0_ref[...], xp1_ref[...], xp2_ref[...])     # input phase streams (x[:, p::3])

    # ---- Conv1d(1,1,5) + ReLU, evaluated directly on the 3 MaxPool phase streams ----
    # phase p, position j  <->  original position 3*j + p  (so pool 1 needs no strides).
    h1 = []
    for p in range(3):
        acc = jnp.zeros((B, LP1), jnp.float32)
        for t in range(5):
            q, o = (p + t) % 3, (p + t) // 3
            acc = acc + sc_ref[t] * xph[q][:, o:o + LP1]
        h1.append(jnp.maximum(acc + sc_ref[5], 0.0))      # + bias, ReLU

    # ---- BatchNorm1d(1): single-pass training stats over all B*690 positions ----
    n1 = float(B * L1)
    tot = jnp.sum(h1[0]) + jnp.sum(h1[1]) + jnp.sum(h1[2])
    tot2 = jnp.sum(h1[0] * h1[0]) + jnp.sum(h1[1] * h1[1]) + jnp.sum(h1[2] * h1[2])
    mean1 = tot / n1
    var1 = tot2 / n1 - mean1 * mean1
    scale1 = lax.rsqrt(var1 + EPS) * sc_ref[6]
    beta1 = sc_ref[7]

    # ---- Conv1d(1,6,1) on the MXU (rows packed as c*B + b), per phase ----
    m2 = m2_ref[...]                                      # (6B, B)
    y6 = [jnp.dot(m2, (h - mean1) * scale1 + beta1, preferred_element_type=jnp.float32)
          for h in h1]

    # ---- MaxPool1d(3) (+ per-channel conv bias, commutes with max) + ReLU ----
    pooled = jnp.maximum(jnp.maximum(y6[0], y6[1]), y6[2]) + cols6_ref[:, 0:1]
    pooled = jnp.maximum(pooled, 0.0)                     # (6B, 230)

    # ---- BatchNorm1d(6) ----
    hbn = _bn_rows(pooled, p6_ref[...], float(B * LP1),
                   cols6_ref[:, 1:2], cols6_ref[:, 2:3])

    # ---- Conv1d(6,6,3): three shifted (6B,6B)@(6B,228) MXU dots + bias + ReLU ----
    acc = jnp.dot(m3_ref[0], hbn[:, 0:L2], preferred_element_type=jnp.float32)
    acc = acc + jnp.dot(m3_ref[1], hbn[:, 1:1 + L2], preferred_element_type=jnp.float32)
    acc = acc + jnp.dot(m3_ref[2], hbn[:, 2:2 + L2], preferred_element_type=jnp.float32)
    c3 = jnp.maximum(acc + cols6_ref[:, 3:4], 0.0)        # (6B, 228)

    # ---- BatchNorm1d(6) ----
    h2 = _bn_rows(c3, p6_ref[...], float(B * L2),
                  cols6_ref[:, 4:5], cols6_ref[:, 5:6])

    # ---- second MaxPool(3): de-interleave lanes with a 0/1 permutation matmul, then
    #      Conv1d(6,16,1) per phase on the MXU and take the window max (+ bias, ReLU) ----
    h2p = jnp.dot(h2, perm2_ref[...], preferred_element_type=jnp.float32)  # cols=[ph0|ph1|ph2]
    m4 = m4_ref[...]                                      # (16B, 6B)
    z0 = jnp.dot(m4, h2p[:, 0:LP2], preferred_element_type=jnp.float32)
    z1 = jnp.dot(m4, h2p[:, LP2:2 * LP2], preferred_element_type=jnp.float32)
    z2 = jnp.dot(m4, h2p[:, 2 * LP2:3 * LP2], preferred_element_type=jnp.float32)
    pool2 = jnp.maximum(jnp.maximum(z0, z1), z2) + cols16_ref[:, 0:1]
    pool2 = jnp.maximum(pool2, 0.0)                       # (16B, 76)

    # ---- BatchNorm1d(16) ----
    y = _bn_rows(pool2, p16_ref[...], float(B * LP2),
                 cols16_ref[:, 1:2], cols16_ref[:, 2:3])

    # ---- assemble the PyTorch .view(B, 16*76) flattened layout as ONE lane-dense
    #      value: single wide store + direct reuse by the feature_layer (no HBM trip) ----
    x2flat = jnp.concatenate([y[c * B:(c + 1) * B, :] for c in range(C2)], axis=1)
    x2f_ref[...] = x2flat                                  # (B, 1216)

    # ---- frozen-backbone stand-in: flatten + Linear(768 -> 1000) ----
    x1f = jnp.dot(x1_ref[...], wr_ref[...], preferred_element_type=jnp.float32) + br_ref[...]
    x1f_ref[...] = x1f

    # ---- feature_layer Linear(2216,120) with wf1 split at the concat boundary ----
    h = jnp.dot(x1f, wf1a_ref[...], preferred_element_type=jnp.float32)
    h = h + jnp.dot(x2flat, wf1b_ref[...], preferred_element_type=jnp.float32)
    h = jnp.maximum(h + bf1_ref[...], 0.0)
    fc = jnp.dot(h, wf2_ref[...], preferred_element_type=jnp.float32) + bf2_ref[...]
    fc_ref[...] = fc                                       # Linear(120, 84)

    # ---- classifier (ReLU -> Linear(84,2)) + softmax ----
    z = jnp.maximum(fc, 0.0)
    logits = jnp.dot(z, wc_ref[...], preferred_element_type=jnp.float32) + bc_ref[...]
    logits_ref[...] = logits
    zmax = jnp.max(logits, axis=1, keepdims=True)          # softmax(dim=1)
    e = jnp.exp(logits - zmax)
    probas_ref[...] = e / jnp.sum(e, axis=1, keepdims=True)


def convnet_fused(x1_flat, xp0, xp1, xp2, q):
    B = x1_flat.shape[0]
    out_shapes = (
        jax.ShapeDtypeStruct((B, 1000), jnp.float32),       # x1 features (backbone)
        jax.ShapeDtypeStruct((B, C2 * LP2), jnp.float32),   # x2 features (net3, flattened)
        jax.ShapeDtypeStruct((B, 84), jnp.float32),         # fc
        jax.ShapeDtypeStruct((B, 2), jnp.float32),          # logits
        jax.ShapeDtypeStruct((B, 2), jnp.float32),          # probas
    )
    return pl.pallas_call(
        _convnet_kernel,
        out_shape=out_shapes,
        in_specs=[VMEM_SPEC] * 4 + [SMEM_SPEC] + [VMEM_SPEC] * 17,
        out_specs=(VMEM_SPEC,) * 5,
    )(xp0, xp1, xp2, x1_flat, q["sc"],
      q["m2"], q["m3"], q["m4"], q["p6"], q["p16"],
      q["cols6"], q["cols16"], q["perm2"],
      q["wr"], q["br"], q["wf1a"], q["wf1b"], q["bf1"],
      q["wf2"], q["bf2"], q["wc"], q["bc"])


# --------------------------------------------------------------------------------------
# Parameters (torch-like layout) and a one-time packing step that pre-computes the
# kron-expanded mixing matrices / broadcast columns so NO per-call XLA glue is needed
# beyond three tiny strided slices of the raw signal.
# --------------------------------------------------------------------------------------
def init_params(key):
    ks = jax.random.split(key, 8)
    rnd = lambda k, s, sc: sc * jax.random.normal(k, s, jnp.float32)
    p = {}
    # TODO(synk): frozen torchvision resnet18(pretrained=True) backbone cannot be loaded
    # here; replaced by a deterministic flatten + Linear(768 -> 1000) stand-in producing
    # the same (B, 1000) feature shape.
    p["wr"], p["br"] = rnd(ks[0], (3 * 16 * 16, 1000), 0.02), jnp.zeros((1, 1000), jnp.float32)
    p["w1"], p["b1"] = rnd(ks[1], (5,), 0.3), jnp.zeros((1,), jnp.float32)        # Conv1d(1,1,5)
    p["g1"], p["be1"] = jnp.ones((1,), jnp.float32), jnp.zeros((1,), jnp.float32)
    p["w2"], p["b2"] = rnd(ks[2], (6,), 0.3), jnp.zeros((6,), jnp.float32)        # Conv1d(1,6,1)
    p["g2"], p["be2"] = jnp.ones((6,), jnp.float32), jnp.zeros((6,), jnp.float32)
    p["w3"], p["b3"] = rnd(ks[3], (6, 6, 3), 0.2), jnp.zeros((6,), jnp.float32)   # Conv1d(6,6,3)
    p["g3"], p["be3"] = jnp.ones((6,), jnp.float32), jnp.zeros((6,), jnp.float32)
    p["w4"], p["b4"] = rnd(ks[4], (16, 6), 0.2), jnp.zeros((16,), jnp.float32)    # Conv1d(6,16,1)
    p["g4"], p["be4"] = jnp.ones((16,), jnp.float32), jnp.zeros((16,), jnp.float32)
    p["wf1"], p["bf1"] = rnd(ks[5], (2216, 120), 0.02), jnp.zeros((1, 120), jnp.float32)
    p["wf2"], p["bf2"] = rnd(ks[6], (120, 84), 0.05), jnp.zeros((1, 84), jnp.float32)
    p["wc"], p["bc"] = rnd(ks[7], (84, 2), 0.1), jnp.zeros((1, 2), jnp.float32)
    return p


def pack_params(p, batch_size):
    """One-time (per batch size) packing: kron-expand channel-mixing weights so the
    kernel works on channel-packed (C*B, L) rows, and split wf1 at the concat boundary."""
    B = batch_size
    eyeB = jnp.eye(B, dtype=jnp.float32)
    onesBB = jnp.ones((B, B), jnp.float32)
    onesB1 = jnp.ones((B, 1), jnp.float32)
    col = lambda v: jnp.kron(v.reshape(-1, 1).astype(jnp.float32), onesB1)
    q = {}
    q["sc"] = jnp.concatenate([p["w1"].reshape(-1), p["b1"].reshape(-1),
                               p["g1"].reshape(-1), p["be1"].reshape(-1)]).astype(jnp.float32)
    q["m2"] = jnp.kron(p["w2"].reshape(6, 1), eyeB)                             # (6B, B)
    q["m3"] = jnp.stack([jnp.kron(p["w3"][:, :, t], eyeB) for t in range(3)])   # (3, 6B, 6B)
    q["m4"] = jnp.kron(p["w4"], eyeB)                                           # (16B, 6B)
    q["p6"] = jnp.kron(jnp.eye(6, dtype=jnp.float32), onesBB)                   # (6B, 6B)
    q["p16"] = jnp.kron(jnp.eye(16, dtype=jnp.float32), onesBB)                 # (16B, 16B)
    q["cols6"] = jnp.concatenate([col(p["b2"]), col(p["g2"]), col(p["be2"]),
                                  col(p["b3"]), col(p["g3"]), col(p["be3"])], axis=1)  # (6B, 6)
    q["cols16"] = jnp.concatenate([col(p["b4"]), col(p["g4"]), col(p["be4"])], axis=1)  # (16B, 3)
    # 0/1 lane de-interleave permutation for the second MaxPool (228 -> [ph0|ph1|ph2]).
    idx = np.arange(L2)
    perm = np.zeros((L2, L2), np.float32)
    perm[idx, (idx % 3) * LP2 + idx // 3] = 1.0
    q["perm2"] = jnp.asarray(perm)
    # feature_layer Linear(2216,120) split at the 1000|1216 concat boundary.
    q["wf1a"], q["wf1b"] = p["wf1"][:1000], p["wf1"][1000:]
    for k in ("wr", "br", "bf1", "wf2", "bf2", "wc", "bc"):
        q[k] = p[k]
    return q


@jax.jit
def convnet_forward(packed, x1, x2):
    B = x1.shape[0]
    x1_flat = x1.reshape(B, -1)                          # (B, 768)
    xs = x2.reshape(B, -1)                               # (B, 694)
    # Phase-split the raw input (x[:, p::3]) so the first MaxPool(3) needs no strided
    # access inside the kernel; this is the only per-call XLA glue.
    xp0, xp1, xp2 = xs[:, 0::3], xs[:, 1::3], xs[:, 2::3]   # (B,232),(B,231),(B,231)
    x1_feat, x2_feat, fc, logits, probas = convnet_fused(x1_flat, xp0, xp1, xp2, packed)
    return logits, probas, x1_feat, x2_feat, fc


if __name__ == "__main__":
    key = jax.random.PRNGKey(0)
    k1, k2, kp = jax.random.split(key, 3)
    x1 = jax.random.normal(k1, (2, 3, 16, 16), jnp.float32)   # image branch (stand-in backbone)
    x2 = jax.random.normal(k2, (2, 1, 694), jnp.float32)      # 1-D signal branch -> 16*76 = 1216
    params = init_params(kp)
    packed = pack_params(params, batch_size=2)

    logits, probas, f1, f2, fc = jax.block_until_ready(convnet_forward(packed, x1, x2))

    assert logits.shape == (2, 2) and probas.shape == (2, 2)
    assert f1.shape == (2, 1000) and f2.shape == (2, 1216) and fc.shape == (2, 84)
    assert bool(jnp.all(jnp.isfinite(probas)))
    print("KERNEL_OK")
</pallas_src>

<mosaic_0001>
module attributes {stable_mosaic.version = 11 : i64} {
  func.func @_convnet_kernel(%arg0: memref<2x232xf32, #tpu.memory_space<vmem>>, %arg1: memref<2x231xf32, #tpu.memory_space<vmem>>, %arg2: memref<2x231xf32, #tpu.memory_space<vmem>>, %arg3: memref<2x768xf32, #tpu.memory_space<vmem>>, %arg4: memref<8xf32, #tpu.memory_space<smem>>, %arg5: memref<12x2xf32, #tpu.memory_space<vmem>>, %arg6: memref<3x12x12xf32, #tpu.memory_space<vmem>>, %arg7: memref<32x12xf32, #tpu.memory_space<vmem>>, %arg8: memref<12x12xf32, #tpu.memory_space<vmem>>, %arg9: memref<32x32xf32, #tpu.memory_space<vmem>>, %arg10: memref<12x6xf32, #tpu.memory_space<vmem>>, %arg11: memref<32x3xf32, #tpu.memory_space<vmem>>, %arg12: memref<228x228xf32, #tpu.memory_space<vmem>>, %arg13: memref<768x1000xf32, #tpu.memory_space<vmem>>, %arg14: memref<1x1000xf32, #tpu.memory_space<vmem>>, %arg15: memref<1000x120xf32, #tpu.memory_space<vmem>>, %arg16: memref<1216x120xf32, #tpu.memory_space<vmem>>, %arg17: memref<1x120xf32, #tpu.memory_space<vmem>>, %arg18: memref<120x84xf32, #tpu.memory_space<vmem>>, %arg19: memref<1x84xf32, #tpu.memory_space<vmem>>, %arg20: memref<84x2xf32, #tpu.memory_space<vmem>>, %arg21: memref<1x2xf32, #tpu.memory_space<vmem>>, %arg22: memref<2x1000xf32, #tpu.memory_space<vmem>>, %arg23: memref<2x1216xf32, #tpu.memory_space<vmem>>, %arg24: memref<2x84xf32, #tpu.memory_space<vmem>>, %arg25: memref<2x2xf32, #tpu.memory_space<vmem>>, %arg26: memref<2x2xf32, #tpu.memory_space<vmem>>) attributes {dimension_semantics = [], scalar_prefetch = 0 : i64, scratch_operands = 0 : i64, tpu.core_type = #tpu.core_type<tc>} {
    %c0 = arith.constant 0 : index
    %c0_0 = arith.constant 0 : index
    %0 = vector.load %arg0[%c0, %c0_0] : memref<2x232xf32, #tpu.memory_space<vmem>>, vector<2x232xf32>
    %c0_1 = arith.constant 0 : index
    %c0_2 = arith.constant 0 : index
    %1 = vector.load %arg1[%c0_1, %c0_2] : memref<2x231xf32, #tpu.memory_space<vmem>>, vector<2x231xf32>
    %c0_3 = arith.constant 0 : index
    %c0_4 = arith.constant 0 : index
    %2 = vector.load %arg2[%c0_3, %c0_4] : memref<2x231xf32, #tpu.memory_space<vmem>>, vector<2x231xf32>
    %cst = arith.constant 0.000000e+00 : f32
    %3 = vector.broadcast %cst : f32 to vector<2x230xf32>
    %c0_5 = arith.constant 0 : index
    %4 = memref.load %arg4[%c0_5] : memref<8xf32, #tpu.memory_space<smem>>
    %5 = vector.extract_strided_slice %0 {offsets = [0, 0], sizes = [2, 230], strides = [1, 1]} : vector<2x232xf32> to vector<2x230xf32>
    %6 = vector.broadcast %4 : f32 to vector<2x230xf32>
    %7 = arith.mulf %6, %5 : vector<2x230xf32>
    %8 = arith.addf %3, %7 : vector<2x230xf32>
    %c1 = arith.constant 1 : index
    %9 = memref.load %arg4[%c1] : memref<8xf32, #tpu.memory_space<smem>>
    %10 = vector.extract_strided_slice %1 {offsets = [0, 0], sizes = [2, 230], strides = [1, 1]} : vector<2x231xf32> to vector<2x230xf32>
    %11 = vector.broadcast %9 : f32 to vector<2x230xf32>
    %12 = arith.mulf %11, %10 : vector<2x230xf32>
    %13 = arith.addf %8, %12 : vector<2x230xf32>
    %c2 = arith.constant 2 : index
    %14 = memref.load %arg4[%c2] : memref<8xf32, #tpu.memory_space<smem>>
    %15 = vector.extract_strided_slice %2 {offsets = [0, 0], sizes = [2, 230], strides = [1, 1]} : vector<2x231xf32> to vector<2x230xf32>
    %16 = vector.broadcast %14 : f32 to vector<2x230xf32>
    %17 = arith.mulf %16, %15 : vector<2x230xf32>
    %18 = arith.addf %13, %17 : vector<2x230xf32>
    %c3 = arith.constant 3 : index
    %19 = memref.load %arg4[%c3] : memref<8xf32, #tpu.memory_space<smem>>
    %20 = vector.extract_strided_slice %0 {offsets = [0, 1], sizes = [2, 230], strides = [1, 1]} : vector<2x232xf32> to vector<2x230xf32>
    %21 = vector.broadcast %19 : f32 to vector<2x230xf32>
    %22 = arith.mulf %21, %20 : vector<2x230xf32>
    %23 = arith.addf %18, %22 : vector<2x230xf32>
    %c4 = arith.constant 4 : index
    %24 = memref.load %arg4[%c4] : memref<8xf32, #tpu.memory_space<smem>>
    %25 = vector.extract_strided_slice %1 {offsets = [0, 1], sizes = [2, 230], strides = [1, 1]} : vector<2x231xf32> to vector<2x230xf32>
    %26 = vector.broadcast %24 : f32 to vector<2x230xf32>
    %27 = arith.mulf %26, %25 : vector<2x230xf32>
    %28 = arith.addf %23, %27 : vector<2x230xf32>
    %c5 = arith.constant 5 : index
    %29 = memref.load %arg4[%c5] : memref<8xf32, #tpu.memory_space<smem>>
    %30 = vector.broadcast %29 : f32 to vector<2x230xf32>
    %31 = arith.addf %28, %30 : vector<2x230xf32>
    %cst_6 = arith.constant 0.000000e+00 : f32
    %32 = vector.broadcast %cst_6 : f32 to vector<2x230xf32>
    %33 = arith.maximumf %31, %32 : vector<2x230xf32>
    %cst_7 = arith.constant 0.000000e+00 : f32
    %34 = vector.broadcast %cst_7 : f32 to vector<2x230xf32>
    %c0_8 = arith.constant 0 : index
    %35 = memref.load %arg4[%c0_8] : memref<8xf32, #tpu.memory_space<smem>>
    %36 = vector.extract_strided_slice %1 {offsets = [0, 0], sizes = [2, 230], strides = [1, 1]} : vector<2x231xf32> to vector<2x230xf32>
    %37 = vector.broadcast %35 : f32 to vector<2x230xf32>
    %38 = arith.mulf %37, %36 : vector<2x230xf32>
    %39 = arith.addf %34, %38 : vector<2x230xf32>
    %c1_9 = arith.constant 1 : index
    %40 = memref.load %arg4[%c1_9] : memref<8xf32, #tpu.memory_space<smem>>
    %41 = vector.extract_strided_slice %2 {offsets = [0, 0], sizes = [2, 230], strides = [1, 1]} : vector<2x231xf32> to vector<2x230xf32>
    %42 = vector.broadcast %40 : f32 to vector<2x230xf32>
    %43 = arith.mulf %42, %41 : vector<2x230xf32>
    %44 = arith.addf %39, %43 : vector<2x230xf32>
    %c2_10 = arith.constant 2 : index
    %45 = memref.load %arg4[%c2_10] : memref<8xf32, #tpu.memory_space<smem>>
    %46 = vector.extract_strided_slice %0 {offsets = [0, 1], sizes = [2, 230], strides = [1, 1]} : vector<2x232xf32> to vector<2x230xf32>
    %47 = vector.broadcast %45 : f32 to vector<2x230xf32>
    %48 = arith.mulf %47, %46 : vector<2x230xf32>
    %49 = arith.addf %44, %48 : vector<2x230xf32>
    %c3_11 = arith.constant 3 : index
    %50 = memref.load %arg4[%c3_11] : memref<8xf32, #tpu.memory_space<smem>>
    %51 = vector.extract_strided_slice %1 {offsets = [0, 1], sizes = [2, 230], strides = [1, 1]} : vector<2x231xf32> to vector<2x230xf32>
    %52 = vector.broadcast %50 : f32 to vector<2x230xf32>
    %53 = arith.mulf %52, %51 : vector<2x230xf32>
    %54 = arith.addf %49, %53 : vector<2x230xf32>
    %c4_12 = arith.constant 4 : index
    %55 = memref.load %arg4[%c4_12] : memref<8xf32, #tpu.memory_space<smem>>
    %56 = vector.extract_strided_slice %2 {offsets = [0, 1], sizes = [2, 230], strides = [1, 1]} : vector<2x231xf32> to vector<2x230xf32>
    %57 = vector.broadcast %55 : f32 to vector<2x230xf32>
    %58 = arith.mulf %57, %56 : vector<2x230xf32>
    %59 = arith.addf %54, %58 : vector<2x230xf32>
    %c5_13 = arith.constant 5 : index
    %60 = memref.load %arg4[%c5_13] : memref<8xf32, #tpu.memory_space<smem>>
    %61 = vector.broadcast %60 : f32 to vector<2x230xf32>
    %62 = arith.addf %59, %61 : vector<2x230xf32>
    %cst_14 = arith.constant 0.000000e+00 : f32
    %63 = vector.broadcast %cst_14 : f32 to vector<2x230xf32>
    %64 = arith.maximumf %62, %63 : vector<2x230xf32>
    %cst_15 = arith.constant 0.000000e+00 : f32
    %65 = vector.broadcast %cst_15 : f32 to vector<2x230xf32>
    %c0_16 = arith.constant 0 : index
    %66 = memref.load %arg4[%c0_16] : memref<8xf32, #tpu.memory_space<smem>>
    %67 = vector.extract_strided_slice %2 {offsets = [0, 0], sizes = [2, 230], strides = [1, 1]} : vector<2x231xf32> to vector<2x230xf32>
    %68 = vector.broadcast %66 : f32 to vector<2x230xf32>
    %69 = arith.mulf %68, %67 : vector<2x230xf32>
    %70 = arith.addf %65, %69 : vector<2x230xf32>
    %c1_17 = arith.constant 1 : index
    %71 = memref.load %arg4[%c1_17] : memref<8xf32, #tpu.memory_space<smem>>
    %72 = vector.extract_strided_slice %0 {offsets = [0, 1], sizes = [2, 230], strides = [1, 1]} : vector<2x232xf32> to vector<2x230xf32>
    %73 = vector.broadcast %71 : f32 to vector<2x230xf32>
    %74 = arith.mulf %73, %72 : vector<2x230xf32>
    %75 = arith.addf %70, %74 : vector<2x230xf32>
    %c2_18 = arith.constant 2 : index
    %76 = memref.load %arg4[%c2_18] : memref<8xf32, #tpu.memory_space<smem>>
    %77 = vector.extract_strided_slice %1 {offsets = [0, 1], sizes = [2, 230], strides = [1, 1]} : vector<2x231xf32> to vector<2x230xf32>
    %78 = vector.broadcast %76 : f32 to vector<2x230xf32>
    %79 = arith.mulf %78, %77 : vector<2x230xf32>
    %80 = arith.addf %75, %79 : vector<2x230xf32>
    %c3_19 = arith.constant 3 : index
    %81 = memref.load %arg4[%c3_19] : memref<8xf32, #tpu.memory_space<smem>>
    %82 = vector.extract_strided_slice %2 {offsets = [0, 1], sizes = [2, 230], strides = [1, 1]} : vector<2x231xf32> to vector<2x230xf32>
    %83 = vector.broadcast %81 : f32 to vector<2x230xf32>
    %84 = arith.mulf %83, %82 : vector<2x230xf32>
    %85 = arith.addf %80, %84 : vector<2x230xf32>
    %c4_20 = arith.constant 4 : index
    %86 = memref.load %arg4[%c4_20] : memref<8xf32, #tpu.memory_space<smem>>
    %87 = vector.extract_strided_slice %0 {offsets = [0, 2], sizes = [2, 230], strides = [1, 1]} : vector<2x232xf32> to vector<2x230xf32>
    %88 = vector.broadcast %86 : f32 to vector<2x230xf32>
    %89 = arith.mulf %88, %87 : vector<2x230xf32>
    %90 = arith.addf %85, %89 : vector<2x230xf32>
    %c5_21 = arith.constant 5 : index
    %91 = memref.load %arg4[%c5_21] : memref<8xf32, #tpu.memory_space<smem>>
    %92 = vector.broadcast %91 : f32 to vector<2x230xf32>
    %93 = arith.addf %90, %92 : vector<2x230xf32>
    %cst_22 = arith.constant 0.000000e+00 : f32
    %94 = vector.broadcast %cst_22 : f32 to vector<2x230xf32>
    %95 = arith.maximumf %93, %94 : vector<2x230xf32>
    %96 = vector.shape_cast %33 : vector<2x230xf32> to vector<1x2x230xf32>
    %cst_23 = arith.constant dense<0.000000e+00> : vector<1xf32>
    %97 = vector.multi_reduction <add>, %96, %cst_23 [1, 2] : vector<1x2x230xf32> to vector<1xf32>
    %98 = vector.shape_cast %97 : vector<1xf32> to vector<1x1x1xf32>
    %99 = vector.extract %98[0, 0, 0] : f32 from vector<1x1x1xf32>
    %100 = vector.shape_cast %64 : vector<2x230xf32> to vector<1x2x230xf32>
    %cst_24 = arith.constant dense<0.000000e+00> : vector<1xf32>
    %101 = vector.multi_reduction <add>, %100, %cst_24 [1, 2] : vector<1x2x230xf32> to vector<1xf32>
    %102 = vector.shape_cast %101 : vector<1xf32> to vector<1x1x1xf32>
    %103 = vector.extract %102[0, 0, 0] : f32 from vector<1x1x1xf32>
    %104 = arith.addf %99, %103 : f32
    %105 = vector.shape_cast %95 : vector<2x230xf32> to vector<1x2x230xf32>
    %cst_25 = arith.constant dense<0.000000e+00> : vector<1xf32>
    %106 = vector.multi_reduction <add>, %105, %cst_25 [1, 2] : vector<1x2x230xf32> to vector<1xf32>
    %107 = vector.shape_cast %106 : vector<1xf32> to vector<1x1x1xf32>
    %108 = vector.extract %107[0, 0, 0] : f32 from vector<1x1x1xf32>
    %109 = arith.addf %104, %108 : f32
    %110 = arith.mulf %33, %33 : vector<2x230xf32>
    %111 = vector.shape_cast %110 : vector<2x230xf32> to vector<1x2x230xf32>
    %cst_26 = arith.constant dense<0.000000e+00> : vector<1xf32>
    %112 = vector.multi_reduction <add>, %111, %cst_26 [1, 2] : vector<1x2x230xf32> to vector<1xf32>
    %113 = vector.shape_cast %112 : vector<1xf32> to vector<1x1x1xf32>
    %114 = vector.extract %113[0, 0, 0] : f32 from vector<1x1x1xf32>
    %115 = arith.mulf %64, %64 : vector<2x230xf32>
    %116 = vector.shape_cast %115 : vector<2x230xf32> to vector<1x2x230xf32>
    %cst_27 = arith.constant dense<0.000000e+00> : vector<1xf32>
    %117 = vector.multi_reduction <add>, %116, %cst_27 [1, 2] : vector<1x2x230xf32> to vector<1xf32>
    %118 = vector.shape_cast %117 : vector<1xf32> to vector<1x1x1xf32>
    %119 = vector.extract %118[0, 0, 0] : f32 from vector<1x1x1xf32>
    %120 = arith.addf %114, %119 : f32
    %121 = arith.mulf %95, %95 : vector<2x230xf32>
    %122 = vector.shape_cast %121 : vector<2x230xf32> to vector<1x2x230xf32>
    %cst_28 = arith.constant dense<0.000000e+00> : vector<1xf32>
    %123 = vector.multi_reduction <add>, %122, %cst_28 [1, 2] : vector<1x2x230xf32> to vector<1xf32>
    %124 = vector.shape_cast %123 : vector<1xf32> to vector<1x1x1xf32>
    %125 = vector.extract %124[0, 0, 0] : f32 from vector<1x1x1xf32>
    %126 = arith.addf %120, %125 : f32
    %cst_29 = arith.constant 1.380000e+03 : f32
    %127 = arith.divf %109, %cst_29 : f32
    %cst_30 = arith.constant 1.380000e+03 : f32
    %128 = arith.divf %126, %cst_30 : f32
    %129 = arith.mulf %127, %127 : f32
    %130 = arith.subf %128, %129 : f32
    %cst_31 = arith.constant 9.99999974E-6 : f32
    %131 = arith.addf %130, %cst_31 : f32
    %132 = math.rsqrt %131 : f32
    %c6 = arith.constant 6 : index
    %133 = memref.load %arg4[%c6] : memref<8xf32, #tpu.memory_space<smem>>
    %134 = arith.mulf %132, %133 : f32
    %c7 = arith.constant 7 : index
    %135 = memref.load %arg4[%c7] : memref<8xf32, #tpu.memory_space<smem>>
    %c0_32 = arith.constant 0 : index
    %c0_33 = arith.constant 0 : index
    %136 = vector.load %arg5[%c0_32, %c0_33] : memref<12x2xf32, #tpu.memory_space<vmem>>, vector<12x2xf32>
    %137 = vector.broadcast %127 : f32 to vector<2x230xf32>
    %138 = arith.subf %33, %137 : vector<2x230xf32>
    %139 = vector.broadcast %134 : f32 to vector<2x230xf32>
    %140 = arith.mulf %138, %139 : vector<2x230xf32>
    %141 = vector.broadcast %135 : f32 to vector<2x230xf32>
    %142 = arith.addf %140, %141 : vector<2x230xf32>
    %cst_34 = arith.constant dense<0.000000e+00> : vector<12x230xf32>
    %143 = tpu.matmul %136, %142, %cst_34 {dimension_numbers = #tpu.dot_dimension_numbers<[1], [0], [0], [1], [0, 0, 1, 1], [], []>} : vector<12x2xf32>, vector<2x230xf32>, vector<12x230xf32> -> vector<12x230xf32>
    %144 = vector.broadcast %127 : f32 to vector<2x230xf32>
    %145 = arith.subf %64, %144 : vector<2x230xf32>
    %146 = vector.broadcast %134 : f32 to vector<2x230xf32>
    %147 = arith.mulf %145, %146 : vector<2x230xf32>
    %148 = vector.broadcast %135 : f32 to vector<2x230xf32>
    %149 = arith.addf %147, %148 : vector<2x230xf32>
    %cst_35 = arith.constant dense<0.000000e+00> : vector<12x230xf32>
    %150 = tpu.matmul %136, %149, %cst_35 {dimension_numbers = #tpu.dot_dimension_numbers<[1], [0], [0], [1], [0, 0, 1, 1], [], []>} : vector<12x2xf32>, vector<2x230xf32>, vector<12x230xf32> -> vector<12x230xf32>
    %151 = vector.broadcast %127 : f32 to vector<2x230xf32>
    %152 = arith.subf %95, %151 : vector<2x230xf32>
    %153 = vector.broadcast %134 : f32 to vector<2x230xf32>
    %154 = arith.mulf %152, %153 : vector<2x230xf32>
    %155 = vector.broadcast %135 : f32 to vector<2x230xf32>
    %156 = arith.addf %154, %155 : vector<2x230xf32>
    %cst_36 = arith.constant dense<0.000000e+00> : vector<12x230xf32>
    %157 = tpu.matmul %136, %156, %cst_36 {dimension_numbers = #tpu.dot_dimension_numbers<[1], [0], [0], [1], [0, 0, 1, 1], [], []>} : vector<12x2xf32>, vector<2x230xf32>, vector<12x230xf32> -> vector<12x230xf32>
    %158 = arith.maximumf %143, %150 : vector<12x230xf32>
    %159 = arith.maximumf %158, %157 : vector<12x230xf32>
    %c0_37 = arith.constant 0 : index
    %c0_38 = arith.constant 0 : index
    %160 = vector.load %arg10[%c0_37, %c0_38] : memref<12x6xf32, #tpu.memory_space<vmem>>, vector<12x1xf32>
    %161 = vector.broadcast %160 : vector<12x1xf32> to vector<12x230xf32>
    %162 = arith.addf %159, %161 : vector<12x230xf32>
    %cst_39 = arith.constant 0.000000e+00 : f32
    %163 = vector.broadcast %cst_39 : f32 to vector<12x230xf32>
    %164 = arith.maximumf %162, %163 : vector<12x230xf32>
    %c0_40 = arith.constant 0 : index
    %c0_41 = arith.constant 0 : index
    %165 = vector.load %arg8[%c0_40, %c0_41] : memref<12x12xf32, #tpu.memory_space<vmem>>, vector<12x12xf32>
    %c0_42 = arith.constant 0 : index
    %c1_43 = arith.constant 1 : index
    %166 = vector.load %arg10[%c0_42, %c1_43] : memref<12x6xf32, #tpu.memory_space<vmem>>, vector<12x1xf32>
    %c0_44 = arith.constant 0 : index
    %c2_45 = arith.constant 2 : index
    %167 = vector.load %arg10[%c0_44, %c2_45] : memref<12x6xf32, #tpu.memory_space<vmem>>, vector<12x1xf32>
    %cst_46 = arith.constant dense<0.000000e+00> : vector<12x230xf32>
    %168 = tpu.matmul %165, %164, %cst_46 {dimension_numbers = #tpu.dot_dimension_numbers<[1], [0], [0], [1], [0, 0, 1, 1], [], []>} : vector<12x12xf32>, vector<12x230xf32>, vector<12x230xf32> -> vector<12x230xf32>
    %cst_47 = arith.constant dense<0.000000e+00> : vector<12xf32>
    %169 = vector.multi_reduction <add>, %168, %cst_47 [1] : vector<12x230xf32> to vector<12xf32>
    %170 = vector.shape_cast %169 : vector<12xf32> to vector<12x1xf32>
    %171 = arith.mulf %164, %164 : vector<12x230xf32>
    %cst_48 = arith.constant dense<0.000000e+00> : vector<12x230xf32>
    %172 = tpu.matmul %165, %171, %cst_48 {dimension_numbers = #tpu.dot_dimension_numbers<[1], [0], [0], [1], [0, 0, 1, 1], [], []>} : vector<12x12xf32>, vector<12x230xf32>, vector<12x230xf32> -> vector<12x230xf32>
    %cst_49 = arith.constant dense<0.000000e+00> : vector<12xf32>
    %173 = vector.multi_reduction <add>, %172, %cst_49 [1] : vector<12x230xf32> to vector<12xf32>
    %174 = vector.shape_cast %173 : vector<12xf32> to vector<12x1xf32>
    %cst_50 = arith.constant 4.600000e+02 : f32
    %175 = vector.broadcast %cst_50 : f32 to vector<12x1xf32>
    %176 = arith.divf %170, %175 : vector<12x1xf32>
    %cst_51 = arith.constant 4.600000e+02 : f32
    %177 = vector.broadcast %cst_51 : f32 to vector<12x1xf32>
    %178 = arith.divf %174, %177 : vector<12x1xf32>
    %179 = arith.mulf %176, %176 : vector<12x1xf32>
    %180 = arith.subf %178, %179 : vector<12x1xf32>
    %cst_52 = arith.constant 9.99999974E-6 : f32
    %181 = vector.broadcast %cst_52 : f32 to vector<12x1xf32>
    %182 = arith.addf %180, %181 : vector<12x1xf32>
    %183 = math.rsqrt %182 : vector<12x1xf32>
    %184 = arith.mulf %183, %166 : vector<12x1xf32>
    %185 = vector.broadcast %176 : vector<12x1xf32> to vector<12x230xf32>
    %186 = arith.subf %164, %185 : vector<12x230xf32>
    %187 = vector.broadcast %184 : vector<12x1xf32> to vector<12x230xf32>
    %188 = arith.mulf %186, %187 : vector<12x230xf32>
    %189 = vector.broadcast %167 : vector<12x1xf32> to vector<12x230xf32>
    %190 = arith.addf %188, %189 : vector<12x230xf32>
    %c0_53 = arith.constant 0 : index
    %c0_54 = arith.constant 0 : index
    %c0_55 = arith.constant 0 : index
    %191 = vector.load %arg6[%c0_53, %c0_54, %c0_55] : memref<3x12x12xf32, #tpu.memory_space<vmem>>, vector<1x12x12xf32>
    %192 = vector.shape_cast %191 : vector<1x12x12xf32> to vector<12x12xf32>
    %193 = vector.extract_strided_slice %190 {offsets = [0, 0], sizes = [12, 228], strides = [1, 1]} : vector<12x230xf32> to vector<12x228xf32>
    %cst_56 = arith.constant dense<0.000000e+00> : vector<12x228xf32>
    %194 = tpu.matmul %192, %193, %cst_56 {dimension_numbers = #tpu.dot_dimension_numbers<[1], [0], [0], [1], [0, 0, 1, 1], [], []>} : vector<12x12xf32>, vector<12x228xf32>, vector<12x228xf32> -> vector<12x228xf32>
    %c1_57 = arith.constant 1 : index
    %c0_58 = arith.constant 0 : index
    %c0_59 = arith.constant 0 : index
    %195 = vector.load %arg6[%c1_57, %c0_58, %c0_59] : memref<3x12x12xf32, #tpu.memory_space<vmem>>, vector<1x12x12xf32>
    %196 = vector.shape_cast %195 : vector<1x12x12xf32> to vector<12x12xf32>
    %197 = vector.extract_strided_slice %190 {offsets = [0, 1], sizes = [12, 228], strides = [1, 1]} : vector<12x230xf32> to vector<12x228xf32>
    %cst_60 = arith.constant dense<0.000000e+00> : vector<12x228xf32>
    %198 = tpu.matmul %196, %197, %cst_60 {dimension_numbers = #tpu.dot_dimension_numbers<[1], [0], [0], [1], [0, 0, 1, 1], [], []>} : vector<12x12xf32>, vector<12x228xf32>, vector<12x228xf32> -> vector<12x228xf32>
    %199 = arith.addf %194, %198 : vector<12x228xf32>
    %c2_61 = arith.constant 2 : index
    %c0_62 = arith.constant 0 : index
    %c0_63 = arith.constant 0 : index
    %200 = vector.load %arg6[%c2_61, %c0_62, %c0_63] : memref<3x12x12xf32, #tpu.memory_space<vmem>>, vector<1x12x12xf32>
    %201 = vector.shape_cast %200 : vector<1x12x12xf32> to vector<12x12xf32>
    %202 = vector.extract_strided_slice %190 {offsets = [0, 2], sizes = [12, 228], strides = [1, 1]} : vector<12x230xf32> to vector<12x228xf32>
    %cst_64 = arith.constant dense<0.000000e+00> : vector<12x228xf32>
    %203 = tpu.matmul %201, %202, %cst_64 {dimension_numbers = #tpu.dot_dimension_numbers<[1], [0], [0], [1], [0, 0, 1, 1], [], []>} : vector<12x12xf32>, vector<12x228xf32>, vector<12x228xf32> -> vector<12x228xf32>
    %204 = arith.addf %199, %203 : vector<12x228xf32>
    %c0_65 = arith.constant 0 : index
    %c3_66 = arith.constant 3 : index
    %205 = vector.load %arg10[%c0_65, %c3_66] : memref<12x6xf32, #tpu.memory_space<vmem>>, vector<12x1xf32>
    %206 = vector.broadcast %205 : vector<12x1xf32> to vector<12x228xf32>
    %207 = arith.addf %204, %206 : vector<12x228xf32>
    %cst_67 = arith.constant 0.000000e+00 : f32
    %208 = vector.broadcast %cst_67 : f32 to vector<12x228xf32>
    %209 = arith.maximumf %207, %208 : vector<12x228xf32>
    %c0_68 = arith.constant 0 : index
    %c0_69 = arith.constant 0 : index
    %210 = vector.load %arg8[%c0_68, %c0_69] : memref<12x12xf32, #tpu.memory_space<vmem>>, vector<12x12xf32>
    %c0_70 = arith.constant 0 : index
    %c4_71 = arith.constant 4 : index
    %211 = vector.load %arg10[%c0_70, %c4_71] : memref<12x6xf32, #tpu.memory_space<vmem>>, vector<12x1xf32>
    %c0_72 = arith.constant 0 : index
    %c5_73 = arith.constant 5 : index
    %212 = vector.load %arg10[%c0_72, %c5_73] : memref<12x6xf32, #tpu.memory_space<vmem>>, vector<12x1xf32>
    %cst_74 = arith.constant dense<0.000000e+00> : vector<12x228xf32>
    %213 = tpu.matmul %210, %209, %cst_74 {dimension_numbers = #tpu.dot_dimension_numbers<[1], [0], [0], [1], [0, 0, 1, 1], [], []>} : vector<12x12xf32>, vector<12x228xf32>, vector<12x228xf32> -> vector<12x228xf32>
    %cst_75 = arith.constant dense<0.000000e+00> : vector<12xf32>
    %214 = vector.multi_reduction <add>, %213, %cst_75 [1] : vector<12x228xf32> to vector<12xf32>
    %215 = vector.shape_cast %214 : vector<12xf32> to vector<12x1xf32>
    %216 = arith.mulf %209, %209 : vector<12x228xf32>
    %cst_76 = arith.constant dense<0.000000e+00> : vector<12x228xf32>
    %217 = tpu.matmul %210, %216, %cst_76 {dimension_numbers = #tpu.dot_dimension_numbers<[1], [0], [0], [1], [0, 0, 1, 1], [], []>} : vector<12x12xf32>, vector<12x228xf32>, vector<12x228xf32> -> vector<12x228xf32>
    %cst_77 = arith.constant dense<0.000000e+00> : vector<12xf32>
    %218 = vector.multi_reduction <add>, %217, %cst_77 [1] : vector<12x228xf32> to vector<12xf32>
    %219 = vector.shape_cast %218 : vector<12xf32> to vector<12x1xf32>
    %cst_78 = arith.constant 4.560000e+02 : f32
    %220 = vector.broadcast %cst_78 : f32 to vector<12x1xf32>
    %221 = arith.divf %215, %220 : vector<12x1xf32>
    %cst_79 = arith.constant 4.560000e+02 : f32
    %222 = vector.broadcast %cst_79 : f32 to vector<12x1xf32>
    %223 = arith.divf %219, %222 : vector<12x1xf32>
    %224 = arith.mulf %221, %221 : vector<12x1xf32>
    %225 = arith.subf %223, %224 : vector<12x1xf32>
    %cst_80 = arith.constant 9.99999974E-6 : f32
    %226 = vector.broadcast %cst_80 : f32 to vector<12x1xf32>
    %227 = arith.addf %225, %226 : vector<12x1xf32>
    %228 = math.rsqrt %227 : vector<12x1xf32>
    %229 = arith.mulf %228, %211 : vector<12x1xf32>
    %230 = vector.broadcast %221 : vector<12x1xf32> to vector<12x228xf32>
    %231 = arith.subf %209, %230 : vector<12x228xf32>
    %232 = vector.broadcast %229 : vector<12x1xf32> to vector<12x228xf32>
    %233 = arith.mulf %231, %232 : vector<12x228xf32>
    %234 = vector.broadcast %212 : vector<12x1xf32> to vector<12x228xf32>
    %235 = arith.addf %233, %234 : vector<12x228xf32>
    %c0_81 = arith.constant 0 : index
    %c0_82 = arith.constant 0 : index
    %236 = vector.load %arg12[%c0_81, %c0_82] : memref<228x228xf32, #tpu.memory_space<vmem>>, vector<228x228xf32>
    %cst_83 = arith.constant dense<0.000000e+00> : vector<12x228xf32>
    %237 = tpu.matmul %235, %236, %cst_83 {dimension_numbers = #tpu.dot_dimension_numbers<[1], [0], [0], [1], [0, 0, 1, 1], [], []>} : vector<12x228xf32>, vector<228x228xf32>, vector<12x228xf32> -> vector<12x228xf32>
    %c0_84 = arith.constant 0 : index
    %c0_85 = arith.constant 0 : index
    %238 = vector.load %arg7[%c0_84, %c0_85] : memref<32x12xf32, #tpu.memory_space<vmem>>, vector<32x12xf32>
    %239 = vector.extract_strided_slice %237 {offsets = [0, 0], sizes = [12, 76], strides = [1, 1]} : vector<12x228xf32> to vector<12x76xf32>
    %cst_86 = arith.constant dense<0.000000e+00> : vector<32x76xf32>
    %240 = tpu.matmul %238, %239, %cst_86 {dimension_numbers = #tpu.dot_dimension_numbers<[1], [0], [0], [1], [0, 0, 1, 1], [], []>} : vector<32x12xf32>, vector<12x76xf32>, vector<32x76xf32> -> vector<32x76xf32>
    %241 = vector.extract_strided_slice %237 {offsets = [0, 76], sizes = [12, 76], strides = [1, 1]} : vector<12x228xf32> to vector<12x76xf32>
    %cst_87 = arith.constant dense<0.000000e+00> : vector<32x76xf32>
    %242 = tpu.matmul %238, %241, %cst_87 {dimension_numbers = #tpu.dot_dimension_numbers<[1], [0], [0], [1], [0, 0, 1, 1], [], []>} : vector<32x12xf32>, vector<12x76xf32>, vector<32x76xf32> -> vector<32x76xf32>
    %243 = vector.extract_strided_slice %237 {offsets = [0, 152], sizes = [12, 76], strides = [1, 1]} : vector<12x228xf32> to vector<12x76xf32>
    %cst_88 = arith.constant dense<0.000000e+00> : vector<32x76xf32>
    %244 = tpu.matmul %238, %243, %cst_88 {dimension_numbers = #tpu.dot_dimension_numbers<[1], [0], [0], [1], [0, 0, 1, 1], [], []>} : vector<32x12xf32>, vector<12x76xf32>, vector<32x76xf32> -> vector<32x76xf32>
    %245 = arith.maximumf %240, %242 : vector<32x76xf32>
    %246 = arith.maximumf %245, %244 : vector<32x76xf32>
    %c0_89 = arith.constant 0 : index
    %c0_90 = arith.constant 0 : index
    %247 = vector.load %arg11[%c0_89, %c0_90] : memref<32x3xf32, #tpu.memory_space<vmem>>, vector<32x1xf32>
    %248 = vector.broadcast %247 : vector<32x1xf32> to vector<32x76xf32>
    %249 = arith.addf %246, %248 : vector<32x76xf32>
    %cst_91 = arith.constant 0.000000e+00 : f32
    %250 = vector.broadcast %cst_91 : f32 to vector<32x76xf32>
    %251 = arith.maximumf %249, %250 : vector<32x76xf32>
    %c0_92 = arith.constant 0 : index
    %c0_93 = arith.constant 0 : index
    %252 = vector.load %arg9[%c0_92, %c0_93] : memref<32x32xf32, #tpu.memory_space<vmem>>, vector<32x32xf32>
    %c0_94 = arith.constant 0 : index
    %c1_95 = arith.constant 1 : index
    %253 = vector.load %arg11[%c0_94, %c1_95] : memref<32x3xf32, #tpu.memory_space<vmem>>, vector<32x1xf32>
    %c0_96 = arith.constant 0 : index
    %c2_97 = arith.constant 2 : index
    %254 = vector.load %arg11[%c0_96, %c2_97] : memref<32x3xf32, #tpu.memory_space<vmem>>, vector<32x1xf32>
    %cst_98 = arith.constant dense<0.000000e+00> : vector<32x76xf32>
    %255 = tpu.matmul %252, %251, %cst_98 {dimension_numbers = #tpu.dot_dimension_numbers<[1], [0], [0], [1], [0, 0, 1, 1], [], []>} : vector<32x32xf32>, vector<32x76xf32>, vector<32x76xf32> -> vector<32x76xf32>
    %cst_99 = arith.constant dense<0.000000e+00> : vector<32xf32>
    %256 = vector.multi_reduction <add>, %255, %cst_99 [1] : vector<32x76xf32> to vector<32xf32>
    %257 = vector.shape_cast %256 : vector<32xf32> to vector<32x1xf32>
    %258 = arith.mulf %251, %251 : vector<32x76xf32>
    %cst_100 = arith.constant dense<0.000000e+00> : vector<32x76xf32>
    %259 = tpu.matmul %252, %258, %cst_100 {dimension_numbers = #tpu.dot_dimension_numbers<[1], [0], [0], [1], [0, 0, 1, 1], [], []>} : vector<32x32xf32>, vector<32x76xf32>, vector<32x76xf32> -> vector<32x76xf32>
    %cst_101 = arith.constant dense<0.000000e+00> : vector<32xf32>
    %260 = vector.multi_reduction <add>, %259, %cst_101 [1] : vector<32x76xf32> to vector<32xf32>
    %261 = vector.shape_cast %260 : vector<32xf32> to vector<32x1xf32>
    %cst_102 = arith.constant 1.520000e+02 : f32
    %262 = vector.broadcast %cst_102 : f32 to vector<32x1xf32>
    %263 = arith.divf %257, %262 : vector<32x1xf32>
    %cst_103 = arith.constant 1.520000e+02 : f32
    %264 = vector.broadcast %cst_103 : f32 to vector<32x1xf32>
    %265 = arith.divf %261, %264 : vector<32x1xf32>
    %266 = arith.mulf %263, %263 : vector<32x1xf32>
    %267 = arith.subf %265, %266 : vector<32x1xf32>
    %cst_104 = arith.constant 9.99999974E-6 : f32
    %268 = vector.broadcast %cst_104 : f32 to vector<32x1xf32>
    %269 = arith.addf %267, %268 : vector<32x1xf32>
    %270 = math.rsqrt %269 : vector<32x1xf32>
    %271 = arith.mulf %270, %253 : vector<32x1xf32>
    %272 = vector.broadcast %263 : vector<32x1xf32> to vector<32x76xf32>
    %273 = arith.subf %251, %272 : vector<32x76xf32>
    %274 = vector.broadcast %271 : vector<32x1xf32> to vector<32x76xf32>
    %275 = arith.mulf %273, %274 : vector<32x76xf32>
    %276 = vector.broadcast %254 : vector<32x1xf32> to vector<32x76xf32>
    %277 = arith.addf %275, %276 : vector<32x76xf32>
    %278 = vector.extract_strided_slice %277 {offsets = [0, 0], sizes = [2, 76], strides = [1, 1]} : vector<32x76xf32> to vector<2x76xf32>
    %279 = vector.extract_strided_slice %277 {offsets = [2, 0], sizes = [2, 76], strides = [1, 1]} : vector<32x76xf32> to vector<2x76xf32>
    %280 = vector.extract_strided_slice %277 {offsets = [4, 0], sizes = [2, 76], strides = [1, 1]} : vector<32x76xf32> to vector<2x76xf32>
    %281 = vector.extract_strided_slice %277 {offsets = [6, 0], sizes = [2, 76], strides = [1, 1]} : vector<32x76xf32> to vector<2x76xf32>
    %282 = vector.extract_strided_slice %277 {offsets = [8, 0], sizes = [2, 76], strides = [1, 1]} : vector<32x76xf32> to vector<2x76xf32>
    %283 = vector.extract_strided_slice %277 {offsets = [10, 0], sizes = [2, 76], strides = [1, 1]} : vector<32x76xf32> to vector<2x76xf32>
    %284 = vector.extract_strided_slice %277 {offsets = [12, 0], sizes = [2, 76], strides = [1, 1]} : vector<32x76xf32> to vector<2x76xf32>
    %285 = vector.extract_strided_slice %277 {offsets = [14, 0], sizes = [2, 76], strides = [1, 1]} : vector<32x76xf32> to vector<2x76xf32>
    %286 = vector.extract_strided_slice %277 {offsets = [16, 0], sizes = [2, 76], strides = [1, 1]} : vector<32x76xf32> to vector<2x76xf32>
    %287 = vector.extract_strided_slice %277 {offsets = [18, 0], sizes = [2, 76], strides = [1, 1]} : vector<32x76xf32> to vector<2x76xf32>
    %288 = vector.extract_strided_slice %277 {offsets = [20, 0], sizes = [2, 76], strides = [1, 1]} : vector<32x76xf32> to vector<2x76xf32>
    %289 = vector.extract_strided_slice %277 {offsets = [22, 0], sizes = [2, 76], strides = [1, 1]} : vector<32x76xf32> to vector<2x76xf32>
    %290 = vector.extract_strided_slice %277 {offsets = [24, 0], sizes = [2, 76], strides = [1, 1]} : vector<32x76xf32> to vector<2x76xf32>
    %291 = vector.extract_strided_slice %277 {offsets = [26, 0], sizes = [2, 76], strides = [1, 1]} : vector<32x76xf32> to vector<2x76xf32>
    %292 = vector.extract_strided_slice %277 {offsets = [28, 0], sizes = [2, 76], strides = [1, 1]} : vector<32x76xf32> to vector<2x76xf32>
    %293 = vector.extract_strided_slice %277 {offsets = [30, 0], sizes = [2, 76], strides = [1, 1]} : vector<32x76xf32> to vector<2x76xf32>
    %294 = tpu.concatenate %278, %279, %280, %281, %282, %283, %284, %285, %286, %287, %288, %289, %290, %291, %292, %293 in 1 : vector<2x76xf32>, vector<2x76xf32>, vector<2x76xf32>, vector<2x76xf32>, vector<2x76xf32>, vector<2x76xf32>, vector<2x76xf32>, vector<2x76xf32>, vector<2x76xf32>, vector<2x76xf32>, vector<2x76xf32>, vector<2x76xf32>, vector<2x76xf32>, vector<2x76xf32>, vector<2x76xf32>, vector<2x76xf32> -> vector<2x1216xf32>
    %c0_105 = arith.constant 0 : index
    %c0_106 = arith.constant 0 : index
    %295 = vector.load %arg23[%c0_105, %c0_106] : memref<2x1216xf32, #tpu.memory_space<vmem>>, vector<2x1216xf32>
    tpu.vector_store %arg23[%c0_105, %c0_106], %294 {strides = array<i32>} : memref<2x1216xf32, #tpu.memory_space<vmem>>, vector<2x1216xf32>,
    %c0_107 = arith.constant 0 : index
    %c0_108 = arith.constant 0 : index
    %296 = vector.load %arg3[%c0_107, %c0_108] : memref<2x768xf32, #tpu.memory_space<vmem>>, vector<2x768xf32>
    %c0_109 = arith.constant 0 : index
    %c0_110 = arith.constant 0 : index
    %297 = vector.load %arg13[%c0_109, %c0_110] : memref<768x1000xf32, #tpu.memory_space<vmem>>, vector<768x1000xf32>
    %cst_111 = arith.constant dense<0.000000e+00> : vector<2x1000xf32>
    %298 = tpu.matmul %296, %297, %cst_111 {dimension_numbers = #tpu.dot_dimension_numbers<[1], [0], [0], [1], [0, 0, 1, 1], [], []>} : vector<2x768xf32>, vector<768x1000xf32>, vector<2x1000xf32> -> vector<2x1000xf32>
    %c0_112 = arith.constant 0 : index
    %c0_113 = arith.constant 0 : index
    %299 = vector.load %arg14[%c0_112, %c0_113] : memref<1x1000xf32, #tpu.memory_space<vmem>>, vector<1x1000xf32>
    %300 = vector.broadcast %299 : vector<1x1000xf32> to vector<2x1000xf32>
    %301 = arith.addf %298, %300 : vector<2x1000xf32>
    %c0_114 = arith.constant 0 : index
    %c0_115 = arith.constant 0 : index
    %302 = vector.load %arg22[%c0_114, %c0_115] : memref<2x1000xf32, #tpu.memory_space<vmem>>, vector<2x1000xf32>
    tpu.vector_store %arg22[%c0_114, %c0_115], %301 {strides = array<i32>} : memref<2x1000xf32, #tpu.memory_space<vmem>>, vector<2x1000xf32>,
    %c0_116 = arith.constant 0 : index
    %c0_117 = arith.constant 0 : index
    %303 = vector.load %arg15[%c0_116, %c0_117] : memref<1000x120xf32, #tpu.memory_space<vmem>>, vector<1000x120xf32>
    %cst_118 = arith.constant dense<0.000000e+00> : vector<2x120xf32>
    %304 = tpu.matmul %301, %303, %cst_118 {dimension_numbers = #tpu.dot_dimension_numbers<[1], [0], [0], [1], [0, 0, 1, 1], [], []>} : vector<2x1000xf32>, vector<1000x120xf32>, vector<2x120xf32> -> vector<2x120xf32>
    %c0_119 = arith.constant 0 : index
    %c0_120 = arith.constant 0 : index
    %305 = vector.load %arg16[%c0_119, %c0_120] : memref<1216x120xf32, #tpu.memory_space<vmem>>, vector<1216x120xf32>
    %cst_121 = arith.constant dense<0.000000e+00> : vector<2x120xf32>
    %306 = tpu.matmul %294, %305, %cst_121 {dimension_numbers = #tpu.dot_dimension_numbers<[1], [0], [0], [1], [0, 0, 1, 1], [], []>} : vector<2x1216xf32>, vector<1216x120xf32>, vector<2x120xf32> -> vector<2x120xf32>
    %307 = arith.addf %304, %306 : vector<2x120xf32>
    %c0_122 = arith.constant 0 : index
    %c0_123 = arith.constant 0 : index
    %308 = vector.load %arg17[%c0_122, %c0_123] : memref<1x120xf32, #tpu.memory_space<vmem>>, vector<1x120xf32>
    %309 = vector.broadcast %308 : vector<1x120xf32> to vector<2x120xf32>
    %310 = arith.addf %307, %309 : vector<2x120xf32>
    %cst_124 = arith.constant 0.000000e+00 : f32
    %311 = vector.broadcast %cst_124 : f32 to vector<2x120xf32>
    %312 = arith.maximumf %310, %311 : vector<2x120xf32>
    %c0_125 = arith.constant 0 : index
    %c0_126 = arith.constant 0 : index
    %313 = vector.load %arg18[%c0_125, %c0_126] : memref<120x84xf32, #tpu.memory_space<vmem>>, vector<120x84xf32>
    %cst_127 = arith.constant dense<0.000000e+00> : vector<2x84xf32>
    %314 = tpu.matmul %312, %313, %cst_127 {dimension_numbers = #tpu.dot_dimension_numbers<[1], [0], [0], [1], [0, 0, 1, 1], [], []>} : vector<2x120xf32>, vector<120x84xf32>, vector<2x84xf32> -> vector<2x84xf32>
    %c0_128 = arith.constant 0 : index
    %c0_129 = arith.constant 0 : index
    %315 = vector.load %arg19[%c0_128, %c0_129] : memref<1x84xf32, #tpu.memory_space<vmem>>, vector<1x84xf32>
    %316 = vector.broadcast %315 : vector<1x84xf32> to vector<2x84xf32>
    %317 = arith.addf %314, %316 : vector<2x84xf32>
    %c0_130 = arith.constant 0 : index
    %c0_131 = arith.constant 0 : index
    %318 = vector.load %arg24[%c0_130, %c0_131] : memref<2x84xf32, #tpu.memory_space<vmem>>, vector<2x84xf32>
    tpu.vector_store %arg24[%c0_130, %c0_131], %317 {strides = array<i32>} : memref<2x84xf32, #tpu.memory_space<vmem>>, vector<2x84xf32>,
    %cst_132 = arith.constant 0.000000e+00 : f32
    %319 = vector.broadcast %cst_132 : f32 to vector<2x84xf32>
    %320 = arith.maximumf %317, %319 : vector<2x84xf32>
    %c0_133 = arith.constant 0 : index
    %c0_134 = arith.constant 0 : index
    %321 = vector.load %arg20[%c0_133, %c0_134] : memref<84x2xf32, #tpu.memory_space<vmem>>, vector<84x2xf32>
    %cst_135 = arith.constant dense<0.000000e+00> : vector<2x2xf32>
    %322 = tpu.matmul %320, %321, %cst_135 {dimension_numbers = #tpu.dot_dimension_numbers<[1], [0], [0], [1], [0, 0, 1, 1], [], []>} : vector<2x84xf32>, vector<84x2xf32>, vector<2x2xf32> -> vector<2x2xf32>
    %c0_136 = arith.constant 0 : index
    %c0_137 = arith.constant 0 : index
    %323 = vector.load %arg21[%c0_136, %c0_137] : memref<1x2xf32, #tpu.memory_space<vmem>>, vector<1x2xf32>
    %324 = vector.broadcast %323 : vector<1x2xf32> to vector<2x2xf32>
    %325 = arith.addf %322, %324 : vector<2x2xf32>
    %c0_138 = arith.constant 0 : index
    %c0_139 = arith.constant 0 : index
    %326 = vector.load %arg25[%c0_138, %c0_139] : memref<2x2xf32, #tpu.memory_space<vmem>>, vector<2x2xf32>
    tpu.vector_store %arg25[%c0_138, %c0_139], %325 {strides = array<i32>} : memref<2x2xf32, #tpu.memory_space<vmem>>, vector<2x2xf32>,
    %cst_140 = arith.constant dense<0xFF800000> : vector<2xf32>
    %327 = vector.multi_reduction <maximumf>, %325, %cst_140 [1] : vector<2x2xf32> to vector<2xf32>
    %328 = vector.shape_cast %327 : vector<2xf32> to vector<2x1xf32>
    %329 = vector.broadcast %328 : vector<2x1xf32> to vector<2x2xf32>
    %330 = arith.subf %325, %329 : vector<2x2xf32>
    %331 = math.exp %330 : vector<2x2xf32>
    %cst_141 = arith.constant dense<0.000000e+00> : vector<2xf32>
    %332 = vector.multi_reduction <add>, %331, %cst_141 [1] : vector<2x2xf32> to vector<2xf32>
    %333 = vector.shape_cast %332 : vector<2xf32> to vector<2x1xf32>
    %334 = vector.broadcast %333 : vector<2x1xf32> to vector<2x2xf32>
    %335 = arith.divf %331, %334 : vector<2x2xf32>
    %c0_142 = arith.constant 0 : index
    %c0_143 = arith.constant 0 : index
    %336 = vector.load %arg26[%c0_142, %c0_143] : memref<2x2xf32, #tpu.memory_space<vmem>>, vector<2x2xf32>
    tpu.vector_store %arg26[%c0_142, %c0_143], %335 {strides = array<i32>} : memref<2x2xf32, #tpu.memory_space<vmem>>, vector<2x2xf32>,
    return
  }
}

</mosaic_0001>

<llo_original>
// kernel: convnet_forward.1
$region0: #{convnet_forward.1}
  #allocation0 [shape = 'u32[]', space=smem, size = 0x4, offset = 0x4, fixed_abs, tag = 'smem constant byte address 0x4 - core index']
  #allocation1 [shape = 'u32[144,128]{1,0:T(1,128)}', space=vmem, size = 0x12000, scoped, tag = 'internal scratch']
  %s0 = inlined_call_operand.vmem [shape: f32[2,232], index: 0, kind: input, shape index: {}]
  %s1 = inlined_call_operand.vmem [shape: f32[2,231], index: 1, kind: input, shape index: {}]
  %s2 = inlined_call_operand.vmem [shape: f32[2,231], index: 2, kind: input, shape index: {}]
  %s3 = inlined_call_operand.vmem [shape: f32[2,768], index: 3, kind: input, shape index: {}]
  %s4 = inlined_call_operand.vmem [shape: f32[8], index: 4, kind: input, shape index: {}]
  %s5 = inlined_call_operand.vmem [shape: f32[12,2], index: 5, kind: input, shape index: {}]
  %s6 = inlined_call_operand.vmem [shape: f32[3,12,12], index: 6, kind: input, shape index: {}]
  %s7 = inlined_call_operand.vmem [shape: f32[32,12], index: 7, kind: input, shape index: {}]
  %s8 = inlined_call_operand.vmem [shape: f32[12,12], index: 8, kind: input, shape index: {}]
  %s9 = inlined_call_operand.vmem [shape: f32[32,32], index: 9, kind: input, shape index: {}]
  %s10 = inlined_call_operand.vmem [shape: f32[12,6], index: 10, kind: input, shape index: {}]
  %s11 = inlined_call_operand.vmem [shape: f32[32,3], index: 11, kind: input, shape index: {}]
  %s12 = inlined_call_operand.vmem [shape: f32[228,228], index: 12, kind: input, shape index: {}]
  %s13 = inlined_call_operand.vmem [shape: f32[768,1000], index: 13, kind: input, shape index: {}]
  %s14 = inlined_call_operand.vmem [shape: f32[1,1000], index: 14, kind: input, shape index: {}]
  %s15 = inlined_call_operand.vmem [shape: f32[1000,120], index: 15, kind: input, shape index: {}]
  %s16 = inlined_call_operand.vmem [shape: f32[1216,120], index: 16, kind: input, shape index: {}]
  %s17 = inlined_call_operand.vmem [shape: f32[1,120], index: 17, kind: input, shape index: {}]
  %s18 = inlined_call_operand.vmem [shape: f32[120,84], index: 18, kind: input, shape index: {}]
  %s19 = inlined_call_operand.vmem [shape: f32[1,84], index: 19, kind: input, shape index: {}]
  %s20 = inlined_call_operand.vmem [shape: f32[84,2], index: 20, kind: input, shape index: {}]
  %s21 = inlined_call_operand.vmem [shape: f32[1,2], index: 21, kind: input, shape index: {}]
  %s22 = inlined_call_operand.hbm [shape: f32[2,1000], index: 22, kind: output, shape index: {0}]
  %s23 = inlined_call_operand.hbm [shape: f32[2,1216], index: 23, kind: output, shape index: {1}]
  %s24 = inlined_call_operand.hbm [shape: f32[2,84], index: 24, kind: output, shape index: {2}]
  %s25 = inlined_call_operand.hbm [shape: f32[2,2], index: 25, kind: output, shape index: {3}]
  %s26 = inlined_call_operand.hbm [shape: f32[2,2], index: 26, kind: output, shape index: {4}]
  %27 = xla_tuple %s22, %s23, %s24, %s25, %s26
  %s28 = sld [smem:[#allocation0]]
  $region134: #{convnet_forward.1} parent=0
    _
  %s30 = ssub.s32 1, %s28
  %s31 = scalar_select 0, %s30, %s28
  $region1: #{convnet_forward.1} parent=0
    #allocation2 [shape = 'u8[512]{0}', space=smem, size = 0x200, scoped, tag = 'input window, operand 4, single buffered']
    #allocation3 [shape = 's32[1]{0}', space=sflag, size = 0x4, scoped, tag = 'scoped memory for convnet_forward.1']
    #allocation4 [shape = 's32[1]{0}', space=sflag, size = 0x4, scoped, tag = 'scoped memory for convnet_forward.1']
    #allocation5 [shape = 'u8[8192]{0}', space=vmem, size = 0x2000, scoped, tag = 'output window, operand 0, single buffered']
    #allocation6 [shape = 'u8[10240]{0}', space=vmem, size = 0x2800, scoped, tag = 'output window, operand 1, single buffered']
    #allocation7 [shape = 's32[1]{0}', space=sflag, size = 0x4, scoped, tag = 'scoped memory for convnet_forward.1']
    #allocation8 [shape = 'u8[1024]{0}', space=vmem, size = 0x400, scoped, tag = 'output window, operand 2, single buffered']
    #allocation9 [shape = 'u8[1024]{0}', space=vmem, size = 0x400, scoped, tag = 'output window, operand 3, single buffered']
    #allocation10 [shape = 's32[1]{0}', space=sflag, size = 0x4, scoped, tag = 'scoped memory for convnet_forward.1']
    #allocation11 [shape = 'u8[1024]{0}', space=vmem, size = 0x400, scoped, tag = 'output window, operand 4, single buffered']
    %32 = vsyncpa [#allocation4], 0
    %33 = vsyncpa [#allocation3], 0
    %34 = vsyncpa [#allocation7], 0
    %35 = vsyncpa [#allocation10], 0
    // Predicated region
    $region2: #{convnet_forward.1} parent=1 // pred_check
      _
    $region3: #{convnet_forward.1} parent=1 // pred_check_branch
      %37 = sbr.rel (0) target = $region5
    $region4: #{convnet_forward.1} parent=1 // pred_region
      _
    $region5: #{convnet_forward.1} parent=1 // pred_fallthru
      _
    // Predicated region
    $region6: #{convnet_forward.1} parent=1 // pred_check
      _
    $region7: #{convnet_forward.1} parent=1 // pred_check_branch
      %39 = sbr.rel (0) target = $region9
    $region8: #{convnet_forward.1} parent=1 // pred_region
      _
    $region9: #{convnet_forward.1} parent=1 // pred_fallthru
      _
    // Predicated region
    $region10: #{convnet_forward.1} parent=1 // pred_check
      _
    $region11: #{convnet_forward.1} parent=1 // pred_check_branch
      %41 = sbr.rel (0) target = $region13
    $region12: #{convnet_forward.1} parent=1 // pred_region
      _
    $region13: #{convnet_forward.1} parent=1 // pred_fallthru
      _
    // Predicated region
    $region14: #{convnet_forward.1} parent=1 // pred_check
      _
    $region15: #{convnet_forward.1} parent=1 // pred_check_branch
      %43 = sbr.rel (0) target = $region17
    $region16: #{convnet_forward.1} parent=1 // pred_region
      _
    $region17: #{convnet_forward.1} parent=1 // pred_fallthru
      _
    // Predicated region
    $region18: #{convnet_forward.1} parent=1 // pred_check
      _
    $region19: #{convnet_forward.1} parent=1 // pred_check_branch
      %45 = sbr.rel (0) target = $region21
    $region20: #{convnet_forward.1} parent=1 // pred_region
      %s47 = ssub.s32 16, 16
      %48 = vsyncadd [#allocation4], %s47
      %s50 = sshll.u32 %s4, 4
      %s51 = int_to_ptr.vmem [resolvable:$true] %s50
      %53 = dma.vmem_to_smem %s51, 16, [#allocation2], [#allocation4]
    $region21: #{convnet_forward.1} parent=1 // pred_fallthru
      _
    // Predicated region
    $region22: #{convnet_forward.1} parent=1 // pred_check
      _
    $region23: #{convnet_forward.1} parent=1 // pred_check_branch
      %55 = sbr.rel (0) target = $region25
    $region24: #{convnet_forward.1} parent=1 // pred_region
      _
    $region25: #{convnet_forward.1} parent=1 // pred_fallthru
      _
    // Predicated region
    $region26: #{convnet_forward.1} parent=1 // pred_check
      _
    $region27: #{convnet_forward.1} parent=1 // pred_check_branch
      %57 = sbr.rel (0) target = $region29
    $region28: #{convnet_forward.1} parent=1 // pred_region
      _
    $region29: #{convnet_forward.1} parent=1 // pred_fallthru
      _
    // Predicated region
    $region30: #{convnet_forward.1} parent=1 // pred_check
      _
    $region31: #{convnet_forward.1} parent=1 // pred_check_branch
      %59 = sbr.rel (0) target = $region33
    $region32: #{convnet_forward.1} parent=1 // pred_region
      _
    $region33: #{convnet_forward.1} parent=1 // pred_fallthru
      _
    // Predicated region
    $region34: #{convnet_forward.1} parent=1 // pred_check
      _
    $region35: #{convnet_forward.1} parent=1 // pred_check_branch
      %61 = sbr.rel (0) target = $region37
    $region36: #{convnet_forward.1} parent=1 // pred_region
      _
    $region37: #{convnet_forward.1} parent=1 // pred_fallthru
      _
    // Predicated region
    $region38: #{convnet_forward.1} parent=1 // pred_check
      _
    $region39: #{convnet_forward.1} parent=1 // pred_check_branch
      %63 = sbr.rel (0) target = $region41
    $region40: #{convnet_forward.1} parent=1 // pred_region
      _
    $region41: #{convnet_forward.1} parent=1 // pred_fallthru
      _
    // Predicated region
    $region42: #{convnet_forward.1} parent=1 // pred_check
      _
    $region43: #{convnet_forward.1} parent=1 // pred_check_branch
      %65 = sbr.rel (0) target = $region45
    $region44: #{convnet_forward.1} parent=1 // pred_region
      _
    $region45: #{convnet_forward.1} parent=1 // pred_fallthru
      _
    // Predicated region
    $region46: #{convnet_forward.1} parent=1 // pred_check
      _
    $region47: #{convnet_forward.1} parent=1 // pred_check_branch
      %67 = sbr.rel (0) target = $region49
    $region48: #{convnet_forward.1} parent=1 // pred_region
      _
    $region49: #{convnet_forward.1} parent=1 // pred_fallthru
      _
    // Predicated region
    $region50: #{convnet_forward.1} parent=1 // pred_check
      _
    $region51: #{convnet_forward.1} parent=1 // pred_check_branch
      %69 = sbr.rel (0) target = $region53
    $region52: #{convnet_forward.1} parent=1 // pred_region
      _
    $region53: #{convnet_forward.1} parent=1 // pred_fallthru
      _
    // Predicated region
    $region54: #{convnet_forward.1} parent=1 // pred_check
      _
    $region55: #{convnet_forward.1} parent=1 // pred_check_branch
      %71 = sbr.rel (0) target = $region57
    $region56: #{convnet_forward.1} parent=1 // pred_region
      _
    $region57: #{convnet_forward.1} parent=1 // pred_fallthru
      _
    // Predicated region
    $region58: #{convnet_forward.1} parent=1 // pred_check
      _
    $region59: #{convnet_forward.1} parent=1 // pred_check_branch
      %73 = sbr.rel (0) target = $region61
    $region60: #{convnet_forward.1} parent=1 // pred_region
      _
    $region61: #{convnet_forward.1} parent=1 // pred_fallthru
      _
    // Predicated region
    $region62: #{convnet_forward.1} parent=1 // pred_check
      _
    $region63: #{convnet_forward.1} parent=1 // pred_check_branch
      %75 = sbr.rel (0) target = $region65
    $region64: #{convnet_forward.1} parent=1 // pred_region
      _
    $region65: #{convnet_forward.1} parent=1 // pred_fallthru
      _
    // Predicated region
    $region66: #{convnet_forward.1} parent=1 // pred_check
      _
    $region67: #{convnet_forward.1} parent=1 // pred_check_branch
      %77 = sbr.rel (0) target = $region69
    $region68: #{convnet_forward.1} parent=1 // pred_region
      _
    $region69: #{convnet_forward.1} parent=1 // pred_fallthru
      _
    // Predicated region
    $region70: #{convnet_forward.1} parent=1 // pred_check
      _
    $region71: #{convnet_forward.1} parent=1 // pred_check_branch
      %79 = sbr.rel (0) target = $region73
    $region72: #{convnet_forward.1} parent=1 // pred_region
      _
    $region73: #{convnet_forward.1} parent=1 // pred_fallthru
      _
    // Predicated region
    $region74: #{convnet_forward.1} parent=1 // pred_check
      _
    $region75: #{convnet_forward.1} parent=1 // pred_check_branch
      %81 = sbr.rel (0) target = $region77
    $region76: #{convnet_forward.1} parent=1 // pred_region
      _
    $region77: #{convnet_forward.1} parent=1 // pred_fallthru
      _
    // Predicated region
    $region78: #{convnet_forward.1} parent=1 // pred_check
      _
    $region79: #{convnet_forward.1} parent=1 // pred_check_branch
      %83 = sbr.rel (0) target = $region81
    $region80: #{convnet_forward.1} parent=1 // pred_region
      _
    $region81: #{convnet_forward.1} parent=1 // pred_fallthru
      _
    // Predicated region
    $region82: #{convnet_forward.1} parent=1 // pred_check
      _
    $region83: #{convnet_forward.1} parent=1 // pred_check_branch
      %85 = sbr.rel (0) target = $region85
    $region84: #{convnet_forward.1} parent=1 // pred_region
      _
    $region85: #{convnet_forward.1} parent=1 // pred_fallthru
      _
    // Predicated region
    $region86: #{convnet_forward.1} parent=1 // pred_check
      _
    $region87: #{convnet_forward.1} parent=1 // pred_check_branch
      %87 = sbr.rel (0) target = $region89
    $region88: #{convnet_forward.1} parent=1 // pred_region
      _
    $region89: #{convnet_forward.1} parent=1 // pred_fallthru
      _
    // Predicated region
    $region90: #{convnet_forward.1} parent=1 // pred_check
      _
    $region91: #{convnet_forward.1} parent=1 // pred_check_branch
      %89 = sbr.rel (0) target = $region93
    $region92: #{convnet_forward.1} parent=1 // pred_region
      %90 = dma.done [#allocation4], 16
    $region93: #{convnet_forward.1} parent=1 // pred_fallthru
      _
    %91 = sfence
    %v92 = vld [vmem:[%s0] sm:$0xf]
    %v93 = vld [vmem:[%s1] sm:$0xf]
    %v94 = vld [vmem:[%s2] sm:$0xf]
    %s95 = sld [smem:[#allocation2]]
    %v96 = vstv %s95
    %v97 = vmul.f32 %v96, %v92
    %v98 = vadd.f32 %v97, 0.0
    %s99 = sld [smem:[#allocation2 + $0x1]]
    %v100 = vstv %s99
    %v101 = vmul.f32 %v100, %v93
    %v102 = vadd.f32 %v98, %v101
    %s103 = sld [smem:[#allocation2 + $0x2]]
    %v104 = vstv %s103
    %v105 = vmul.f32 %v104, %v94
    %v106 = vadd.f32 %v102, %v105
    %s107 = sld [smem:[#allocation2 + $0x3]]
    %v108 = vstv %s107
    %v109 = vmul.f32 %v108, %v92
    %111 = vrot.lane.b32.xlu0 %v109, 127
    %v112 = vpop.permute.xlu0 %111
    %v113 = vrot.slane %v112, 2
    %vm114 = vcmask 1039360
    %v115 = vsel %vm114, %v112, %v113
    %v117 = vadd.f32 %v106, %v115
    %s118 = sld [smem:[#allocation2 + $0x4]]
    %v119 = vstv %s118
    %v120 = vmul.f32 %v119, %v93
    %122 = vrot.lane.b32.xlu0 %v120, 127
    %v123 = vpop.permute.xlu0 %122
    %v124 = vrot.slane %v123, 2
    %v125 = vsel %vm114, %v123, %v124
    %v127 = vadd.f32 %v117, %v125
    %s128 = sld [smem:[#allocation2 + $0x5]]
    %v129 = vstv %s128
    %v130 = vadd.f32 %v127, %v129
    %v131 = vmax.f32 %v130, 0.0
    %v132 = vmul.f32 %v96, %v93
    %v133 = vadd.f32 %v132, 0.0
    %v134 = vmul.f32 %v100, %v94
    %v135 = vadd.f32 %v133, %v134
    %v136 = vmul.f32 %v104, %v92
    %138 = vrot.lane.b32.xlu0 %v136, 127
    %v139 = vpop.permute.xlu0 %138
    %v140 = vrot.slane %v139, 2
    %v141 = vsel %vm114, %v139, %v140
    %v143 = vadd.f32 %v135, %v141
    %v144 = vmul.f32 %v108, %v93
    %146 = vrot.lane.b32.xlu0 %v144, 127
    %v147 = vpop.permute.xlu0 %146
    %v148 = vrot.slane %v147, 2
    %v149 = vsel %vm114, %v147, %v148
    %v151 = vadd.f32 %v143, %v149
    %v152 = vmul.f32 %v119, %v94
    %154 = vrot.lane.b32.xlu0 %v152, 127
    %v155 = vpop.permute.xlu0 %154
    %v156 = vrot.slane %v155, 2
    %v157 = vsel %vm114, %v155, %v156
    %v159 = vadd.f32 %v151, %v157
    %v160 = vadd.f32 %v159, %v129
    %v161 = vmax.f32 %v160, 0.0
    %v162 = vmul.f32 %v96, %v94
    %v163 = vadd.f32 %v162, 0.0
    %v164 = vmul.f32 %v100, %v92
    %166 = vrot.lane.b32.xlu0 %v164, 127
    %v167 = vpop.permute.xlu0 %166
    %v168 = vrot.slane %v167, 2
    %v169 = vsel %vm114, %v167, %v168
    %v171 = vadd.f32 %v163, %v169
    %v172 = vmul.f32 %v104, %v93
    %174 = vrot.lane.b32.xlu0 %v172, 127
    %v175 = vpop.permute.xlu0 %174
    %v176 = vrot.slane %v175, 2
    %v177 = vsel %vm114, %v175, %v176
    %v179 = vadd.f32 %v171, %v177
    %v180 = vmul.f32 %v108, %v94
    %182 = vrot.lane.b32.xlu0 %v180, 127
    %v183 = vpop.permute.xlu0 %182
    %v184 = vrot.slane %v183, 2
    %v185 = vsel %vm114, %v183, %v184
    %v187 = vadd.f32 %v179, %v185
    %v188 = vmul.f32 %v119, %v92
    %190 = vrot.lane.b32.xlu0 %v188, 126
    %v191 = vpop.permute.xlu0 %190
    %v192 = vrot.slane %v191, 2
    %vm193 = vcmask 1031168
    %v194 = vsel %vm193, %v191, %v192
    %v196 = vadd.f32 %v187, %v194
    %v197 = vadd.f32 %v196, %v129
    %v198 = vmax.f32 %v197, 0.0
    %v201 = vunpack.c.l.s4 1983009808
    %v202 = vunpack.c.0.s8 %v201
    %v203 = vlaneseq
    %v204 = vshrl.u32 %v203, 7
    %v205 = vsub.s32 %v202, %v204
    %v206 = vrot.slane %v131, %v205
    %v207 = vcombine.high %v206, %v206
    %vm210 = vcmask 1041408
    %v211 = vsel %vm210, %v206, 0.0
    %vm212 = vcmask 828416
    %v213 = vsel %vm212, %v207, 0.0
    %v214 = vadd.f32 %v211, %v213
    %215 = vadd.xlane.f32.xlu0 %v214
    %v216 = vpop.xlane.xlu0 %215
    %v217 = vrot.slane %v216, 4
    %v218 = vadd.f32 %v216, %v217
    %v219 = vrot.slane %v218, 2
    %v220 = vadd.f32 %v218, %v219
    %v221 = vrot.slane %v220, 1
    %v222 = vadd.f32 %v220, %v221
    %s223 = vtos %v222
    %v226 = vunpack.c.l.s4 1983009808
    %v227 = vunpack.c.0.s8 %v226
    %v228 = vlaneseq
    %v229 = vshrl.u32 %v228, 7
    %v230 = vsub.s32 %v227, %v229
    %v231 = vrot.slane %v161, %v230
    %v232 = vcombine.high %v231, %v231
    %v235 = vsel %vm210, %v231, 0.0
    %v236 = vsel %vm212, %v232, 0.0
    %v237 = vadd.f32 %v235, %v236
    %238 = vadd.xlane.f32.xlu0 %v237
    %v239 = vpop.xlane.xlu0 %238
    %v240 = vrot.slane %v239, 4
    %v241 = vadd.f32 %v239, %v240
    %v242 = vrot.slane %v241, 2
    %v243 = vadd.f32 %v241, %v242
    %v244 = vrot.slane %v243, 1
    %v245 = vadd.f32 %v243, %v244
    %s246 = vtos %v245
    %s247 = sadd.f32 %s223, %s246
    %v250 = vunpack.c.l.s4 1983009808
    %v251 = vunpack.c.0.s8 %v250
    %v252 = vlaneseq
    %v253 = vshrl.u32 %v252, 7
    %v254 = vsub.s32 %v251, %v253
    %v255 = vrot.slane %v198, %v254
    %v256 = vcombine.high %v255, %v255
    %v259 = vsel %vm210, %v255, 0.0
    %v260 = vsel %vm212, %v256, 0.0
    %v261 = vadd.f32 %v259, %v260
    %262 = vadd.xlane.f32.xlu0 %v261
    %v263 = vpop.xlane.xlu0 %262
    %v264 = vrot.slane %v263, 4
    %v265 = vadd.f32 %v263, %v264
    %v266 = vrot.slane %v265, 2
    %v267 = vadd.f32 %v265, %v266
    %v268 = vrot.slane %v267, 1
    %v269 = vadd.f32 %v267, %v268
    %s270 = vtos %v269
    %s271 = sadd.f32 %s247, %s270
    %v272 = vmul.f32 %v131, %v131
    %v275 = vunpack.c.l.s4 1983009808
    %v276 = vunpack.c.0.s8 %v275
    %v277 = vlaneseq
    %v278 = vshrl.u32 %v277, 7
    %v279 = vsub.s32 %v276, %v278
    %v280 = vrot.slane %v272, %v279
    %v281 = vcombine.high %v280, %v280
    %v284 = vsel %vm210, %v280, 0.0
    %v285 = vsel %vm212, %v281, 0.0
    %v286 = vadd.f32 %v284, %v285
    %287 = vadd.xlane.f32.xlu0 %v286
    %v288 = vpop.xlane.xlu0 %287
    %v289 = vrot.slane %v288, 4
    %v290 = vadd.f32 %v288, %v289
    %v291 = vrot.slane %v290, 2
    %v292 = vadd.f32 %v290, %v291
    %v293 = vrot.slane %v292, 1
    %v294 = vadd.f32 %v292, %v293
    %s295 = vtos %v294
    %v296 = vmul.f32 %v161, %v161
    %v299 = vunpack.c.l.s4 1983009808
    %v300 = vunpack.c.0.s8 %v299
    %v301 = vlaneseq
    %v302 = vshrl.u32 %v301, 7
    %v303 = vsub.s32 %v300, %v302
    %v304 = vrot.slane %v296, %v303
    %v305 = vcombine.high %v304, %v304
    %v308 = vsel %vm210, %v304, 0.0
    %v309 = vsel %vm212, %v305, 0.0
    %v310 = vadd.f32 %v308, %v309
    %311 = vadd.xlane.f32.xlu0 %v310
    %v312 = vpop.xlane.xlu0 %311
    %v313 = vrot.slane %v312, 4
    %v314 = vadd.f32 %v312, %v313
    %v315 = vrot.slane %v314, 2
    %v316 = vadd.f32 %v314, %v315
    %v317 = vrot.slane %v316, 1
    %v318 = vadd.f32 %v316, %v317
    %s319 = vtos %v318
    %s320 = sadd.f32 %s295, %s319
    %v321 = vmul.f32 %v198, %v198
    %v324 = vunpack.c.l.s4 1983009808
    %v325 = vunpack.c.0.s8 %v324
    %v326 = vlaneseq
    %v327 = vshrl.u32 %v326, 7
    %v328 = vsub.s32 %v325, %v327
    %v329 = vrot.slane %v321, %v328
    %v330 = vcombine.high %v329, %v329
    %v333 = vsel %vm210, %v329, 0.0
    %v334 = vsel %vm212, %v330, 0.0
    %v335 = vadd.f32 %v333, %v334
    %336 = vadd.xlane.f32.xlu0 %v335
    %v337 = vpop.xlane.xlu0 %336
    %v338 = vrot.slane %v337, 4
    %v339 = vadd.f32 %v337, %v338
    %v340 = vrot.slane %v339, 2
    %v341 = vadd.f32 %v339, %v340
    %v342 = vrot.slane %v341, 1
    %v343 = vadd.f32 %v341, %v342
    %s344 = vtos %v343
    %s345 = sadd.f32 %s320, %s344
    %v346 = vrcp.pop 1380.0
    %s347 = vtos %v346
    %s348 = smul.f32 %s271, %s347
    %v349 = vrcp.pop 1380.0
    %s350 = vtos %v349
    %s351 = smul.f32 %s345, %s350
    %s352 = smul.f32 %s348, %s348
    %s353 = ssub.f32 %s351, %s352
    %s354 = sadd.f32 %s353, 1e-05
    %v355 = vstv %s354
    %v356 = vrsqrt.pop %v355
    %s357 = vtos %v356
    %s358 = sld [smem:[#allocation2 + $0x6]]
    %s359 = smul.f32 %s357, %s358
    %s360 = sld [smem:[#allocation2 + $0x7]]
    %v361 = vld [vmem:[%s5] sm:$0xff]
    %v362 = vld [vmem:[%s5 + $0x8] sm:$0xf]
    %v363 = vstv %s348
    %v364 = vsub.f32 %v131, %v363
    %v365 = vstv %s359
    %v366 = vmul.f32 %v364, %v365
    %v367 = vstv %s360
    %v368 = vadd.f32 %v366, %v367
    %v371 = vunpack.c.l.s4 1983009808
    %v372 = vunpack.c.0.s8 %v371
    %v373 = vlaneseq
    %v374 = vshrl.u32 %v373, 7
    %v375 = vsub.s32 %v372, %v374
    %v376 = vrot.slane %v368, %v375
    %v377 = vcombine.high %v376, %v376
    %vm378 = vcmask 15360
    %v380 = vsel %vm378, %v361, 0
    %v383 = vsel %vm378, %v362, 0
    %v385 = vsel %vm210, %v376, 0
    %v387 = vsel %vm210, %v377, 0
    %389 = vmatprep.subr.mxu0 %v387
    %390 = vmatpush1.msra.mxu0 %v385
    %391 = vmatprep.subr.mxu0 0.0
    %392 = vmatpush1.msra.mxu0 0.0
    %393 = vmatprep.subr.mxu0 0.0
    %394 = vmatpush1.msra.mxu0 0.0
    %395 = vmatprep.subr.mxu0 0.0
    %396 = vmatpush1.msra.mxu0 0.0
    %397 = vmatprep.subr.mxu0 0.0
    %398 = vmatpush1.msra.mxu0 0.0
    %399 = vmatprep.subr.mxu0 0.0
    %400 = vmatpush1.msra.mxu0 0.0
    %401 = vmatprep.subr.mxu0 0.0
    %402 = vmatpush1.msra.mxu0 0.0
    %403 = vmatprep.subr.mxu0 0.0
    %404 = vmatpush1.msra.mxu0 0.0
    %405 = vmatprep.subr.mxu0 0.0
    %406 = vmatpush1.msra.mxu0 0.0
    %407 = vmatprep.subr.mxu0 0.0
    %408 = vmatpush1.msra.mxu0 0.0
    %409 = vmatprep.subr.mxu0 0.0
    %410 = vmatpush1.msra.mxu0 0.0
    %411 = vmatprep.subr.mxu0 0.0
    %412 = vmatpush1.msra.mxu0 0.0
    %413 = vmatprep.subr.mxu0 0.0
    %414 = vmatpush1.msra.mxu0 0.0
    %415 = vmatprep.subr.mxu0 0.0
    %416 = vmatpush1.msra.mxu0 0.0
    %417 = vmatprep.subr.mxu0 0.0
    %418 = vmatpush1.msra.mxu0 0.0
    %419 = vmatprep.subr.mxu0 0.0
    %420 = vmatpush1.msra.mxu0 0.0
    %421 = vmatprep.subr.mxu0 0.0
    %422 = vmatpush1.msra.mxu0 0.0
    %423 = vmatprep.subr.mxu0 0.0
    %424 = vmatpush1.msra.mxu0 0.0
    %425 = vmatprep.subr.mxu0 0.0
    %426 = vmatpush1.msra.mxu0 0.0
    %427 = vmatprep.subr.mxu0 0.0
    %428 = vmatpush1.msra.mxu0 0.0
    %429 = vmatprep.subr.mxu0 0.0
    %430 = vmatpush1.msra.mxu0 0.0
    %431 = vmatprep.subr.mxu0 0.0
    %432 = vmatpush1.msra.mxu0 0.0
    %433 = vmatprep.subr.mxu0 0.0
    %434 = vmatpush1.msra.mxu0 0.0
    %435 = vmatprep.subr.mxu0 0.0
    %436 = vmatpush1.msra.mxu0 0.0
    %437 = vmatprep.subr.mxu0 0.0
    %438 = vmatpush1.msra.mxu0 0.0
    %439 = vmatprep.subr.mxu0 0.0
    %440 = vmatpush1.msra.mxu0 0.0
    %441 = vmatprep.subr.mxu0 0.0
    %442 = vmatpush1.msra.mxu0 0.0
    %443 = vmatprep.subr.mxu0 0.0
    %444 = vmatpush1.msra.mxu0 0.0
    %445 = vmatprep.subr.mxu0 0.0
    %446 = vmatpush1.msra.mxu0 0.0
    %447 = vmatprep.subr.mxu0 0.0
    %448 = vmatpush1.msra.mxu0 0.0
    %449 = vmatprep.subr.mxu0 0.0
    %450 = vmatpush1.msra.mxu0 0.0
    %451 = vmatprep.subr.mxu0 0.0
    %452 = vmatpush1.msra.mxu0 0.0
    %453 = vmatprep.mubr.f32.mxu0 0.0
    %454 = vmatmul.mubr.f32.gmra.mrb[0].mxu0 %v380
    %v455 = vpop.f32.mrb[0].mxu0
    %v456 = vadd.f32 0.0, %v455
    %v457 = vpop.f32.mrb[0].mxu0
    %v458 = vadd.f32 0.0, %v457
    %459 = vmatprep.mubr.f32.mxu0 0.0
    %460 = vmatmul.mubr.f32.gmra.mrb[0].mxu0 %v383
    %v461 = vpop.f32.mrb[0].mxu0
    %v462 = vadd.f32 0.0, %v461
    %v463 = vpop.f32.mrb[0].mxu0
    %v464 = vadd.f32 0.0, %v463
    %465 = vdwg.mxu0
    %v466 = vsub.f32 %v161, %v363
    %v467 = vmul.f32 %v466, %v365
    %v468 = vadd.f32 %v467, %v367
    %v471 = vunpack.c.l.s4 1983009808
    %v472 = vunpack.c.0.s8 %v471
    %v473 = vlaneseq
    %v474 = vshrl.u32 %v473, 7
    %v475 = vsub.s32 %v472, %v474
    %v476 = vrot.slane %v468, %v475
    %v477 = vcombine.high %v476, %v476
    %v478 = vsel %vm210, %v476, 0
    %v480 = vsel %vm210, %v477, 0
    %482 = vmatprep.subr.mxu0 %v480
    %483 = vmatpush1.msra.mxu0 %v478
    %484 = vmatprep.subr.mxu0 0.0
    %485 = vmatpush1.msra.mxu0 0.0
    %486 = vmatprep.subr.mxu0 0.0
    %487 = vmatpush1.msra.mxu0 0.0
    %488 = vmatprep.subr.mxu0 0.0
    %489 = vmatpush1.msra.mxu0 0.0
    %490 = vmatprep.subr.mxu0 0.0
    %491 = vmatpush1.msra.mxu0 0.0
    %492 = vmatprep.subr.mxu0 0.0
    %493 = vmatpush1.msra.mxu0 0.0
    %494 = vmatprep.subr.mxu0 0.0
    %495 = vmatpush1.msra.mxu0 0.0
    %496 = vmatprep.subr.mxu0 0.0
    %497 = vmatpush1.msra.mxu0 0.0
    %498 = vmatprep.subr.mxu0 0.0
    %499 = vmatpush1.msra.mxu0 0.0
    %500 = vmatprep.subr.mxu0 0.0
    %501 = vmatpush1.msra.mxu0 0.0
    %502 = vmatprep.subr.mxu0 0.0
    %503 = vmatpush1.msra.mxu0 0.0
    %504 = vmatprep.subr.mxu0 0.0
    %505 = vmatpush1.msra.mxu0 0.0
    %506 = vmatprep.subr.mxu0 0.0
    %507 = vmatpush1.msra.mxu0 0.0
    %508 = vmatprep.subr.mxu0 0.0
    %509 = vmatpush1.msra.mxu0 0.0
    %510 = vmatprep.subr.mxu0 0.0
    %511 = vmatpush1.msra.mxu0 0.0
    %512 = vmatprep.subr.mxu0 0.0
    %513 = vmatpush1.msra.mxu0 0.0
    %514 = vmatprep.subr.mxu0 0.0
    %515 = vmatpush1.msra.mxu0 0.0
    %516 = vmatprep.subr.mxu0 0.0
    %517 = vmatpush1.msra.mxu0 0.0
    %518 = vmatprep.subr.mxu0 0.0
    %519 = vmatpush1.msra.mxu0 0.0
    %520 = vmatprep.subr.mxu0 0.0
    %521 = vmatpush1.msra.mxu0 0.0
    %522 = vmatprep.subr.mxu0 0.0
    %523 = vmatpush1.msra.mxu0 0.0
    %524 = vmatprep.subr.mxu0 0.0
    %525 = vmatpush1.msra.mxu0 0.0
    %526 = vmatprep.subr.mxu0 0.0
    %527 = vmatpush1.msra.mxu0 0.0
    %528 = vmatprep.subr.mxu0 0.0
    %529 = vmatpush1.msra.mxu0 0.0
    %530 = vmatprep.subr.mxu0 0.0
    %531 = vmatpush1.msra.mxu0 0.0
    %532 = vmatprep.subr.mxu0 0.0
    %533 = vmatpush1.msra.mxu0 0.0
    %534 = vmatprep.subr.mxu0 0.0
    %535 = vmatpush1.msra.mxu0 0.0
    %536 = vmatprep.subr.mxu0 0.0
    %537 = vmatpush1.msra.mxu0 0.0
    %538 = vmatprep.subr.mxu0 0.0
    %539 = vmatpush1.msra.mxu0 0.0
    %540 = vmatprep.subr.mxu0 0.0
    %541 = vmatpush1.msra.mxu0 0.0
    %542 = vmatprep.subr.mxu0 0.0
    %543 = vmatpush1.msra.mxu0 0.0
    %544 = vmatprep.subr.mxu0 0.0
    %545 = vmatpush1.msra.mxu0 0.0
    %546 = vmatprep.mubr.f32.mxu0 0.0
    %547 = vmatmul.mubr.f32.gmra.mrb[0].mxu0 %v380
    %v548 = vpop.f32.mrb[0].mxu0
    %v549 = vadd.f32 0.0, %v548
    %v550 = vpop.f32.mrb[0].mxu0
    %v551 = vadd.f32 0.0, %v550
    %552 = vmatprep.mubr.f32.mxu0 0.0
    %553 = vmatmul.mubr.f32.gmra.mrb[0].mxu0 %v383
    %v554 = vpop.f32.mrb[0].mxu0
    %v555 = vadd.f32 0.0, %v554
    %v556 = vpop.f32.mrb[0].mxu0
    %v557 = vadd.f32 0.0, %v556
    %558 = vdwg.mxu0
    %v559 = vsub.f32 %v198, %v363
    %v560 = vmul.f32 %v559, %v365
    %v561 = vadd.f32 %v560, %v367
    %v564 = vunpack.c.l.s4 1983009808
    %v565 = vunpack.c.0.s8 %v564
    %v566 = vlaneseq
    %v567 = vshrl.u32 %v566, 7
    %v568 = vsub.s32 %v565, %v567
    %v569 = vrot.slane %v561, %v568
    %v570 = vcombine.high %v569, %v569
    %v571 = vsel %vm210, %v569, 0
    %v573 = vsel %vm210, %v570, 0
    %575 = vmatprep.subr.mxu0 %v573
    %576 = vmatpush1.msra.mxu0 %v571
    %577 = vmatprep.subr.mxu0 0.0
    %578 = vmatpush1.msra.mxu0 0.0
    %579 = vmatprep.subr.mxu0 0.0
    %580 = vmatpush1.msra.mxu0 0.0
    %581 = vmatprep.subr.mxu0 0.0
    %582 = vmatpush1.msra.mxu0 0.0
    %583 = vmatprep.subr.mxu0 0.0
    %584 = vmatpush1.msra.mxu0 0.0
    %585 = vmatprep.subr.mxu0 0.0
    %586 = vmatpush1.msra.mxu0 0.0
    %587 = vmatprep.subr.mxu0 0.0
    %588 = vmatpush1.msra.mxu0 0.0
    %589 = vmatprep.subr.mxu0 0.0
    %590 = vmatpush1.msra.mxu0 0.0
    %591 = vmatprep.subr.mxu0 0.0
    %592 = vmatpush1.msra.mxu0 0.0
    %593 = vmatprep.subr.mxu0 0.0
    %594 = vmatpush1.msra.mxu0 0.0
    %595 = vmatprep.subr.mxu0 0.0
    %596 = vmatpush1.msra.mxu0 0.0
    %597 = vmatprep.subr.mxu0 0.0
    %598 = vmatpush1.msra.mxu0 0.0
    %599 = vmatprep.subr.mxu0 0.0
    %600 = vmatpush1.msra.mxu0 0.0
    %601 = vmatprep.subr.mxu0 0.0
    %602 = vmatpush1.msra.mxu0 0.0
    %603 = vmatprep.subr.mxu0 0.0
    %604 = vmatpush1.msra.mxu0 0.0
    %605 = vmatprep.subr.mxu0 0.0
    %606 = vmatpush1.msra.mxu0 0.0
    %607 = vmatprep.subr.mxu0 0.0
    %608 = vmatpush1.msra.mxu0 0.0
    %609 = vmatprep.subr.mxu0 0.0
    %610 = vmatpush1.msra.mxu0 0.0
    %611 = vmatprep.subr.mxu0 0.0
    %612 = vmatpush1.msra.mxu0 0.0
    %613 = vmatprep.subr.mxu0 0.0
    %614 = vmatpush1.msra.mxu0 0.0
    %615 = vmatprep.subr.mxu0 0.0
    %616 = vmatpush1.msra.mxu0 0.0
    %617 = vmatprep.subr.mxu0 0.0
    %618 = vmatpush1.msra.mxu0 0.0
    %619 = vmatprep.subr.mxu0 0.0
    %620 = vmatpush1.msra.mxu0 0.0
    %621 = vmatprep.subr.mxu0 0.0
    %622 = vmatpush1.msra.mxu0 0.0
    %623 = vmatprep.subr.mxu0 0.0
    %624 = vmatpush1.msra.mxu0 0.0
    %625 = vmatprep.subr.mxu0 0.0
    %626 = vmatpush1.msra.mxu0 0.0
    %627 = vmatprep.subr.mxu0 0.0
    %628 = vmatpush1.msra.mxu0 0.0
    %629 = vmatprep.subr.mxu0 0.0
    %630 = vmatpush1.msra.mxu0 0.0
    %631 = vmatprep.subr.mxu0 0.0
    %632 = vmatpush1.msra.mxu0 0.0
    %633 = vmatprep.subr.mxu0 0.0
    %634 = vmatpush1.msra.mxu0 0.0
    %635 = vmatprep.subr.mxu0 0.0
    %636 = vmatpush1.msra.mxu0 0.0
    %637 = vmatprep.subr.mxu0 0.0
    %638 = vmatpush1.msra.mxu0 0.0
    %639 = vmatprep.mubr.f32.mxu0 0.0
    %640 = vmatmul.mubr.f32.gmra.mrb[0].mxu0 %v380
    %v641 = vpop.f32.mrb[0].mxu0
    %v642 = vadd.f32 0.0, %v641
    %v643 = vpop.f32.mrb[0].mxu0
    %v644 = vadd.f32 0.0, %v643
    %645 = vmatprep.mubr.f32.mxu0 0.0
    %646 = vmatmul.mubr.f32.gmra.mrb[0].mxu0 %v383
    %v647 = vpop.f32.mrb[0].mxu0
    %v648 = vadd.f32 0.0, %v647
    %v649 = vpop.f32.mrb[0].mxu0
    %v650 = vadd.f32 0.0, %v649
    %651 = vdwg.mxu0
    %v652 = vmax.f32 %v456, %v549
    %v653 = vmax.f32 %v458, %v551
    %v654 = vmax.f32 %v462, %v555
    %v655 = vmax.f32 %v464, %v557
    %v656 = vmax.f32 %v652, %v642
    %v657 = vmax.f32 %v653, %v644
    %v658 = vmax.f32 %v654, %v648
    %v659 = vmax.f32 %v655, %v650
    %v660 = vld [vmem:[%s10] sm:$0xff]
    %v661 = vld [vmem:[%s10 + $0x8] sm:$0xf]
    %663 = vset.pattern.permute.xlu0 0
    %664 = vperm.xlu0 %663, %v660
    %v665 = vpop.permute.xlu0 %664
    %668 = vset.pattern.permute.xlu0 0
    %669 = vperm.xlu0 %668, %v661
    %v670 = vpop.permute.xlu0 %669
    %v672 = vadd.f32 %v656, %v665
    %v673 = vadd.f32 %v657, %v665
    %v674 = vadd.f32 %v658, %v670
    %v675 = vadd.f32 %v659, %v670
    %v676 = vmax.f32 %v672, 0.0
    %v677 = vmax.f32 %v673, 0.0
    %v678 = vmax.f32 %v674, 0.0
    %v679 = vmax.f32 %v675, 0.0
    %v680 = vld [vmem:[%s8] sm:$0xff]
    %v681 = vld [vmem:[%s8 + $0x8] sm:$0xf]
    %vm682 = vcmask 97280
    %v684 = vsel %vm682, %v680, 0
    %v687 = vsel %vm682, %v681, 0
    %vm689 = vcmask 1043456
    %v691 = vsel %vm689, %v678, 0
    %v694 = vsel %vm689, %v679, 0
    %696 = vmatprep.subr.mxu0 %v677
    %697 = vmatpush1.msra.mxu0 %v676
    %698 = vmatprep.subr.mxu0 %v694
    %699 = vmatpush1.msra.mxu0 %v691
    %700 = vmatprep.subr.mxu0 0.0
    %701 = vmatpush1.msra.mxu0 0.0
    %702 = vmatprep.subr.mxu0 0.0
    %703 = vmatpush1.msra.mxu0 0.0
    %704 = vmatprep.subr.mxu0 0.0
    %705 = vmatpush1.msra.mxu0 0.0
    %706 = vmatprep.subr.mxu0 0.0
    %707 = vmatpush1.msra.mxu0 0.0
    %708 = vmatprep.subr.mxu0 0.0
    %709 = vmatpush1.msra.mxu0 0.0
    %710 = vmatprep.subr.mxu0 0.0
    %711 = vmatpush1.msra.mxu0 0.0
    %712 = vmatprep.subr.mxu0 0.0
    %713 = vmatpush1.msra.mxu0 0.0
    %714 = vmatprep.subr.mxu0 0.0
    %715 = vmatpush1.msra.mxu0 0.0
    %716 = vmatprep.subr.mxu0 0.0
    %717 = vmatpush1.msra.mxu0 0.0
    %718 = vmatprep.subr.mxu0 0.0
    %719 = vmatpush1.msra.mxu0 0.0
    %720 = vmatprep.subr.mxu0 0.0
    %721 = vmatpush1.msra.mxu0 0.0
    %722 = vmatprep.subr.mxu0 0.0
    %723 = vmatpush1.msra.mxu0 0.0
    %724 = vmatprep.subr.mxu0 0.0
    %725 = vmatpush1.msra.mxu0 0.0
    %726 = vmatprep.subr.mxu0 0.0
    %727 = vmatpush1.msra.mxu0 0.0
    %728 = vmatprep.subr.mxu0 0.0
    %729 = vmatpush1.msra.mxu0 0.0
    %730 = vmatprep.subr.mxu0 0.0
    %731 = vmatpush1.msra.mxu0 0.0
    %732 = vmatprep.subr.mxu0 0.0
    %733 = vmatpush1.msra.mxu0 0.0
    %734 = vmatprep.subr.mxu0 0.0
    %735 = vmatpush1.msra.mxu0 0.0
    %736 = vmatprep.subr.mxu0 0.0
    %737 = vmatpush1.msra.mxu0 0.0
    %738 = vmatprep.subr.mxu0 0.0
    %739 = vmatpush1.msra.mxu0 0.0
    %740 = vmatprep.subr.mxu0 0.0
    %741 = vmatpush1.msra.mxu0 0.0
    %742 = vmatprep.subr.mxu0 0.0
    %743 = vmatpush1.msra.mxu0 0.0
    %744 = vmatprep.subr.mxu0 0.0
    %745 = vmatpush1.msra.mxu0 0.0
    %746 = vmatprep.subr.mxu0 0.0
    %747 = vmatpush1.msra.mxu0 0.0
    %748 = vmatprep.subr.mxu0 0.0
    %749 = vmatpush1.msra.mxu0 0.0
    %750 = vmatprep.subr.mxu0 0.0
    %751 = vmatpush1.msra.mxu0 0.0
    %752 = vmatprep.subr.mxu0 0.0
    %753 = vmatpush1.msra.mxu0 0.0
    %754 = vmatprep.subr.mxu0 0.0
    %755 = vmatpush1.msra.mxu0 0.0
    %756 = vmatprep.subr.mxu0 0.0
    %757 = vmatpush1.msra.mxu0 0.0
    %758 = vmatprep.subr.mxu0 0.0
    %759 = vmatpush1.msra.mxu0 0.0
    %760 = vmatprep.mubr.f32.mxu0 0.0
    %761 = vmatmul.mubr.f32.gmra.mrb[0].mxu0 %v684
    %v762 = vpop.f32.mrb[0].mxu0
    %v763 = vadd.f32 0.0, %v762
    %v764 = vpop.f32.mrb[0].mxu0
    %v765 = vadd.f32 0.0, %v764
    %766 = vmatprep.mubr.f32.mxu0 0.0
    %767 = vmatmul.mubr.f32.gmra.mrb[0].mxu0 %v687
    %v768 = vpop.f32.mrb[0].mxu0
    %v769 = vadd.f32 0.0, %v768
    %v770 = vpop.f32.mrb[0].mxu0
    %v771 = vadd.f32 0.0, %v770
    %772 = vdwg.mxu0
    %vm773 = vcmask 834560
    %v774 = vsel %vm773, %v765, 0.0
    %v775 = vadd.f32 %v763, %v774
    %776 = vadd.xlane.f32.xlu0 %v775
    %v777 = vpop.xlane.xlu0 %776
    %v778 = vsel %vm689, %v769, 0.0
    %vm779 = vcmask 830464
    %v780 = vsel %vm779, %v771, 0.0
    %v781 = vadd.f32 %v778, %v780
    %782 = vadd.xlane.f32.xlu0 %v781
    %v783 = vpop.xlane.xlu0 %782
    %v784 = vmul.f32 %v676, %v676
    %v785 = vmul.f32 %v677, %v677
    %v786 = vmul.f32 %v678, %v678
    %v787 = vmul.f32 %v679, %v679
    %v789 = vsel %vm689, %v786, 0
    %v792 = vsel %vm689, %v787, 0
    %794 = vmatprep.subr.mxu0 %v785
    %795 = vmatpush1.msra.mxu0 %v784
    %796 = vmatprep.subr.mxu0 %v792
    %797 = vmatpush1.msra.mxu0 %v789
    %798 = vmatprep.subr.mxu0 0.0
    %799 = vmatpush1.msra.mxu0 0.0
    %800 = vmatprep.subr.mxu0 0.0
    %801 = vmatpush1.msra.mxu0 0.0
    %802 = vmatprep.subr.mxu0 0.0
    %803 = vmatpush1.msra.mxu0 0.0
    %804 = vmatprep.subr.mxu0 0.0
    %805 = vmatpush1.msra.mxu0 0.0
    %806 = vmatprep.subr.mxu0 0.0
    %807 = vmatpush1.msra.mxu0 0.0
    %808 = vmatprep.subr.mxu0 0.0
    %809 = vmatpush1.msra.mxu0 0.0
    %810 = vmatprep.subr.mxu0 0.0
    %811 = vmatpush1.msra.mxu0 0.0
    %812 = vmatprep.subr.mxu0 0.0
    %813 = vmatpush1.msra.mxu0 0.0
    %814 = vmatprep.subr.mxu0 0.0
    %815 = vmatpush1.msra.mxu0 0.0
    %816 = vmatprep.subr.mxu0 0.0
    %817 = vmatpush1.msra.mxu0 0.0
    %818 = vmatprep.subr.mxu0 0.0
    %819 = vmatpush1.msra.mxu0 0.0
    %820 = vmatprep.subr.mxu0 0.0
    %821 = vmatpush1.msra.mxu0 0.0
    %822 = vmatprep.subr.mxu0 0.0
    %823 = vmatpush1.msra.mxu0 0.0
    %824 = vmatprep.subr.mxu0 0.0
    %825 = vmatpush1.msra.mxu0 0.0
    %826 = vmatprep.subr.mxu0 0.0
    %827 = vmatpush1.msra.mxu0 0.0
    %828 = vmatprep.subr.mxu0 0.0
    %829 = vmatpush1.msra.mxu0 0.0
    %830 = vmatprep.subr.mxu0 0.0
    %831 = vmatpush1.msra.mxu0 0.0
    %832 = vmatprep.subr.mxu0 0.0
    %833 = vmatpush1.msra.mxu0 0.0
    %834 = vmatprep.subr.mxu0 0.0
    %835 = vmatpush1.msra.mxu0 0.0
    %836 = vmatprep.subr.mxu0 0.0
    %837 = vmatpush1.msra.mxu0 0.0
    %838 = vmatprep.subr.mxu0 0.0
    %839 = vmatpush1.msra.mxu0 0.0
    %840 = vmatprep.subr.mxu0 0.0
    %841 = vmatpush1.msra.mxu0 0.0
    %842 = vmatprep.subr.mxu0 0.0
    %843 = vmatpush1.msra.mxu0 0.0
    %844 = vmatprep.subr.mxu0 0.0
    %845 = vmatpush1.msra.mxu0 0.0
    %846 = vmatprep.subr.mxu0 0.0
    %847 = vmatpush1.msra.mxu0 0.0
    %848 = vmatprep.subr.mxu0 0.0
    %849 = vmatpush1.msra.mxu0 0.0
    %850 = vmatprep.subr.mxu0 0.0
    %851 = vmatpush1.msra.mxu0 0.0
    %852 = vmatprep.subr.mxu0 0.0
    %853 = vmatpush1.msra.mxu0 0.0
    %854 = vmatprep.subr.mxu0 0.0
    %855 = vmatpush1.msra.mxu0 0.0
    %856 = vmatprep.subr.mxu0 0.0
    %857 = vmatpush1.msra.mxu0 0.0
    %858 = vmatprep.mubr.f32.mxu0 0.0
    %859 = vmatmul.mubr.f32.gmra.mrb[0].mxu0 %v684
    %v860 = vpop.f32.mrb[0].mxu0
    %v861 = vadd.f32 0.0, %v860
    %v862 = vpop.f32.mrb[0].mxu0
    %v863 = vadd.f32 0.0, %v862
    %864 = vmatprep.mubr.f32.mxu0 0.0
    %865 = vmatmul.mubr.f32.gmra.mrb[0].mxu0 %v687
    %v866 = vpop.f32.mrb[0].mxu0
    %v867 = vadd.f32 0.0, %v866
    %v868 = vpop.f32.mrb[0].mxu0
    %v869 = vadd.f32 0.0, %v868
    %870 = vdwg.mxu0
    %v871 = vsel %vm773, %v863, 0.0
    %v872 = vadd.f32 %v861, %v871
    %873 = vadd.xlane.f32.xlu0 %v872
    %v874 = vpop.xlane.xlu0 %873
    %v875 = vsel %vm689, %v867, 0.0
    %v876 = vsel %vm779, %v869, 0.0
    %v877 = vadd.f32 %v875, %v876
    %878 = vadd.xlane.f32.xlu0 %v877
    %v879 = vpop.xlane.xlu0 %878
    %v880 = vrcp.pop 460.0
    %v881 = vmul.f32 %v777, %v880
    %v882 = vmul.f32 %v783, %v880
    %v883 = vmul.f32 %v874, %v880
    %v884 = vmul.f32 %v879, %v880
    %v885 = vmul.f32 %v881, %v881
    %v886 = vmul.f32 %v882, %v882
    %v887 = vsub.f32 %v883, %v885
    %v888 = vsub.f32 %v884, %v886
    %v889 = vadd.f32 %v887, 1e-05
    %v890 = vadd.f32 %v888, 1e-05
    %v891 = vrsqrt.pop %v889
    %v892 = vrsqrt.pop %v890
    %v893 = vmul.f32 %v891, %v660
    %v894 = vmul.f32 %v892, %v661
    %v895 = vsub.f32 %v676, %v881
    %v896 = vsub.f32 %v677, %v881
    %v897 = vsub.f32 %v678, %v882
    %v898 = vsub.f32 %v679, %v882
    %900 = vset.pattern.permute.xlu0 1
    %901 = vperm.xlu0 %900, %v893
    %v902 = vpop.permute.xlu0 %901
    %905 = vset.pattern.permute.xlu0 1
    %906 = vperm.xlu0 %905, %v894
    %v907 = vpop.permute.xlu0 %906
    %v909 = vmul.f32 %v895, %v902
    %v910 = vmul.f32 %v896, %v902
    %v911 = vmul.f32 %v897, %v907
    %v912 = vmul.f32 %v898, %v907
    %913 = vset.pattern.permute.xlu0 2
    %914 = vperm.xlu0 %913, %v660
    %v915 = vpop.permute.xlu0 %914
    %917 = vset.pattern.permute.xlu0 2
    %918 = vperm.xlu0 %917, %v661
    %v919 = vpop.permute.xlu0 %918
    %v921 = vadd.f32 %v909, %v915
    %v922 = vadd.f32 %v910, %v915
    %v923 = vadd.f32 %v911, %v919
    %v924 = vadd.f32 %v912, %v919
    %v925 = vld [vmem:[%s6] sm:$0xff]
    %v926 = vld [vmem:[%s6 + $0x8] sm:$0xf]
    %s927 = scalar_lea.vmem %s6, 16
    %v928 = vld [vmem:[%s927] sm:$0xff]
    %v929 = vld [vmem:[%s927 + $0x8] sm:$0xf]
    %934 = vrot.lane.b32.xlu0 %v921, 127
    %v935 = vpop.permute.xlu0 %934
    %936 = vrot.lane.b32.xlu0 %v922, 127
    %v937 = vpop.permute.xlu0 %936
    %938 = vrot.lane.b32.xlu0 %v923, 127
    %v939 = vpop.permute.xlu0 %938
    %940 = vrot.lane.b32.xlu0 %v924, 127
    %v941 = vpop.permute.xlu0 %940
    %v942 = vsel %vm114, %v935, %v937
    %v943 = vsel %vm114, %v939, %v941
    %v947 = vsel %vm682, %v928, 0
    %v950 = vsel %vm682, %v929, 0
    %v952 = vsel %vm689, %v943, 0
    %v954 = vsel %vm689, %v941, 0
    %956 = vmatprep.subr.mxu0 %v937
    %957 = vmatpush1.msra.mxu0 %v942
    %958 = vmatprep.subr.mxu0 %v954
    %959 = vmatpush1.msra.mxu0 %v952
    %960 = vmatprep.subr.mxu0 0.0
    %961 = vmatpush1.msra.mxu0 0.0
    %962 = vmatprep.subr.mxu0 0.0
    %963 = vmatpush1.msra.mxu0 0.0
    %964 = vmatprep.subr.mxu0 0.0
    %965 = vmatpush1.msra.mxu0 0.0
    %966 = vmatprep.subr.mxu0 0.0
    %967 = vmatpush1.msra.mxu0 0.0
    %968 = vmatprep.subr.mxu0 0.0
    %969 = vmatpush1.msra.mxu0 0.0
    %970 = vmatprep.subr.mxu0 0.0
    %971 = vmatpush1.msra.mxu0 0.0
    %972 = vmatprep.subr.mxu0 0.0
    %973 = vmatpush1.msra.mxu0 0.0
    %974 = vmatprep.subr.mxu0 0.0
    %975 = vmatpush1.msra.mxu0 0.0
    %976 = vmatprep.subr.mxu0 0.0
    %977 = vmatpush1.msra.mxu0 0.0
    %978 = vmatprep.subr.mxu0 0.0
    %979 = vmatpush1.msra.mxu0 0.0
    %980 = vmatprep.subr.mxu0 0.0
    %981 = vmatpush1.msra.mxu0 0.0
    %982 = vmatprep.subr.mxu0 0.0
    %983 = vmatpush1.msra.mxu0 0.0
    %984 = vmatprep.subr.mxu0 0.0
    %985 = vmatpush1.msra.mxu0 0.0
    %986 = vmatprep.subr.mxu0 0.0
    %987 = vmatpush1.msra.mxu0 0.0
    %988 = vmatprep.subr.mxu0 0.0
    %989 = vmatpush1.msra.mxu0 0.0
    %990 = vmatprep.subr.mxu0 0.0
    %991 = vmatpush1.msra.mxu0 0.0
    %992 = vmatprep.subr.mxu0 0.0
    %993 = vmatpush1.msra.mxu0 0.0
    %994 = vmatprep.subr.mxu0 0.0
    %995 = vmatpush1.msra.mxu0 0.0
    %996 = vmatprep.subr.mxu0 0.0
    %997 = vmatpush1.msra.mxu0 0.0
    %998 = vmatprep.subr.mxu0 0.0
    %999 = vmatpush1.msra.mxu0 0.0
    %1000 = vmatprep.subr.mxu0 0.0
    %1001 = vmatpush1.msra.mxu0 0.0
    %1002 = vmatprep.subr.mxu0 0.0
    %1003 = vmatpush1.msra.mxu0 0.0
    %1004 = vmatprep.subr.mxu0 0.0
    %1005 = vmatpush1.msra.mxu0 0.0
    %1006 = vmatprep.subr.mxu0 0.0
    %1007 = vmatpush1.msra.mxu0 0.0
    %1008 = vmatprep.subr.mxu0 0.0
    %1009 = vmatpush1.msra.mxu0 0.0
    %1010 = vmatprep.subr.mxu0 0.0
    %1011 = vmatpush1.msra.mxu0 0.0
    %1012 = vmatprep.subr.mxu0 0.0
    %1013 = vmatpush1.msra.mxu0 0.0
    %1014 = vmatprep.subr.mxu0 0.0
    %1015 = vmatpush1.msra.mxu0 0.0
    %1016 = vmatprep.subr.mxu0 0.0
    %1017 = vmatpush1.msra.mxu0 0.0
    %1018 = vmatprep.subr.mxu0 0.0
    %1019 = vmatpush1.msra.mxu0 0.0
    %1020 = vmatprep.mubr.f32.mxu0 0.0
    %1021 = vmatmul.mubr.f32.gmra.mrb[0].mxu0 %v947
    %v1022 = vpop.f32.mrb[0].mxu0
    %v1023 = vadd.f32 0.0, %v1022
    %v1024 = vpop.f32.mrb[0].mxu0
    %v1025 = vadd.f32 0.0, %v1024
    %1026 = vmatprep.mubr.f32.mxu0 0.0
    %1027 = vmatmul.mubr.f32.gmra.mrb[0].mxu0 %v950
    %v1028 = vpop.f32.mrb[0].mxu0
    %v1029 = vadd.f32 0.0, %v1028
    %v1030 = vpop.f32.mrb[0].mxu0
    %v1031 = vadd.f32 0.0, %v1030
    %1032 = vdwg.mxu0
    %v1034 = vsel %vm682, %v925, 0
    %v1037 = vsel %vm682, %v926, 0
    %v1039 = vsel %vm689, %v923, 0
    %v1041 = vsel %vm689, %v924, 0
    %1043 = vmatprep.subr.mxu0 %v922
    %1044 = vmatpush1.msra.mxu0 %v921
    %1045 = vmatprep.subr.mxu0 %v1041
    %1046 = vmatpush1.msra.mxu0 %v1039
    %1047 = vmatprep.subr.mxu0 0.0
    %1048 = vmatpush1.msra.mxu0 0.0
    %1049 = vmatprep.subr.mxu0 0.0
    %1050 = vmatpush1.msra.mxu0 0.0
    %1051 = vmatprep.subr.mxu0 0.0
    %1052 = vmatpush1.msra.mxu0 0.0
    %1053 = vmatprep.subr.mxu0 0.0
    %1054 = vmatpush1.msra.mxu0 0.0
    %1055 = vmatprep.subr.mxu0 0.0
    %1056 = vmatpush1.msra.mxu0 0.0
    %1057 = vmatprep.subr.mxu0 0.0
    %1058 = vmatpush1.msra.mxu0 0.0
    %1059 = vmatprep.subr.mxu0 0.0
    %1060 = vmatpush1.msra.mxu0 0.0
    %1061 = vmatprep.subr.mxu0 0.0
    %1062 = vmatpush1.msra.mxu0 0.0
    %1063 = vmatprep.subr.mxu0 0.0
    %1064 = vmatpush1.msra.mxu0 0.0
    %1065 = vmatprep.subr.mxu0 0.0
    %1066 = vmatpush1.msra.mxu0 0.0
    %1067 = vmatprep.subr.mxu0 0.0
    %1068 = vmatpush1.msra.mxu0 0.0
    %1069 = vmatprep.subr.mxu0 0.0
    %1070 = vmatpush1.msra.mxu0 0.0
    %1071 = vmatprep.subr.mxu0 0.0
    %1072 = vmatpush1.msra.mxu0 0.0
    %1073 = vmatprep.subr.mxu0 0.0
    %1074 = vmatpush1.msra.mxu0 0.0
    %1075 = vmatprep.subr.mxu0 0.0
    %1076 = vmatpush1.msra.mxu0 0.0
    %1077 = vmatprep.subr.mxu0 0.0
    %1078 = vmatpush1.msra.mxu0 0.0
    %1079 = vmatprep.subr.mxu0 0.0
    %1080 = vmatpush1.msra.mxu0 0.0
    %1081 = vmatprep.subr.mxu0 0.0
    %1082 = vmatpush1.msra.mxu0 0.0
    %1083 = vmatprep.subr.mxu0 0.0
    %1084 = vmatpush1.msra.mxu0 0.0
    %1085 = vmatprep.subr.mxu0 0.0
    %1086 = vmatpush1.msra.mxu0 0.0
    %1087 = vmatprep.subr.mxu0 0.0
    %1088 = vmatpush1.msra.mxu0 0.0
    %1089 = vmatprep.subr.mxu0 0.0
    %1090 = vmatpush1.msra.mxu0 0.0
    %1091 = vmatprep.subr.mxu0 0.0
    %1092 = vmatpush1.msra.mxu0 0.0
    %1093 = vmatprep.subr.mxu0 0.0
    %1094 = vmatpush1.msra.mxu0 0.0
    %1095 = vmatprep.subr.mxu0 0.0
    %1096 = vmatpush1.msra.mxu0 0.0
    %1097 = vmatprep.subr.mxu0 0.0
    %1098 = vmatpush1.msra.mxu0 0.0
    %1099 = vmatprep.subr.mxu0 0.0
    %1100 = vmatpush1.msra.mxu0 0.0
    %1101 = vmatprep.subr.mxu0 0.0
    %1102 = vmatpush1.msra.mxu0 0.0
    %1103 = vmatprep.subr.mxu0 0.0
    %1104 = vmatpush1.msra.mxu0 0.0
    %1105 = vmatprep.subr.mxu0 0.0
    %1106 = vmatpush1.msra.mxu0 0.0
    %1107 = vmatprep.mubr.f32.mxu0 0.0
    %1108 = vmatmul.mubr.f32.gmra.mrb[0].mxu0 %v1034
    %v1109 = vpop.f32.mrb[0].mxu0
    %v1110 = vadd.f32 %v1023, %v1109
    %v1111 = vpop.f32.mrb[0].mxu0
    %v1112 = vadd.f32 %v1025, %v1111
    %1113 = vmatprep.mubr.f32.mxu0 0.0
    %1114 = vmatmul.mubr.f32.gmra.mrb[0].mxu0 %v1037
    %v1115 = vpop.f32.mrb[0].mxu0
    %v1116 = vadd.f32 %v1029, %v1115
    %v1117 = vpop.f32.mrb[0].mxu0
    %v1118 = vadd.f32 %v1031, %v1117
    %1119 = vdwg.mxu0
    %s1120 = scalar_lea.vmem %s6, 32
    %v1121 = vld [vmem:[%s1120] sm:$0xff]
    %v1122 = vld [vmem:[%s1120 + $0x8] sm:$0xf]
    %1123 = vrot.lane.b32.xlu0 %v921, 126
    %v1124 = vpop.permute.xlu0 %1123
    %1125 = vrot.lane.b32.xlu0 %v922, 126
    %v1126 = vpop.permute.xlu0 %1125
    %1127 = vrot.lane.b32.xlu0 %v923, 126
    %v1128 = vpop.permute.xlu0 %1127
    %1129 = vrot.lane.b32.xlu0 %v924, 126
    %v1130 = vpop.permute.xlu0 %1129
    %v1131 = vsel %vm193, %v1124, %v1126
    %v1132 = vsel %vm193, %v1128, %v1130
    %v1136 = vsel %vm682, %v1121, 0
    %v1139 = vsel %vm682, %v1122, 0
    %v1141 = vsel %vm689, %v1132, 0
    %v1143 = vsel %vm689, %v1130, 0
    %1145 = vmatprep.subr.mxu0 %v1126
    %1146 = vmatpush1.msra.mxu0 %v1131
    %1147 = vmatprep.subr.mxu0 %v1143
    %1148 = vmatpush1.msra.mxu0 %v1141
    %1149 = vmatprep.subr.mxu0 0.0
    %1150 = vmatpush1.msra.mxu0 0.0
    %1151 = vmatprep.subr.mxu0 0.0
    %1152 = vmatpush1.msra.mxu0 0.0
    %1153 = vmatprep.subr.mxu0 0.0
    %1154 = vmatpush1.msra.mxu0 0.0
    %1155 = vmatprep.subr.mxu0 0.0
    %1156 = vmatpush1.msra.mxu0 0.0
    %1157 = vmatprep.subr.mxu0 0.0
    %1158 = vmatpush1.msra.mxu0 0.0
    %1159 = vmatprep.subr.mxu0 0.0
    %1160 = vmatpush1.msra.mxu0 0.0
    %1161 = vmatprep.subr.mxu0 0.0
    %1162 = vmatpush1.msra.mxu0 0.0
    %1163 = vmatprep.subr.mxu0 0.0
    %1164 = vmatpush1.msra.mxu0 0.0
    %1165 = vmatprep.subr.mxu0 0.0
    %1166 = vmatpush1.msra.mxu0 0.0
    %1167 = vmatprep.subr.mxu0 0.0
    %1168 = vmatpush1.msra.mxu0 0.0
    %1169 = vmatprep.subr.mxu0 0.0
    %1170 = vmatpush1.msra.mxu0 0.0
    %1171 = vmatprep.subr.mxu0 0.0
    %1172 = vmatpush1.msra.mxu0 0.0
    %1173 = vmatprep.subr.mxu0 0.0
    %1174 = vmatpush1.msra.mxu0 0.0
    %1175 = vmatprep.subr.mxu0 0.0
    %1176 = vmatpush1.msra.mxu0 0.0
    %1177 = vmatprep.subr.mxu0 0.0
    %1178 = vmatpush1.msra.mxu0 0.0
    %1179 = vmatprep.subr.mxu0 0.0
    %1180 = vmatpush1.msra.mxu0 0.0
    %1181 = vmatprep.subr.mxu0 0.0
    %1182 = vmatpush1.msra.mxu0 0.0
    %1183 = vmatprep.subr.mxu0 0.0
    %1184 = vmatpush1.msra.mxu0 0.0
    %1185 = vmatprep.subr.mxu0 0.0
    %1186 = vmatpush1.msra.mxu0 0.0
    %1187 = vmatprep.subr.mxu0 0.0
    %1188 = vmatpush1.msra.mxu0 0.0
    %1189 = vmatprep.subr.mxu0 0.0
    %1190 = vmatpush1.msra.mxu0 0.0
    %1191 = vmatprep.subr.mxu0 0.0
    %1192 = vmatpush1.msra.mxu0 0.0
    %1193 = vmatprep.subr.mxu0 0.0
    %1194 = vmatpush1.msra.mxu0 0.0
    %1195 = vmatprep.subr.mxu0 0.0
    %1196 = vmatpush1.msra.mxu0 0.0
    %1197 = vmatprep.subr.mxu0 0.0
    %1198 = vmatpush1.msra.mxu0 0.0
    %1199 = vmatprep.subr.mxu0 0.0
    %1200 = vmatpush1.msra.mxu0 0.0
    %1201 = vmatprep.subr.mxu0 0.0
    %1202 = vmatpush1.msra.mxu0 0.0
    %1203 = vmatprep.subr.mxu0 0.0
    %1204 = vmatpush1.msra.mxu0 0.0
    %1205 = vmatprep.subr.mxu0 0.0
    %1206 = vmatpush1.msra.mxu0 0.0
    %1207 = vmatprep.subr.mxu0 0.0
    %1208 = vmatpush1.msra.mxu0 0.0
    %1209 = vmatprep.mubr.f32.mxu0 0.0
    %1210 = vmatmul.mubr.f32.gmra.mrb[0].mxu0 %v1136
    %v1211 = vpop.f32.mrb[0].mxu0
    %v1212 = vadd.f32 0.0, %v1211
    %v1213 = vpop.f32.mrb[0].mxu0
    %v1214 = vadd.f32 0.0, %v1213
    %1215 = vmatprep.mubr.f32.mxu0 0.0
    %1216 = vmatmul.mubr.f32.gmra.mrb[0].mxu0 %v1139
    %v1217 = vpop.f32.mrb[0].mxu0
    %v1218 = vadd.f32 0.0, %v1217
    %v1219 = vpop.f32.mrb[0].mxu0
    %v1220 = vadd.f32 0.0, %v1219
    %1221 = vdwg.mxu0
    %v1222 = vadd.f32 %v1110, %v1212
    %v1223 = vadd.f32 %v1112, %v1214
    %v1224 = vadd.f32 %v1116, %v1218
    %v1225 = vadd.f32 %v1118, %v1220
    %1226 = vset.pattern.permute.xlu0 3
    %1227 = vperm.xlu0 %1226, %v660
    %v1228 = vpop.permute.xlu0 %1227
    %1230 = vset.pattern.permute.xlu0 3
    %1231 = vperm.xlu0 %1230, %v661
    %v1232 = vpop.permute.xlu0 %1231
    %v1234 = vadd.f32 %v1222, %v1228
    %v1235 = vadd.f32 %v1223, %v1228
    %v1236 = vadd.f32 %v1224, %v1232
    %v1237 = vadd.f32 %v1225, %v1232
    %v1238 = vmax.f32 %v1234, 0.0
    %v1239 = vmax.f32 %v1235, 0.0
    %v1240 = vmax.f32 %v1236, 0.0
    %v1241 = vmax.f32 %v1237, 0.0
    %v1243 = vsel %vm689, %v1240, 0
    %v1246 = vsel %vm689, %v1241, 0
    %1248 = vmatprep.subr.mxu0 %v1239
    %1249 = vmatpush1.msra.mxu0 %v1238
    %1250 = vmatprep.subr.mxu0 %v1246
    %1251 = vmatpush1.msra.mxu0 %v1243
    %1252 = vmatprep.subr.mxu0 0.0
    %1253 = vmatpush1.msra.mxu0 0.0
    %1254 = vmatprep.subr.mxu0 0.0
    %1255 = vmatpush1.msra.mxu0 0.0
    %1256 = vmatprep.subr.mxu0 0.0
    %1257 = vmatpush1.msra.mxu0 0.0
    %1258 = vmatprep.subr.mxu0 0.0
    %1259 = vmatpush1.msra.mxu0 0.0
    %1260 = vmatprep.subr.mxu0 0.0
    %1261 = vmatpush1.msra.mxu0 0.0
    %1262 = vmatprep.subr.mxu0 0.0
    %1263 = vmatpush1.msra.mxu0 0.0
    %1264 = vmatprep.subr.mxu0 0.0
    %1265 = vmatpush1.msra.mxu0 0.0
    %1266 = vmatprep.subr.mxu0 0.0
    %1267 = vmatpush1.msra.mxu0 0.0
    %1268 = vmatprep.subr.mxu0 0.0
    %1269 = vmatpush1.msra.mxu0 0.0
    %1270 = vmatprep.subr.mxu0 0.0
    %1271 = vmatpush1.msra.mxu0 0.0
    %1272 = vmatprep.subr.mxu0 0.0
    %1273 = vmatpush1.msra.mxu0 0.0
    %1274 = vmatprep.subr.mxu0 0.0
    %1275 = vmatpush1.msra.mxu0 0.0
    %1276 = vmatprep.subr.mxu0 0.0
    %1277 = vmatpush1.msra.mxu0 0.0
    %1278 = vmatprep.subr.mxu0 0.0
    %1279 = vmatpush1.msra.mxu0 0.0
    %1280 = vmatprep.subr.mxu0 0.0
    %1281 = vmatpush1.msra.mxu0 0.0
    %1282 = vmatprep.subr.mxu0 0.0
    %1283 = vmatpush1.msra.mxu0 0.0
    %1284 = vmatprep.subr.mxu0 0.0
    %1285 = vmatpush1.msra.mxu0 0.0
    %1286 = vmatprep.subr.mxu0 0.0
    %1287 = vmatpush1.msra.mxu0 0.0
    %1288 = vmatprep.subr.mxu0 0.0
    %1289 = vmatpush1.msra.mxu0 0.0
    %1290 = vmatprep.subr.mxu0 0.0
    %1291 = vmatpush1.msra.mxu0 0.0
    %1292 = vmatprep.subr.mxu0 0.0
    %1293 = vmatpush1.msra.mxu0 0.0
    %1294 = vmatprep.subr.mxu0 0.0
    %1295 = vmatpush1.msra.mxu0 0.0
    %1296 = vmatprep.subr.mxu0 0.0
    %1297 = vmatpush1.msra.mxu0 0.0
    %1298 = vmatprep.subr.mxu0 0.0
    %1299 = vmatpush1.msra.mxu0 0.0
    %1300 = vmatprep.subr.mxu0 0.0
    %1301 = vmatpush1.msra.mxu0 0.0
    %1302 = vmatprep.subr.mxu0 0.0
    %1303 = vmatpush1.msra.mxu0 0.0
    %1304 = vmatprep.subr.mxu0 0.0
    %1305 = vmatpush1.msra.mxu0 0.0
    %1306 = vmatprep.subr.mxu0 0.0
    %1307 = vmatpush1.msra.mxu0 0.0
    %1308 = vmatprep.subr.mxu0 0.0
    %1309 = vmatpush1.msra.mxu0 0.0
    %1310 = vmatprep.subr.mxu0 0.0
    %1311 = vmatpush1.msra.mxu0 0.0
    %1312 = vmatprep.mubr.f32.mxu0 0.0
    %1313 = vmatmul.mubr.f32.gmra.mrb[0].mxu0 %v684
    %v1314 = vpop.f32.mrb[0].mxu0
    %v1315 = vadd.f32 0.0, %v1314
    %v1316 = vpop.f32.mrb[0].mxu0
    %v1317 = vadd.f32 0.0, %v1316
    %1318 = vmatprep.mubr.f32.mxu0 0.0
    %1319 = vmatmul.mubr.f32.gmra.mrb[0].mxu0 %v687
    %v1320 = vpop.f32.mrb[0].mxu0
    %v1321 = vadd.f32 0.0, %v1320
    %v1322 = vpop.f32.mrb[0].mxu0
    %v1323 = vadd.f32 0.0, %v1322
    %1324 = vdwg.mxu0
    %vm1325 = vcmask 818176
    %v1326 = vsel %vm1325, %v1317, 0.0
    %v1327 = vadd.f32 %v1315, %v1326
    %1328 = vadd.xlane.f32.xlu0 %v1327
    %v1329 = vpop.xlane.xlu0 %1328
    %v1330 = vsel %vm689, %v1321, 0.0
    %vm1331 = vcmask 814080
    %v1332 = vsel %vm1331, %v1323, 0.0
    %v1333 = vadd.f32 %v1330, %v1332
    %1334 = vadd.xlane.f32.xlu0 %v1333
    %v1335 = vpop.xlane.xlu0 %1334
    %v1336 = vmul.f32 %v1238, %v1238
    %v1337 = vmul.f32 %v1239, %v1239
    %v1338 = vmul.f32 %v1240, %v1240
    %v1339 = vmul.f32 %v1241, %v1241
    %v1341 = vsel %vm689, %v1338, 0
    %v1344 = vsel %vm689, %v1339, 0
    %1346 = vmatprep.subr.mxu0 %v1337
    %1347 = vmatpush1.msra.mxu0 %v1336
    %1348 = vmatprep.subr.mxu0 %v1344
    %1349 = vmatpush1.msra.mxu0 %v1341
    %1350 = vmatprep.subr.mxu0 0.0
    %1351 = vmatpush1.msra.mxu0 0.0
    %1352 = vmatprep.subr.mxu0 0.0
    %1353 = vmatpush1.msra.mxu0 0.0
    %1354 = vmatprep.subr.mxu0 0.0
    %1355 = vmatpush1.msra.mxu0 0.0
    %1356 = vmatprep.subr.mxu0 0.0
    %1357 = vmatpush1.msra.mxu0 0.0
    %1358 = vmatprep.subr.mxu0 0.0
    %1359 = vmatpush1.msra.mxu0 0.0
    %1360 = vmatprep.subr.mxu0 0.0
    %1361 = vmatpush1.msra.mxu0 0.0
    %1362 = vmatprep.subr.mxu0 0.0
    %1363 = vmatpush1.msra.mxu0 0.0
    %1364 = vmatprep.subr.mxu0 0.0
    %1365 = vmatpush1.msra.mxu0 0.0
    %1366 = vmatprep.subr.mxu0 0.0
    %1367 = vmatpush1.msra.mxu0 0.0
    %1368 = vmatprep.subr.mxu0 0.0
    %1369 = vmatpush1.msra.mxu0 0.0
    %1370 = vmatprep.subr.mxu0 0.0
    %1371 = vmatpush1.msra.mxu0 0.0
    %1372 = vmatprep.subr.mxu0 0.0
    %1373 = vmatpush1.msra.mxu0 0.0
    %1374 = vmatprep.subr.mxu0 0.0
    %1375 = vmatpush1.msra.mxu0 0.0
    %1376 = vmatprep.subr.mxu0 0.0
    %1377 = vmatpush1.msra.mxu0 0.0
    %1378 = vmatprep.subr.mxu0 0.0
    %1379 = vmatpush1.msra.mxu0 0.0
    %1380 = vmatprep.subr.mxu0 0.0
    %1381 = vmatpush1.msra.mxu0 0.0
    %1382 = vmatprep.subr.mxu0 0.0
    %1383 = vmatpush1.msra.mxu0 0.0
    %1384 = vmatprep.subr.mxu0 0.0
    %1385 = vmatpush1.msra.mxu0 0.0
    %1386 = vmatprep.subr.mxu0 0.0
    %1387 = vmatpush1.msra.mxu0 0.0
    %1388 = vmatprep.subr.mxu0 0.0
    %1389 = vmatpush1.msra.mxu0 0.0
    %1390 = vmatprep.subr.mxu0 0.0
    %1391 = vmatpush1.msra.mxu0 0.0
    %1392 = vmatprep.subr.mxu0 0.0
    %1393 = vmatpush1.msra.mxu0 0.0
    %1394 = vmatprep.subr.mxu0 0.0
    %1395 = vmatpush1.msra.mxu0 0.0
    %1396 = vmatprep.subr.mxu0 0.0
    %1397 = vmatpush1.msra.mxu0 0.0
    %1398 = vmatprep.subr.mxu0 0.0
    %1399 = vmatpush1.msra.mxu0 0.0
    %1400 = vmatprep.subr.mxu0 0.0
    %1401 = vmatpush1.msra.mxu0 0.0
    %1402 = vmatprep.subr.mxu0 0.0
    %1403 = vmatpush1.msra.mxu0 0.0
    %1404 = vmatprep.subr.mxu0 0.0
    %1405 = vmatpush1.msra.mxu0 0.0
    %1406 = vmatprep.subr.mxu0 0.0
    %1407 = vmatpush1.msra.mxu0 0.0
    %1408 = vmatprep.subr.mxu0 0.0
    %1409 = vmatpush1.msra.mxu0 0.0
    %1410 = vmatprep.mubr.f32.mxu0 0.0
    %1411 = vmatmul.mubr.f32.gmra.mrb[0].mxu0 %v684
    %v1412 = vpop.f32.mrb[0].mxu0
    %v1413 = vadd.f32 0.0, %v1412
    %v1414 = vpop.f32.mrb[0].mxu0
    %v1415 = vadd.f32 0.0, %v1414
    %1416 = vmatprep.mubr.f32.mxu0 0.0
    %1417 = vmatmul.mubr.f32.gmra.mrb[0].mxu0 %v687
    %v1418 = vpop.f32.mrb[0].mxu0
    %v1419 = vadd.f32 0.0, %v1418
    %v1420 = vpop.f32.mrb[0].mxu0
    %v1421 = vadd.f32 0.0, %v1420
    %1422 = vdwg.mxu0
    %v1423 = vsel %vm1325, %v1415, 0.0
    %v1424 = vadd.f32 %v1413, %v1423
    %1425 = vadd.xlane.f32.xlu0 %v1424
    %v1426 = vpop.xlane.xlu0 %1425
    %v1427 = vsel %vm689, %v1419, 0.0
    %v1428 = vsel %vm1331, %v1421, 0.0
    %v1429 = vadd.f32 %v1427, %v1428
    %1430 = vadd.xlane.f32.xlu0 %v1429
    %v1431 = vpop.xlane.xlu0 %1430
    %v1432 = vrcp.pop 456.0
    %v1433 = vmul.f32 %v1329, %v1432
    %v1434 = vmul.f32 %v1335, %v1432
    %v1435 = vmul.f32 %v1426, %v1432
    %v1436 = vmul.f32 %v1431, %v1432
    %v1437 = vmul.f32 %v1433, %v1433
    %v1438 = vmul.f32 %v1434, %v1434
    %v1439 = vsub.f32 %v1435, %v1437
    %v1440 = vsub.f32 %v1436, %v1438
    %v1441 = vadd.f32 %v1439, 1e-05
    %v1442 = vadd.f32 %v1440, 1e-05
    %v1443 = vrsqrt.pop %v1441
    %v1444 = vrsqrt.pop %v1442
    %v1445 = vmul.f32 %v1443, %v660
    %v1446 = vmul.f32 %v1444, %v661
    %v1447 = vsub.f32 %v1238, %v1433
    %v1448 = vsub.f32 %v1239, %v1433
    %v1449 = vsub.f32 %v1240, %v1434
    %v1450 = vsub.f32 %v1241, %v1434
    %1452 = vset.pattern.permute.xlu0 4
    %1453 = vperm.xlu0 %1452, %v1445
    %v1454 = vpop.permute.xlu0 %1453
    %1457 = vset.pattern.permute.xlu0 4
    %1458 = vperm.xlu0 %1457, %v1446
    %v1459 = vpop.permute.xlu0 %1458
    %v1461 = vmul.f32 %v1447, %v1454
    %v1462 = vmul.f32 %v1448, %v1454
    %v1463 = vmul.f32 %v1449, %v1459
    %v1464 = vmul.f32 %v1450, %v1459
    %1465 = vset.pattern.permute.xlu0 5
    %1466 = vperm.xlu0 %1465, %v660
    %v1467 = vpop.permute.xlu0 %1466
    %1469 = vset.pattern.permute.xlu0 5
    %1470 = vperm.xlu0 %1469, %v661
    %v1471 = vpop.permute.xlu0 %1470
    %v1473 = vadd.f32 %v1461, %v1467
    %v1474 = vadd.f32 %v1462, %v1467
    %v1475 = vadd.f32 %v1463, %v1471
    %v1476 = vadd.f32 %v1464, %v1471
    %v1477 = vld [vmem:[%s12] sm:$0xff]
    %v1478 = vld [vmem:[%s12 + $0x8] sm:$0xff]
    %v1479 = vld [vmem:[%s12 + $0x10] sm:$0xff]
    %v1480 = vld [vmem:[%s12 + $0x18] sm:$0xff]
    %v1481 = vld [vmem:[%s12 + $0x20] sm:$0xff]
    %v1482 = vld [vmem:[%s12 + $0x28] sm:$0xff]
    %v1483 = vld [vmem:[%s12 + $0x30] sm:$0xff]
    %v1484 = vld [vmem:[%s12 + $0x38] sm:$0xff]
    %v1485 = vld [vmem:[%s12 + $0x40] sm:$0xff]
    %v1486 = vld [vmem:[%s12 + $0x48] sm:$0xff]
    %v1487 = vld [vmem:[%s12 + $0x50] sm:$0xff]
    %v1488 = vld [vmem:[%s12 + $0x58] sm:$0xff]
    %v1489 = vld [vmem:[%s12 + $0x60] sm:$0xff]
    %v1490 = vld [vmem:[%s12 + $0x68] sm:$0xff]
    %v1491 = vld [vmem:[%s12 + $0x70] sm:$0xff]
    %v1492 = vld [vmem:[%s12 + $0x78] sm:$0xff]
    %v1493 = vld [vmem:[%s12 + $0x80] sm:$0xff]
    %v1494 = vld [vmem:[%s12 + $0x88] sm:$0xff]
    %v1495 = vld [vmem:[%s12 + $0x90] sm:$0xff]
    %v1496 = vld [vmem:[%s12 + $0x98] sm:$0xff]
    %v1497 = vld [vmem:[%s12 + $0xa0] sm:$0xff]
    %v1498 = vld [vmem:[%s12 + $0xa8] sm:$0xff]
    %v1499 = vld [vmem:[%s12 + $0xb0] sm:$0xff]
    %v1500 = vld [vmem:[%s12 + $0xb8] sm:$0xff]
    %v1501 = vld [vmem:[%s12 + $0xc0] sm:$0xff]
    %v1502 = vld [vmem:[%s12 + $0xc8] sm:$0xff]
    %v1503 = vld [vmem:[%s12 + $0xd0] sm:$0xff]
    %v1504 = vld [vmem:[%s12 + $0xd8] sm:$0xff]
    %v1505 = vld [vmem:[%s12 + $0xe0] sm:$0xff]
    %v1506 = vld [vmem:[%s12 + $0xe8] sm:$0xff]
    %v1507 = vld [vmem:[%s12 + $0xf0] sm:$0xff]
    %v1508 = vld [vmem:[%s12 + $0xf8] sm:$0xff]
    %v1509 = vld [vmem:[%s12 + $0x100] sm:$0xff]
    %v1510 = vld [vmem:[%s12 + $0x108] sm:$0xff]
    %v1511 = vld [vmem:[%s12 + $0x110] sm:$0xff]
    %v1512 = vld [vmem:[%s12 + $0x118] sm:$0xff]
    %v1513 = vld [vmem:[%s12 + $0x120] sm:$0xff]
    %v1514 = vld [vmem:[%s12 + $0x128] sm:$0xff]
    %v1515 = vld [vmem:[%s12 + $0x130] sm:$0xff]
    %v1516 = vld [vmem:[%s12 + $0x138] sm:$0xff]
    %v1517 = vld [vmem:[%s12 + $0x140] sm:$0xff]
    %v1518 = vld [vmem:[%s12 + $0x148] sm:$0xff]
    %v1519 = vld [vmem:[%s12 + $0x150] sm:$0xff]
    %v1520 = vld [vmem:[%s12 + $0x158] sm:$0xff]
    %v1521 = vld [vmem:[%s12 + $0x160] sm:$0xff]
    %v1522 = vld [vmem:[%s12 + $0x168] sm:$0xff]
    %v1523 = vld [vmem:[%s12 + $0x170] sm:$0xff]
    %v1524 = vld [vmem:[%s12 + $0x178] sm:$0xff]
    %v1525 = vld [vmem:[%s12 + $0x180] sm:$0xff]
    %v1526 = vld [vmem:[%s12 + $0x188] sm:$0xff]
    %v1527 = vld [vmem:[%s12 + $0x190] sm:$0xff]
    %v1528 = vld [vmem:[%s12 + $0x198] sm:$0xff]
    %v1529 = vld [vmem:[%s12 + $0x1a0] sm:$0xff]
    %v1530 = vld [vmem:[%s12 + $0x1a8] sm:$0xff]
    %v1531 = vld [vmem:[%s12 + $0x1b0] sm:$0xff]
    %v1532 = vld [vmem:[%s12 + $0x1b8] sm:$0xff]
    %v1533 = vld [vmem:[%s12 + $0x1c0] sm:$0xf]
    %v1534 = vld [vmem:[%s12 + $0x1c8] sm:$0xf]
    %v1536 = vsel %vm1325, %v1474, 0
    %v1539 = vsel %vm1325, %v1476, 0
    %v1542 = vsel %vm689, %v1533, 0
    %v1545 = vsel %vm689, %v1534, 0
    %1547 = vmatprep.subr.mxu0 %v1478
    %1548 = vmatpush1.msra.mxu0 %v1477
    %1549 = vmatprep.subr.mxu0 %v1480
    %1550 = vmatpush1.msra.mxu0 %v1479
    %1551 = vmatprep.subr.mxu0 %v1482
    %1552 = vmatpush1.msra.mxu0 %v1481
    %1553 = vmatprep.subr.mxu0 %v1484
    %1554 = vmatpush1.msra.mxu0 %v1483
    %1555 = vmatprep.subr.mxu0 %v1486
    %1556 = vmatpush1.msra.mxu0 %v1485
    %1557 = vmatprep.subr.mxu0 %v1488
    %1558 = vmatpush1.msra.mxu0 %v1487
    %1559 = vmatprep.subr.mxu0 %v1490
    %1560 = vmatpush1.msra.mxu0 %v1489
    %1561 = vmatprep.subr.mxu0 %v1492
    %1562 = vmatpush1.msra.mxu0 %v1491
    %1563 = vmatprep.subr.mxu0 %v1494
    %1564 = vmatpush1.msra.mxu0 %v1493
    %1565 = vmatprep.subr.mxu0 %v1496
    %1566 = vmatpush1.msra.mxu0 %v1495
    %1567 = vmatprep.subr.mxu0 %v1498
    %1568 = vmatpush1.msra.mxu0 %v1497
    %1569 = vmatprep.subr.mxu0 %v1500
    %1570 = vmatpush1.msra.mxu0 %v1499
    %1571 = vmatprep.subr.mxu0 %v1502
    %1572 = vmatpush1.msra.mxu0 %v1501
    %1573 = vmatprep.subr.mxu0 %v1504
    %1574 = vmatpush1.msra.mxu0 %v1503
    %1575 = vmatprep.subr.mxu0 %v1506
    %1576 = vmatpush1.msra.mxu0 %v1505
    %1577 = vmatprep.subr.mxu0 %v1508
    %1578 = vmatpush1.msra.mxu0 %v1507
    %1579 = vmatprep.subr.mxu0 %v1510
    %1580 = vmatpush1.msra.mxu0 %v1509
    %1581 = vmatprep.subr.mxu0 %v1512
    %1582 = vmatpush1.msra.mxu0 %v1511
    %1583 = vmatprep.subr.mxu0 %v1514
    %1584 = vmatpush1.msra.mxu0 %v1513
    %1585 = vmatprep.subr.mxu0 %v1516
    %1586 = vmatpush1.msra.mxu0 %v1515
    %1587 = vmatprep.subr.mxu0 %v1518
    %1588 = vmatpush1.msra.mxu0 %v1517
    %1589 = vmatprep.subr.mxu0 %v1520
    %1590 = vmatpush1.msra.mxu0 %v1519
    %1591 = vmatprep.subr.mxu0 %v1522
    %1592 = vmatpush1.msra.mxu0 %v1521
    %1593 = vmatprep.subr.mxu0 %v1524
    %1594 = vmatpush1.msra.mxu0 %v1523
    %1595 = vmatprep.subr.mxu0 %v1526
    %1596 = vmatpush1.msra.mxu0 %v1525
    %1597 = vmatprep.subr.mxu0 %v1528
    %1598 = vmatpush1.msra.mxu0 %v1527
    %1599 = vmatprep.subr.mxu0 %v1530
    %1600 = vmatpush1.msra.mxu0 %v1529
    %1601 = vmatprep.subr.mxu0 %v1532
    %1602 = vmatpush1.msra.mxu0 %v1531
    %1603 = vmatprep.subr.mxu0 %v1545
    %1604 = vmatpush1.msra.mxu0 %v1542
    %1605 = vmatprep.subr.mxu0 0.0
    %1606 = vmatpush1.msra.mxu0 0.0
    %1607 = vmatprep.subr.mxu0 0.0
    %1608 = vmatpush1.msra.mxu0 0.0
    %1609 = vmatprep.subr.mxu0 0.0
    %1610 = vmatpush1.msra.mxu0 0.0
    %1611 = vmatprep.mubr.f32.mxu0 %v1536
    %1612 = vmatmul.mubr.f32.gmra.mrb[0].mxu0 %v1473
    %v1613 = vpop.f32.mrb[0].mxu0
    %v1614 = vadd.f32 0.0, %v1613
    %v1615 = vpop.f32.mrb[0].mxu0
    %v1616 = vadd.f32 0.0, %v1615
    %1617 = vmatprep.mubr.f32.mxu0 %v1539
    %1618 = vmatmul.mubr.f32.gmra.mrb[0].mxu0 %v1475
    %v1619 = vpop.f32.mrb[0].mxu0
    %v1620 = vadd.f32 0.0, %v1619
    %v1621 = vpop.f32.mrb[0].mxu0
    %v1622 = vadd.f32 0.0, %v1621
    %1623 = vdwg.mxu0
    %v1624 = vld [vmem:[%s7] sm:$0xff]
    %v1625 = vld [vmem:[%s7 + $0x8] sm:$0xff]
    %v1626 = vld [vmem:[%s7 + $0x10] sm:$0xff]
    %v1627 = vld [vmem:[%s7 + $0x18] sm:$0xff]
    %v1629 = vsel %vm682, %v1624, 0
    %v1632 = vsel %vm682, %v1625, 0
    %v1635 = vsel %vm682, %v1626, 0
    %v1638 = vsel %vm682, %v1627, 0
    %v1641 = vsel %vm689, %v1620, 0
    %1643 = vmatprep.subr.mxu0 0.0
    %1644 = vmatpush1.msra.mxu0 %v1614
    %1645 = vmatprep.subr.mxu0 0.0
    %1646 = vmatpush1.msra.mxu0 %v1641
    %1647 = vmatprep.subr.mxu0 0.0
    %1648 = vmatpush1.msra.mxu0 0.0
    %1649 = vmatprep.subr.mxu0 0.0
    %1650 = vmatpush1.msra.mxu0 0.0
    %1651 = vmatprep.subr.mxu0 0.0
    %1652 = vmatpush1.msra.mxu0 0.0
    %1653 = vmatprep.subr.mxu0 0.0
    %1654 = vmatpush1.msra.mxu0 0.0
    %1655 = vmatprep.subr.mxu0 0.0
    %1656 = vmatpush1.msra.mxu0 0.0
    %1657 = vmatprep.subr.mxu0 0.0
    %1658 = vmatpush1.msra.mxu0 0.0
    %1659 = vmatprep.subr.mxu0 0.0
    %1660 = vmatpush1.msra.mxu0 0.0
    %1661 = vmatprep.subr.mxu0 0.0
    %1662 = vmatpush1.msra.mxu0 0.0
    %1663 = vmatprep.subr.mxu0 0.0
    %1664 = vmatpush1.msra.mxu0 0.0
    %1665 = vmatprep.subr.mxu0 0.0
    %1666 = vmatpush1.msra.mxu0 0.0
    %1667 = vmatprep.subr.mxu0 0.0
    %1668 = vmatpush1.msra.mxu0 0.0
    %1669 = vmatprep.subr.mxu0 0.0
    %1670 = vmatpush1.msra.mxu0 0.0
    %1671 = vmatprep.subr.mxu0 0.0
    %1672 = vmatpush1.msra.mxu0 0.0
    %1673 = vmatprep.subr.mxu0 0.0
    %1674 = vmatpush1.msra.mxu0 0.0
    %1675 = vmatprep.subr.mxu0 0.0
    %1676 = vmatpush1.msra.mxu0 0.0
    %1677 = vmatprep.subr.mxu0 0.0
    %1678 = vmatpush1.msra.mxu0 0.0
    %1679 = vmatprep.subr.mxu0 0.0
    %1680 = vmatpush1.msra.mxu0 0.0
    %1681 = vmatprep.subr.mxu0 0.0
    %1682 = vmatpush1.msra.mxu0 0.0
    %1683 = vmatprep.subr.mxu0 0.0
    %1684 = vmatpush1.msra.mxu0 0.0
    %1685 = vmatprep.subr.mxu0 0.0
    %1686 = vmatpush1.msra.mxu0 0.0
    %1687 = vmatprep.subr.mxu0 0.0
    %1688 = vmatpush1.msra.mxu0 0.0
    %1689 = vmatprep.subr.mxu0 0.0
    %1690 = vmatpush1.msra.mxu0 0.0
    %1691 = vmatprep.subr.mxu0 0.0
    %1692 = vmatpush1.msra.mxu0 0.0
    %1693 = vmatprep.subr.mxu0 0.0
    %1694 = vmatpush1.msra.mxu0 0.0
    %1695 = vmatprep.subr.mxu0 0.0
    %1696 = vmatpush1.msra.mxu0 0.0
    %1697 = vmatprep.subr.mxu0 0.0
    %1698 = vmatpush1.msra.mxu0 0.0
    %1699 = vmatprep.subr.mxu0 0.0
    %1700 = vmatpush1.msra.mxu0 0.0
    %1701 = vmatprep.subr.mxu0 0.0
    %1702 = vmatpush1.msra.mxu0 0.0
    %1703 = vmatprep.subr.mxu0 0.0
    %1704 = vmatpush1.msra.mxu0 0.0
    %1705 = vmatprep.subr.mxu0 0.0
    %1706 = vmatpush1.msra.mxu0 0.0
    %1707 = vmatprep.mubr.f32.mxu0 0.0
    %1708 = vmatmul.mubr.f32.gmra.mrb[0].mxu0 %v1629
    %v1709 = vpop.f32.mrb[0].mxu0
    %v1710 = vadd.f32 0.0, %v1709
    %v1711 = vpop.f32.mrb[0].mxu0
    %1712 = vmatprep.mubr.f32.mxu0 0.0
    %1713 = vmatmul.mubr.f32.gmra.mrb[0].mxu0 %v1632
    %v1714 = vpop.f32.mrb[0].mxu0
    %v1715 = vadd.f32 0.0, %v1714
    %v1716 = vpop.f32.mrb[0].mxu0
    %1717 = vmatprep.mubr.f32.mxu0 0.0
    %1718 = vmatmul.mubr.f32.gmra.mrb[0].mxu0 %v1635
    %v1719 = vpop.f32.mrb[0].mxu0
    %v1720 = vadd.f32 0.0, %v1719
    %v1721 = vpop.f32.mrb[0].mxu0
    %1722 = vmatprep.mubr.f32.mxu0 0.0
    %1723 = vmatmul.mubr.f32.gmra.mrb[0].mxu0 %v1638
    %v1724 = vpop.f32.mrb[0].mxu0
    %v1725 = vadd.f32 0.0, %v1724
    %v1726 = vpop.f32.mrb[0].mxu0
    %1727 = vdwg.mxu0
    %1731 = vrot.lane.b32.xlu0 %v1614, 52
    %v1732 = vpop.permute.xlu0 %1731
    %1733 = vrot.lane.b32.xlu0 %v1616, 52
    %v1734 = vpop.permute.xlu0 %1733
    %1735 = vrot.lane.b32.xlu0 %v1620, 52
    %v1736 = vpop.permute.xlu0 %1735
    %1737 = vrot.lane.b32.xlu0 %v1622, 52
    %v1738 = vpop.permute.xlu0 %1737
    %vm1739 = vcmask 424960
    %v1740 = vsel %vm1739, %v1732, %v1734
    %v1741 = vsel %vm1739, %v1736, %v1738
    %v1743 = vsel %vm689, %v1741, 0
    %1745 = vmatprep.subr.mxu0 0.0
    %1746 = vmatpush1.msra.mxu0 %v1740
    %1747 = vmatprep.subr.mxu0 0.0
    %1748 = vmatpush1.msra.mxu0 %v1743
    %1749 = vmatprep.subr.mxu0 0.0
    %1750 = vmatpush1.msra.mxu0 0.0
    %1751 = vmatprep.subr.mxu0 0.0
    %1752 = vmatpush1.msra.mxu0 0.0
    %1753 = vmatprep.subr.mxu0 0.0
    %1754 = vmatpush1.msra.mxu0 0.0
    %1755 = vmatprep.subr.mxu0 0.0
    %1756 = vmatpush1.msra.mxu0 0.0
    %1757 = vmatprep.subr.mxu0 0.0
    %1758 = vmatpush1.msra.mxu0 0.0
    %1759 = vmatprep.subr.mxu0 0.0
    %1760 = vmatpush1.msra.mxu0 0.0
    %1761 = vmatprep.subr.mxu0 0.0
    %1762 = vmatpush1.msra.mxu0 0.0
    %1763 = vmatprep.subr.mxu0 0.0
    %1764 = vmatpush1.msra.mxu0 0.0
    %1765 = vmatprep.subr.mxu0 0.0
    %1766 = vmatpush1.msra.mxu0 0.0
    %1767 = vmatprep.subr.mxu0 0.0
    %1768 = vmatpush1.msra.mxu0 0.0
    %1769 = vmatprep.subr.mxu0 0.0
    %1770 = vmatpush1.msra.mxu0 0.0
    %1771 = vmatprep.subr.mxu0 0.0
    %1772 = vmatpush1.msra.mxu0 0.0
    %1773 = vmatprep.subr.mxu0 0.0
    %1774 = vmatpush1.msra.mxu0 0.0
    %1775 = vmatprep.subr.mxu0 0.0
    %1776 = vmatpush1.msra.mxu0 0.0
    %1777 = vmatprep.subr.mxu0 0.0
    %1778 = vmatpush1.msra.mxu0 0.0
    %1779 = vmatprep.subr.mxu0 0.0
    %1780 = vmatpush1.msra.mxu0 0.0
    %1781 = vmatprep.subr.mxu0 0.0
    %1782 = vmatpush1.msra.mxu0 0.0
    %1783 = vmatprep.subr.mxu0 0.0
    %1784 = vmatpush1.msra.mxu0 0.0
    %1785 = vmatprep.subr.mxu0 0.0
    %1786 = vmatpush1.msra.mxu0 0.0
    %1787 = vmatprep.subr.mxu0 0.0
    %1788 = vmatpush1.msra.mxu0 0.0
    %1789 = vmatprep.subr.mxu0 0.0
    %1790 = vmatpush1.msra.mxu0 0.0
    %1791 = vmatprep.subr.mxu0 0.0
    %1792 = vmatpush1.msra.mxu0 0.0
    %1793 = vmatprep.subr.mxu0 0.0
    %1794 = vmatpush1.msra.mxu0 0.0
    %1795 = vmatprep.subr.mxu0 0.0
    %1796 = vmatpush1.msra.mxu0 0.0
    %1797 = vmatprep.subr.mxu0 0.0
    %1798 = vmatpush1.msra.mxu0 0.0
    %1799 = vmatprep.subr.mxu0 0.0
    %1800 = vmatpush1.msra.mxu0 0.0
    %1801 = vmatprep.subr.mxu0 0.0
    %1802 = vmatpush1.msra.mxu0 0.0
    %1803 = vmatprep.subr.mxu0 0.0
    %1804 = vmatpush1.msra.mxu0 0.0
    %1805 = vmatprep.subr.mxu0 0.0
    %1806 = vmatpush1.msra.mxu0 0.0
    %1807 = vmatprep.subr.mxu0 0.0
    %1808 = vmatpush1.msra.mxu0 0.0
    %1809 = vmatprep.mubr.f32.mxu0 0.0
    %1810 = vmatmul.mubr.f32.gmra.mrb[0].mxu0 %v1629
    %v1811 = vpop.f32.mrb[0].mxu0
    %v1812 = vadd.f32 0.0, %v1811
    %v1813 = vpop.f32.mrb[0].mxu0
    %1814 = vmatprep.mubr.f32.mxu0 0.0
    %1815 = vmatmul.mubr.f32.gmra.mrb[0].mxu0 %v1632
    %v1816 = vpop.f32.mrb[0].mxu0
    %v1817 = vadd.f32 0.0, %v1816
    %v1818 = vpop.f32.mrb[0].mxu0
    %1819 = vmatprep.mubr.f32.mxu0 0.0
    %1820 = vmatmul.mubr.f32.gmra.mrb[0].mxu0 %v1635
    %v1821 = vpop.f32.mrb[0].mxu0
    %v1822 = vadd.f32 0.0, %v1821
    %v1823 = vpop.f32.mrb[0].mxu0
    %1824 = vmatprep.mubr.f32.mxu0 0.0
    %1825 = vmatmul.mubr.f32.gmra.mrb[0].mxu0 %v1638
    %v1826 = vpop.f32.mrb[0].mxu0
    %v1827 = vadd.f32 0.0, %v1826
    %v1828 = vpop.f32.mrb[0].mxu0
    %1829 = vdwg.mxu0
    %1830 = vrot.lane.b32.xlu0 %v1616, 104
    %v1831 = vpop.permute.xlu0 %1830
    %1832 = vrot.lane.b32.xlu0 %v1622, 104
    %v1833 = vpop.permute.xlu0 %1832
    %v1835 = vsel %vm689, %v1833, 0
    %1837 = vmatprep.subr.mxu0 0.0
    %1838 = vmatpush1.msra.mxu0 %v1831
    %1839 = vmatprep.subr.mxu0 0.0
    %1840 = vmatpush1.msra.mxu0 %v1835
    %1841 = vmatprep.subr.mxu0 0.0
    %1842 = vmatpush1.msra.mxu0 0.0
    %1843 = vmatprep.subr.mxu0 0.0
    %1844 = vmatpush1.msra.mxu0 0.0
    %1845 = vmatprep.subr.mxu0 0.0
    %1846 = vmatpush1.msra.mxu0 0.0
    %1847 = vmatprep.subr.mxu0 0.0
    %1848 = vmatpush1.msra.mxu0 0.0
    %1849 = vmatprep.subr.mxu0 0.0
    %1850 = vmatpush1.msra.mxu0 0.0
    %1851 = vmatprep.subr.mxu0 0.0
    %1852 = vmatpush1.msra.mxu0 0.0
    %1853 = vmatprep.subr.mxu0 0.0
    %1854 = vmatpush1.msra.mxu0 0.0
    %1855 = vmatprep.subr.mxu0 0.0
    %1856 = vmatpush1.msra.mxu0 0.0
    %1857 = vmatprep.subr.mxu0 0.0
    %1858 = vmatpush1.msra.mxu0 0.0
    %1859 = vmatprep.subr.mxu0 0.0
    %1860 = vmatpush1.msra.mxu0 0.0
    %1861 = vmatprep.subr.mxu0 0.0
    %1862 = vmatpush1.msra.mxu0 0.0
    %1863 = vmatprep.subr.mxu0 0.0
    %1864 = vmatpush1.msra.mxu0 0.0
    %1865 = vmatprep.subr.mxu0 0.0
    %1866 = vmatpush1.msra.mxu0 0.0
    %1867 = vmatprep.subr.mxu0 0.0
    %1868 = vmatpush1.msra.mxu0 0.0
    %1869 = vmatprep.subr.mxu0 0.0
    %1870 = vmatpush1.msra.mxu0 0.0
    %1871 = vmatprep.subr.mxu0 0.0
    %1872 = vmatpush1.msra.mxu0 0.0
    %1873 = vmatprep.subr.mxu0 0.0
    %1874 = vmatpush1.msra.mxu0 0.0
    %1875 = vmatprep.subr.mxu0 0.0
    %1876 = vmatpush1.msra.mxu0 0.0
    %1877 = vmatprep.subr.mxu0 0.0
    %1878 = vmatpush1.msra.mxu0 0.0
    %1879 = vmatprep.subr.mxu0 0.0
    %1880 = vmatpush1.msra.mxu0 0.0
    %1881 = vmatprep.subr.mxu0 0.0
    %1882 = vmatpush1.msra.mxu0 0.0
    %1883 = vmatprep.subr.mxu0 0.0
    %1884 = vmatpush1.msra.mxu0 0.0
    %1885 = vmatprep.subr.mxu0 0.0
    %1886 = vmatpush1.msra.mxu0 0.0
    %1887 = vmatprep.subr.mxu0 0.0
    %1888 = vmatpush1.msra.mxu0 0.0
    %1889 = vmatprep.subr.mxu0 0.0
    %1890 = vmatpush1.msra.mxu0 0.0
    %1891 = vmatprep.subr.mxu0 0.0
    %1892 = vmatpush1.msra.mxu0 0.0
    %1893 = vmatprep.subr.mxu0 0.0
    %1894 = vmatpush1.msra.mxu0 0.0
    %1895 = vmatprep.subr.mxu0 0.0
    %1896 = vmatpush1.msra.mxu0 0.0
    %1897 = vmatprep.subr.mxu0 0.0
    %1898 = vmatpush1.msra.mxu0 0.0
    %1899 = vmatprep.subr.mxu0 0.0
    %1900 = vmatpush1.msra.mxu0 0.0
    %1901 = vmatprep.mubr.f32.mxu0 0.0
    %1902 = vmatmul.mubr.f32.gmra.mrb[0].mxu0 %v1629
    %v1903 = vpop.f32.mrb[0].mxu0
    %v1904 = vadd.f32 0.0, %v1903
    %v1905 = vpop.f32.mrb[0].mxu0
    %1906 = vmatprep.mubr.f32.mxu0 0.0
    %1907 = vmatmul.mubr.f32.gmra.mrb[0].mxu0 %v1632
    %v1908 = vpop.f32.mrb[0].mxu0
    %v1909 = vadd.f32 0.0, %v1908
    %v1910 = vpop.f32.mrb[0].mxu0
    %1911 = vmatprep.mubr.f32.mxu0 0.0
    %1912 = vmatmul.mubr.f32.gmra.mrb[0].mxu0 %v1635
    %v1913 = vpop.f32.mrb[0].mxu0
    %v1914 = vadd.f32 0.0, %v1913
    %v1915 = vpop.f32.mrb[0].mxu0
    %1916 = vmatprep.mubr.f32.mxu0 0.0
    %1917 = vmatmul.mubr.f32.gmra.mrb[0].mxu0 %v1638
    %v1918 = vpop.f32.mrb[0].mxu0
    %v1919 = vadd.f32 0.0, %v1918
    %v1920 = vpop.f32.mrb[0].mxu0
    %1921 = vdwg.mxu0
    %v1922 = vmax.f32 %v1710, %v1812
    %v1923 = vmax.f32 %v1715, %v1817
    %v1924 = vmax.f32 %v1720, %v1822
    %v1925 = vmax.f32 %v1725, %v1827
    %v1926 = vmax.f32 %v1922, %v1904
    %v1927 = vmax.f32 %v1923, %v1909
    %v1928 = vmax.f32 %v1924, %v1914
    %v1929 = vmax.f32 %v1925, %v1919
    %v1930 = vld [vmem:[%s11] sm:$0xff]
    %v1931 = vld [vmem:[%s11 + $0x8] sm:$0xff]
    %v1932 = vld [vmem:[%s11 + $0x10] sm:$0xff]
    %v1933 = vld [vmem:[%s11 + $0x18] sm:$0xff]
    %1935 = vset.pattern.permute.xlu0 0
    %1936 = vperm.xlu0 %1935, %v1930
    %v1937 = vpop.permute.xlu0 %1936
    %1940 = vset.pattern.permute.xlu0 0
    %1941 = vperm.xlu0 %1940, %v1931
    %v1942 = vpop.permute.xlu0 %1941
    %1945 = vset.pattern.permute.xlu0 0
    %1946 = vperm.xlu0 %1945, %v1932
    %v1947 = vpop.permute.xlu0 %1946
    %1950 = vset.pattern.permute.xlu0 0
    %1951 = vperm.xlu0 %1950, %v1933
    %v1952 = vpop.permute.xlu0 %1951
    %v1954 = vadd.f32 %v1926, %v1937
    %v1955 = vadd.f32 %v1927, %v1942
    %v1956 = vadd.f32 %v1928, %v1947
    %v1957 = vadd.f32 %v1929, %v1952
    %v1958 = vmax.f32 %v1954, 0.0
    %v1959 = vmax.f32 %v1955, 0.0
    %v1960 = vmax.f32 %v1956, 0.0
    %v1961 = vmax.f32 %v1957, 0.0
    %v1962 = vld [vmem:[%s9] sm:$0xff]
    %v1963 = vld [vmem:[%s9 + $0x8] sm:$0xff]
    %v1964 = vld [vmem:[%s9 + $0x10] sm:$0xff]
    %v1965 = vld [vmem:[%s9 + $0x18] sm:$0xff]
    %vm1966 = vcmask 261120
    %v1968 = vsel %vm1966, %v1962, 0
    %v1971 = vsel %vm1966, %v1963, 0
    %v1974 = vsel %vm1966, %v1964, 0
    %v1977 = vsel %vm1966, %v1965, 0
    %1979 = vmatprep.subr.mxu0 0.0
    %1980 = vmatpush1.msra.mxu0 %v1958
    %1981 = vmatprep.subr.mxu0 0.0
    %1982 = vmatpush1.msra.mxu0 %v1959
    %1983 = vmatprep.subr.mxu0 0.0
    %1984 = vmatpush1.msra.mxu0 %v1960
    %1985 = vmatprep.subr.mxu0 0.0
    %1986 = vmatpush1.msra.mxu0 %v1961
    %1987 = vmatprep.subr.mxu0 0.0
    %1988 = vmatpush1.msra.mxu0 0.0
    %1989 = vmatprep.subr.mxu0 0.0
    %1990 = vmatpush1.msra.mxu0 0.0
    %1991 = vmatprep.subr.mxu0 0.0
    %1992 = vmatpush1.msra.mxu0 0.0
    %1993 = vmatprep.subr.mxu0 0.0
    %1994 = vmatpush1.msra.mxu0 0.0
    %1995 = vmatprep.subr.mxu0 0.0
    %1996 = vmatpush1.msra.mxu0 0.0
    %1997 = vmatprep.subr.mxu0 0.0
    %1998 = vmatpush1.msra.mxu0 0.0
    %1999 = vmatprep.subr.mxu0 0.0
    %2000 = vmatpush1.msra.mxu0 0.0
    %2001 = vmatprep.subr.mxu0 0.0
    %2002 = vmatpush1.msra.mxu0 0.0
    %2003 = vmatprep.subr.mxu0 0.0
    %2004 = vmatpush1.msra.mxu0 0.0
    %2005 = vmatprep.subr.mxu0 0.0
    %2006 = vmatpush1.msra.mxu0 0.0
    %2007 = vmatprep.subr.mxu0 0.0
    %2008 = vmatpush1.msra.mxu0 0.0
    %2009 = vmatprep.subr.mxu0 0.0
    %2010 = vmatpush1.msra.mxu0 0.0
    %2011 = vmatprep.subr.mxu0 0.0
    %2012 = vmatpush1.msra.mxu0 0.0
    %2013 = vmatprep.subr.mxu0 0.0
    %2014 = vmatpush1.msra.mxu0 0.0
    %2015 = vmatprep.subr.mxu0 0.0
    %2016 = vmatpush1.msra.mxu0 0.0
    %2017 = vmatprep.subr.mxu0 0.0
    %2018 = vmatpush1.msra.mxu0 0.0
    %2019 = vmatprep.subr.mxu0 0.0
    %2020 = vmatpush1.msra.mxu0 0.0
    %2021 = vmatprep.subr.mxu0 0.0
    %2022 = vmatpush1.msra.mxu0 0.0
    %2023 = vmatprep.subr.mxu0 0.0
    %2024 = vmatpush1.msra.mxu0 0.0
    %2025 = vmatprep.subr.mxu0 0.0
    %2026 = vmatpush1.msra.mxu0 0.0
    %2027 = vmatprep.subr.mxu0 0.0
    %2028 = vmatpush1.msra.mxu0 0.0
    %2029 = vmatprep.subr.mxu0 0.0
    %2030 = vmatpush1.msra.mxu0 0.0
    %2031 = vmatprep.subr.mxu0 0.0
    %2032 = vmatpush1.msra.mxu0 0.0
    %2033 = vmatprep.subr.mxu0 0.0
    %2034 = vmatpush1.msra.mxu0 0.0
    %2035 = vmatprep.subr.mxu0 0.0
    %2036 = vmatpush1.msra.mxu0 0.0
    %2037 = vmatprep.subr.mxu0 0.0
    %2038 = vmatpush1.msra.mxu0 0.0
    %2039 = vmatprep.subr.mxu0 0.0
    %2040 = vmatpush1.msra.mxu0 0.0
    %2041 = vmatprep.subr.mxu0 0.0
    %2042 = vmatpush1.msra.mxu0 0.0
    %2043 = vmatprep.mubr.f32.mxu0 0.0
    %2044 = vmatmul.mubr.f32.gmra.mrb[0].mxu0 %v1968
    %v2045 = vpop.f32.mrb[0].mxu0
    %v2046 = vadd.f32 0.0, %v2045
    %v2047 = vpop.f32.mrb[0].mxu0
    %2048 = vmatprep.mubr.f32.mxu0 0.0
    %2049 = vmatmul.mubr.f32.gmra.mrb[0].mxu0 %v1971
    %v2050 = vpop.f32.mrb[0].mxu0
    %v2051 = vadd.f32 0.0, %v2050
    %v2052 = vpop.f32.mrb[0].mxu0
    %2053 = vmatprep.mubr.f32.mxu0 0.0
    %2054 = vmatmul.mubr.f32.gmra.mrb[0].mxu0 %v1974
    %v2055 = vpop.f32.mrb[0].mxu0
    %v2056 = vadd.f32 0.0, %v2055
    %v2057 = vpop.f32.mrb[0].mxu0
    %2058 = vmatprep.mubr.f32.mxu0 0.0
    %2059 = vmatmul.mubr.f32.gmra.mrb[0].mxu0 %v1977
    %v2060 = vpop.f32.mrb[0].mxu0
    %v2061 = vadd.f32 0.0, %v2060
    %v2062 = vpop.f32.mrb[0].mxu0
    %2063 = vdwg.mxu0
    %vm2064 = vcmask 621568
    %v2065 = vsel %vm2064, %v2046, 0.0
    %2066 = vadd.xlane.f32.xlu0 %v2065
    %v2067 = vpop.xlane.xlu0 %2066
    %v2068 = vsel %vm2064, %v2051, 0.0
    %2069 = vadd.xlane.f32.xlu0 %v2068
    %v2070 = vpop.xlane.xlu0 %2069
    %v2071 = vsel %vm2064, %v2056, 0.0
    %2072 = vadd.xlane.f32.xlu0 %v2071
    %v2073 = vpop.xlane.xlu0 %2072
    %v2074 = vsel %vm2064, %v2061, 0.0
    %2075 = vadd.xlane.f32.xlu0 %v2074
    %v2076 = vpop.xlane.xlu0 %2075
    %v2077 = vmul.f32 %v1958, %v1958
    %v2078 = vmul.f32 %v1959, %v1959
    %v2079 = vmul.f32 %v1960, %v1960
    %v2080 = vmul.f32 %v1961, %v1961
    %2081 = vmatprep.subr.mxu0 0.0
    %2082 = vmatpush1.msra.mxu0 %v2077
    %2083 = vmatprep.subr.mxu0 0.0
    %2084 = vmatpush1.msra.mxu0 %v2078
    %2085 = vmatprep.subr.mxu0 0.0
    %2086 = vmatpush1.msra.mxu0 %v2079
    %2087 = vmatprep.subr.mxu0 0.0
    %2088 = vmatpush1.msra.mxu0 %v2080
    %2089 = vmatprep.subr.mxu0 0.0
    %2090 = vmatpush1.msra.mxu0 0.0
    %2091 = vmatprep.subr.mxu0 0.0
    %2092 = vmatpush1.msra.mxu0 0.0
    %2093 = vmatprep.subr.mxu0 0.0
    %2094 = vmatpush1.msra.mxu0 0.0
    %2095 = vmatprep.subr.mxu0 0.0
    %2096 = vmatpush1.msra.mxu0 0.0
    %2097 = vmatprep.subr.mxu0 0.0
    %2098 = vmatpush1.msra.mxu0 0.0
    %2099 = vmatprep.subr.mxu0 0.0
    %2100 = vmatpush1.msra.mxu0 0.0
    %2101 = vmatprep.subr.mxu0 0.0
    %2102 = vmatpush1.msra.mxu0 0.0
    %2103 = vmatprep.subr.mxu0 0.0
    %2104 = vmatpush1.msra.mxu0 0.0
    %2105 = vmatprep.subr.mxu0 0.0
    %2106 = vmatpush1.msra.mxu0 0.0
    %2107 = vmatprep.subr.mxu0 0.0
    %2108 = vmatpush1.msra.mxu0 0.0
    %2109 = vmatprep.subr.mxu0 0.0
    %2110 = vmatpush1.msra.mxu0 0.0
    %2111 = vmatprep.subr.mxu0 0.0
    %2112 = vmatpush1.msra.mxu0 0.0
    %2113 = vmatprep.subr.mxu0 0.0
    %2114 = vmatpush1.msra.mxu0 0.0
    %2115 = vmatprep.subr.mxu0 0.0
    %2116 = vmatpush1.msra.mxu0 0.0
    %2117 = vmatprep.subr.mxu0 0.0
    %2118 = vmatpush1.msra.mxu0 0.0
    %2119 = vmatprep.subr.mxu0 0.0
    %2120 = vmatpush1.msra.mxu0 0.0
    %2121 = vmatprep.subr.mxu0 0.0
    %2122 = vmatpush1.msra.mxu0 0.0
    %2123 = vmatprep.subr.mxu0 0.0
    %2124 = vmatpush1.msra.mxu0 0.0
    %2125 = vmatprep.subr.mxu0 0.0
    %2126 = vmatpush1.msra.mxu0 0.0
    %2127 = vmatprep.subr.mxu0 0.0
    %2128 = vmatpush1.msra.mxu0 0.0
    %2129 = vmatprep.subr.mxu0 0.0
    %2130 = vmatpush1.msra.mxu0 0.0
    %2131 = vmatprep.subr.mxu0 0.0
    %2132 = vmatpush1.msra.mxu0 0.0
    %2133 = vmatprep.subr.mxu0 0.0
    %2134 = vmatpush1.msra.mxu0 0.0
    %2135 = vmatprep.subr.mxu0 0.0
    %2136 = vmatpush1.msra.mxu0 0.0
    %2137 = vmatprep.subr.mxu0 0.0
    %2138 = vmatpush1.msra.mxu0 0.0
    %2139 = vmatprep.subr.mxu0 0.0
    %2140 = vmatpush1.msra.mxu0 0.0
    %2141 = vmatprep.subr.mxu0 0.0
    %2142 = vmatpush1.msra.mxu0 0.0
    %2143 = vmatprep.subr.mxu0 0.0
    %2144 = vmatpush1.msra.mxu0 0.0
    %2145 = vmatprep.mubr.f32.mxu0 0.0
    %2146 = vmatmul.mubr.f32.gmra.mrb[0].mxu0 %v1968
    %v2147 = vpop.f32.mrb[0].mxu0
    %v2148 = vadd.f32 0.0, %v2147
    %v2149 = vpop.f32.mrb[0].mxu0
    %2150 = vmatprep.mubr.f32.mxu0 0.0
    %2151 = vmatmul.mubr.f32.gmra.mrb[0].mxu0 %v1971
    %v2152 = vpop.f32.mrb[0].mxu0
    %v2153 = vadd.f32 0.0, %v2152
    %v2154 = vpop.f32.mrb[0].mxu0
    %2155 = vmatprep.mubr.f32.mxu0 0.0
    %2156 = vmatmul.mubr.f32.gmra.mrb[0].mxu0 %v1974
    %v2157 = vpop.f32.mrb[0].mxu0
    %v2158 = vadd.f32 0.0, %v2157
    %v2159 = vpop.f32.mrb[0].mxu0
    %2160 = vmatprep.mubr.f32.mxu0 0.0
    %2161 = vmatmul.mubr.f32.gmra.mrb[0].mxu0 %v1977
    %v2162 = vpop.f32.mrb[0].mxu0
    %v2163 = vadd.f32 0.0, %v2162
    %v2164 = vpop.f32.mrb[0].mxu0
    %2165 = vdwg.mxu0
    %v2166 = vsel %vm2064, %v2148, 0.0
    %2167 = vadd.xlane.f32.xlu0 %v2166
    %v2168 = vpop.xlane.xlu0 %2167
    %v2169 = vsel %vm2064, %v2153, 0.0
    %2170 = vadd.xlane.f32.xlu0 %v2169
    %v2171 = vpop.xlane.xlu0 %2170
    %v2172 = vsel %vm2064, %v2158, 0.0
    %2173 = vadd.xlane.f32.xlu0 %v2172
    %v2174 = vpop.xlane.xlu0 %2173
    %v2175 = vsel %vm2064, %v2163, 0.0
    %2176 = vadd.xlane.f32.xlu0 %v2175
    %v2177 = vpop.xlane.xlu0 %2176
    %v2178 = vrcp.pop 152.0
    %v2179 = vmul.f32 %v2067, %v2178
    %v2180 = vmul.f32 %v2070, %v2178
    %v2181 = vmul.f32 %v2073, %v2178
    %v2182 = vmul.f32 %v2076, %v2178
    %v2183 = vmul.f32 %v2168, %v2178
    %v2184 = vmul.f32 %v2171, %v2178
    %v2185 = vmul.f32 %v2174, %v2178
    %v2186 = vmul.f32 %v2177, %v2178
    %v2187 = vmul.f32 %v2179, %v2179
    %v2188 = vmul.f32 %v2180, %v2180
    %v2189 = vmul.f32 %v2181, %v2181
    %v2190 = vmul.f32 %v2182, %v2182
    %v2191 = vsub.f32 %v2183, %v2187
    %v2192 = vsub.f32 %v2184, %v2188
    %v2193 = vsub.f32 %v2185, %v2189
    %v2194 = vsub.f32 %v2186, %v2190
    %v2195 = vadd.f32 %v2191, 1e-05
    %v2196 = vadd.f32 %v2192, 1e-05
    %v2197 = vadd.f32 %v2193, 1e-05
    %v2198 = vadd.f32 %v2194, 1e-05
    %v2199 = vrsqrt.pop %v2195
    %v2200 = vrsqrt.pop %v2196
    %v2201 = vrsqrt.pop %v2197
    %v2202 = vrsqrt.pop %v2198
    %v2203 = vmul.f32 %v2199, %v1930
    %v2204 = vmul.f32 %v2200, %v1931
    %v2205 = vmul.f32 %v2201, %v1932
    %v2206 = vmul.f32 %v2202, %v1933
    %v2207 = vsub.f32 %v1958, %v2179
    %v2208 = vsub.f32 %v1959, %v2180
    %v2209 = vsub.f32 %v1960, %v2181
    %v2210 = vsub.f32 %v1961, %v2182
    %2212 = vset.pattern.permute.xlu0 1
    %2213 = vperm.xlu0 %2212, %v2203
    %v2214 = vpop.permute.xlu0 %2213
    %2217 = vset.pattern.permute.xlu0 1
    %2218 = vperm.xlu0 %2217, %v2204
    %v2219 = vpop.permute.xlu0 %2218
    %2222 = vset.pattern.permute.xlu0 1
    %2223 = vperm.xlu0 %2222, %v2205
    %v2224 = vpop.permute.xlu0 %2223
    %2227 = vset.pattern.permute.xlu0 1
    %2228 = vperm.xlu0 %2227, %v2206
    %v2229 = vpop.permute.xlu0 %2228
    %v2231 = vmul.f32 %v2207, %v2214
    %v2232 = vmul.f32 %v2208, %v2219
    %v2233 = vmul.f32 %v2209, %v2224
    %v2234 = vmul.f32 %v2210, %v2229
    %2235 = vset.pattern.permute.xlu0 2
    %2236 = vperm.xlu0 %2235, %v1930
    %v2237 = vpop.permute.xlu0 %2236
    %2239 = vset.pattern.permute.xlu0 2
    %2240 = vperm.xlu0 %2239, %v1931
    %v2241 = vpop.permute.xlu0 %2240
    %2243 = vset.pattern.permute.xlu0 2
    %2244 = vperm.xlu0 %2243, %v1932
    %v2245 = vpop.permute.xlu0 %2244
    %2247 = vset.pattern.permute.xlu0 2
    %2248 = vperm.xlu0 %2247, %v1933
    %v2249 = vpop.permute.xlu0 %2248
    %v2251 = vadd.f32 %v2231, %v2237
    %v2252 = vadd.f32 %v2232, %v2241
    %v2253 = vadd.f32 %v2233, %v2245
    %v2254 = vadd.f32 %v2234, %v2249
    %v2256 = vrot.slane %v2251, 2
    %2257 = vrot.lane.b32.xlu0 %v2256, 76
    %v2258 = vpop.permute.xlu0 %2257
    %v2260 = vrot.slane %v2251, 4
    %2261 = vrot.lane.b32.xlu0 %v2260, 24
    %v2262 = vpop.permute.xlu0 %2261
    %v2264 = vrot.slane %v2251, 6
    %2265 = vrot.lane.b32.xlu0 %v2264, 100
    %v2266 = vpop.permute.xlu0 %2265
    %2269 = vrot.lane.b32.xlu0 %v2252, 48
    %v2270 = vpop.permute.xlu0 %2269
    %v2272 = vrot.slane %v2252, 2
    %2273 = vrot.lane.b32.xlu0 %v2272, 124
    %v2274 = vpop.permute.xlu0 %2273
    %v2276 = vrot.slane %v2252, 4
    %2277 = vrot.lane.b32.xlu0 %v2276, 72
    %v2278 = vpop.permute.xlu0 %2277
    %v2280 = vrot.slane %v2252, 6
    %2281 = vrot.lane.b32.xlu0 %v2280, 20
    %v2282 = vpop.permute.xlu0 %2281
    %2285 = vrot.lane.b32.xlu0 %v2253, 96
    %v2286 = vpop.permute.xlu0 %2285
    %v2288 = vrot.slane %v2253, 2
    %2289 = vrot.lane.b32.xlu0 %v2288, 44
    %v2290 = vpop.permute.xlu0 %2289
    %v2292 = vrot.slane %v2253, 4
    %2293 = vrot.lane.b32.xlu0 %v2292, 120
    %v2294 = vpop.permute.xlu0 %2293
    %v2296 = vrot.slane %v2253, 6
    %2297 = vrot.lane.b32.xlu0 %v2296, 68
    %v2298 = vpop.permute.xlu0 %2297
    %2301 = vrot.lane.b32.xlu0 %v2254, 16
    %v2302 = vpop.permute.xlu0 %2301
    %v2304 = vrot.slane %v2254, 2
    %2305 = vrot.lane.b32.xlu0 %v2304, 92
    %v2306 = vpop.permute.xlu0 %2305
    %v2308 = vrot.slane %v2254, 4
    %2309 = vrot.lane.b32.xlu0 %v2308, 40
    %v2310 = vpop.permute.xlu0 %2309
    %v2312 = vrot.slane %v2254, 6
    %2313 = vrot.lane.b32.xlu0 %v2312, 116
    %v2314 = vpop.permute.xlu0 %2313
    %v2316 = vsel %vm2064, %v2251, %v2258
    %vm2317 = vcmask 195584
    %v2318 = vsel %vm2317, %v2258, %v2262
    %v2319 = vsel %vm1325, %v2318, %v2266
    %vm2320 = vcmask 392192
    %v2321 = vsel %vm2320, %v2266, %v2270
    %vm2322 = vcmask 1014784
    %v2323 = vsel %vm2322, %v2321, %v2274
    %vm2324 = vcmask 588800
    %v2325 = vsel %vm2324, %v2274, %v2278
    %vm2326 = vcmask 162816
    %v2327 = vsel %vm2326, %v2278, %v2282
    %vm2328 = vcmask 785408
    %v2329 = vsel %vm2328, %v2327, %v2286
    %vm2330 = vcmask 359424
    %v2331 = vsel %vm2330, %v2286, %v2290
    %vm2332 = vcmask 982016
    %v2333 = vsel %vm2332, %v2331, %v2294
    %vm2334 = vcmask 556032
    %v2335 = vsel %vm2334, %v2294, %v2298
    %vm2336 = vcmask 130048
    %v2337 = vsel %vm2336, %v2298, %v2302
    %vm2338 = vcmask 752640
    %v2339 = vsel %vm2338, %v2337, %v2306
    %vm2340 = vcmask 326656
    %v2341 = vsel %vm2340, %v2306, %v2310
    %vm2342 = vcmask 949248
    %v2343 = vsel %vm2342, %v2341, %v2314
    %v2353 = vcombine.low %v2316, %v2319
    %v2354 = vcombine.low %v2323, %v2325
    %v2356 = vunpack.c.l.s4 1983009808
    %v2357 = vunpack.c.0.s8 %v2356
    %v2358 = vlaneseq
    %v2359 = vshrl.u32 %v2358, 7
    %v2360 = vsub.s32 %v2357, %v2359
    %v2361 = vrot.slane %v2353, %v2360
    %v2363 = vunpack.c.l.s4 1983009808
    %v2364 = vunpack.c.0.s8 %v2363
    %v2365 = vlaneseq
    %v2366 = vshrl.u32 %v2365, 7
    %v2367 = vsub.s32 %v2364, %v2366
    %v2368 = vrot.slane %v2354, %v2367
    %v2369 = vcombine.low %v2361, %v2368
    %v2370 = vcombine.low %v2329, %v2333
    %v2371 = vcombine.low %v2335, %v2339
    %v2373 = vunpack.c.l.s4 1983009808
    %v2374 = vunpack.c.0.s8 %v2373
    %v2375 = vlaneseq
    %v2376 = vshrl.u32 %v2375, 7
    %v2377 = vsub.s32 %v2374, %v2376
    %v2378 = vrot.slane %v2370, %v2377
    %v2380 = vunpack.c.l.s4 1983009808
    %v2381 = vunpack.c.0.s8 %v2380
    %v2382 = vlaneseq
    %v2383 = vshrl.u32 %v2382, 7
    %v2384 = vsub.s32 %v2381, %v2383
    %v2385 = vrot.slane %v2371, %v2384
    %v2386 = vcombine.low %v2378, %v2385
    %v2387 = vcombine.low %v2343, %v2314
    %v2389 = vunpack.c.l.s4 1983009808
    %v2390 = vunpack.c.0.s8 %v2389
    %v2391 = vlaneseq
    %v2392 = vshrl.u32 %v2391, 7
    %v2393 = vsub.s32 %v2390, %v2392
    %v2394 = vrot.slane %v2387, %v2393
    %2398 = vst [vmem:[#allocation6] sm:$0xff] %v2369
    %2399 = vst [vmem:[#allocation6 + $0x8] sm:$0xff] %v2386
    %vm2400 = vcmask 519170
    %vm2401 = vmor %vm2400, %vm210
    %2402 = vst.msk [vmem:[#allocation6 + $0x10] sm:$0xf] %vm2401, %v2394
    %v2403 = vld [vmem:[%s3] sm:$0xff]
    %v2404 = vld [vmem:[%s3 + $0x8] sm:$0xf]
    %v2405 = vld [vmem:[%s13] sm:$0xff]
    %v2406 = vld [vmem:[%s13 + $0x8] sm:$0xff]
    %v2407 = vld [vmem:[%s13 + $0x10] sm:$0xff]
    %v2408 = vld [vmem:[%s13 + $0x18] sm:$0xff]
    %v2409 = vld [vmem:[%s13 + $0x20] sm:$0xff]
    %v2410 = vld [vmem:[%s13 + $0x28] sm:$0xff]
    %v2411 = vld [vmem:[%s13 + $0x30] sm:$0xff]
    %v2412 = vld [vmem:[%s13 + $0x38] sm:$0xff]
    %v2413 = vld [vmem:[%s13 + $0x40] sm:$0xff]
    %v2414 = vld [vmem:[%s13 + $0x48] sm:$0xff]
    %v2415 = vld [vmem:[%s13 + $0x50] sm:$0xff]
    %v2416 = vld [vmem:[%s13 + $0x58] sm:$0xff]
    %v2417 = vld [vmem:[%s13 + $0x60] sm:$0xff]
    %v2418 = vld [vmem:[%s13 + $0x68] sm:$0xff]
    %v2419 = vld [vmem:[%s13 + $0x70] sm:$0xff]
    %v2420 = vld [vmem:[%s13 + $0x78] sm:$0xff]
    %v2421 = vld [vmem:[%s13 + $0x80] sm:$0xff]
    %v2422 = vld [vmem:[%s13 + $0x88] sm:$0xff]
    %v2423 = vld [vmem:[%s13 + $0x90] sm:$0xff]
    %v2424 = vld [vmem:[%s13 + $0x98] sm:$0xff]
    %v2425 = vld [vmem:[%s13 + $0xa0] sm:$0xff]
    %v2426 = vld [vmem:[%s13 + $0xa8] sm:$0xff]
    %v2427 = vld [vmem:[%s13 + $0xb0] sm:$0xff]
    %v2428 = vld [vmem:[%s13 + $0xb8] sm:$0xff]
    %v2429 = vld [vmem:[%s13 + $0xc0] sm:$0xff]
    %v2430 = vld [vmem:[%s13 + $0xc8] sm:$0xff]
    %v2431 = vld [vmem:[%s13 + $0xd0] sm:$0xff]
    %v2432 = vld [vmem:[%s13 + $0xd8] sm:$0xff]
    %v2433 = vld [vmem:[%s13 + $0xe0] sm:$0xff]
    %v2434 = vld [vmem:[%s13 + $0xe8] sm:$0xff]
    %v2435 = vld [vmem:[%s13 + $0xf0] sm:$0xff]
    %v2436 = vld [vmem:[%s13 + $0xf8] sm:$0xff]
    %v2437 = vld [vmem:[%s13 + $0x100] sm:$0xff]
    %v2438 = vld [vmem:[%s13 + $0x108] sm:$0xff]
    %v2439 = vld [vmem:[%s13 + $0x110] sm:$0xff]
    %v2440 = vld [vmem:[%s13 + $0x118] sm:$0xff]
    %v2441 = vld [vmem:[%s13 + $0x120] sm:$0xff]
    %v2442 = vld [vmem:[%s13 + $0x128] sm:$0xff]
    %v2443 = vld [vmem:[%s13 + $0x130] sm:$0xff]
    %v2444 = vld [vmem:[%s13 + $0x138] sm:$0xff]
    %v2445 = vld [vmem:[%s13 + $0x140] sm:$0xff]
    %v2446 = vld [vmem:[%s13 + $0x148] sm:$0xff]
    %v2447 = vld [vmem:[%s13 + $0x150] sm:$0xff]
    %v2448 = vld [vmem:[%s13 + $0x158] sm:$0xff]
    %v2449 = vld [vmem:[%s13 + $0x160] sm:$0xff]
    %v2450 = vld [vmem:[%s13 + $0x168] sm:$0xff]
    %v2451 = vld [vmem:[%s13 + $0x170] sm:$0xff]
    %v2452 = vld [vmem:[%s13 + $0x178] sm:$0xff]
    %v2453 = vld [vmem:[%s13 + $0x180] sm:$0xff]
    %v2454 = vld [vmem:[%s13 + $0x188] sm:$0xff]
    %v2455 = vld [vmem:[%s13 + $0x190] sm:$0xff]
    %v2456 = vld [vmem:[%s13 + $0x198] sm:$0xff]
    %v2457 = vld [vmem:[%s13 + $0x1a0] sm:$0xff]
    %v2458 = vld [vmem:[%s13 + $0x1a8] sm:$0xff]
    %v2459 = vld [vmem:[%s13 + $0x1b0] sm:$0xff]
    %v2460 = vld [vmem:[%s13 + $0x1b8] sm:$0xff]
    %v2461 = vld [vmem:[%s13 + $0x1c0] sm:$0xff]
    %v2462 = vld [vmem:[%s13 + $0x1c8] sm:$0xff]
    %v2463 = vld [vmem:[%s13 + $0x1d0] sm:$0xff]
    %v2464 = vld [vmem:[%s13 + $0x1d8] sm:$0xff]
    %v2465 = vld [vmem:[%s13 + $0x1e0] sm:$0xff]
    %v2466 = vld [vmem:[%s13 + $0x1e8] sm:$0xff]
    %v2467 = vld [vmem:[%s13 + $0x1f0] sm:$0xff]
    %v2468 = vld [vmem:[%s13 + $0x1f8] sm:$0xff]
    %v2469 = vld [vmem:[%s13 + $0x200] sm:$0xff]
    %v2470 = vld [vmem:[%s13 + $0x208] sm:$0xff]
    %v2471 = vld [vmem:[%s13 + $0x210] sm:$0xff]
    %v2472 = vld [vmem:[%s13 + $0x218] sm:$0xff]
    %v2473 = vld [vmem:[%s13 + $0x220] sm:$0xff]
    %v2474 = vld [vmem:[%s13 + $0x228] sm:$0xff]
    %v2475 = vld [vmem:[%s13 + $0x230] sm:$0xff]
    %v2476 = vld [vmem:[%s13 + $0x238] sm:$0xff]
    %v2477 = vld [vmem:[%s13 + $0x240] sm:$0xff]
    %v2478 = vld [vmem:[%s13 + $0x248] sm:$0xff]
    %v2479 = vld [vmem:[%s13 + $0x250] sm:$0xff]
    %v2480 = vld [vmem:[%s13 + $0x258] sm:$0xff]
    %v2481 = vld [vmem:[%s13 + $0x260] sm:$0xff]
    %v2482 = vld [vmem:[%s13 + $0x268] sm:$0xff]
    %v2483 = vld [vmem:[%s13 + $0x270] sm:$0xff]
    %v2484 = vld [vmem:[%s13 + $0x278] sm:$0xff]
    %v2485 = vld [vmem:[%s13 + $0x280] sm:$0xff]
    %v2486 = vld [vmem:[%s13 + $0x288] sm:$0xff]
    %v2487 = vld [vmem:[%s13 + $0x290] sm:$0xff]
    %v2488 = vld [vmem:[%s13 + $0x298] sm:$0xff]
    %v2489 = vld [vmem:[%s13 + $0x2a0] sm:$0xff]
    %v2490 = vld [vmem:[%s13 + $0x2a8] sm:$0xff]
    %v2491 = vld [vmem:[%s13 + $0x2b0] sm:$0xff]
    %v2492 = vld [vmem:[%s13 + $0x2b8] sm:$0xff]
    %v2493 = vld [vmem:[%s13 + $0x2c0] sm:$0xff]
    %v2494 = vld [vmem:[%s13 + $0x2c8] sm:$0xff]
    %v2495 = vld [vmem:[%s13 + $0x2d0] sm:$0xff]
    %v2496 = vld [vmem:[%s13 + $0x2d8] sm:$0xff]
    %v2497 = vld [vmem:[%s13 + $0x2e0] sm:$0xff]
    %v2498 = vld [vmem:[%s13 + $0x2e8] sm:$0xff]
    %v2499 = vld [vmem:[%s13 + $0x2f0] sm:$0xff]
    %v2500 = vld [vmem:[%s13 + $0x2f8] sm:$0xff]
    %v2501 = vld [vmem:[%s13 + $0x300] sm:$0xff]
    %v2502 = vld [vmem:[%s13 + $0x308] sm:$0xff]
    %v2503 = vld [vmem:[%s13 + $0x310] sm:$0xff]
    %v2504 = vld [vmem:[%s13 + $0x318] sm:$0xff]
    %v2505 = vld [vmem:[%s13 + $0x320] sm:$0xff]
    %v2506 = vld [vmem:[%s13 + $0x328] sm:$0xff]
    %v2507 = vld [vmem:[%s13 + $0x330] sm:$0xff]
    %v2508 = vld [vmem:[%s13 + $0x338] sm:$0xff]
    %v2509 = vld [vmem:[%s13 + $0x340] sm:$0xff]
    %v2510 = vld [vmem:[%s13 + $0x348] sm:$0xff]
    %v2511 = vld [vmem:[%s13 + $0x350] sm:$0xff]
    %v2512 = vld [vmem:[%s13 + $0x358] sm:$0xff]
    %v2513 = vld [vmem:[%s13 + $0x360] sm:$0xff]
    %v2514 = vld [vmem:[%s13 + $0x368] sm:$0xff]
    %v2515 = vld [vmem:[%s13 + $0x370] sm:$0xff]
    %v2516 = vld [vmem:[%s13 + $0x378] sm:$0xff]
    %v2517 = vld [vmem:[%s13 + $0x380] sm:$0xff]
    %v2518 = vld [vmem:[%s13 + $0x388] sm:$0xff]
    %v2519 = vld [vmem:[%s13 + $0x390] sm:$0xff]
    %v2520 = vld [vmem:[%s13 + $0x398] sm:$0xff]
    %v2521 = vld [vmem:[%s13 + $0x3a0] sm:$0xff]
    %v2522 = vld [vmem:[%s13 + $0x3a8] sm:$0xff]
    %v2523 = vld [vmem:[%s13 + $0x3b0] sm:$0xff]
    %v2524 = vld [vmem:[%s13 + $0x3b8] sm:$0xff]
    %v2525 = vld [vmem:[%s13 + $0x3c0] sm:$0xff]
    %v2526 = vld [vmem:[%s13 + $0x3c8] sm:$0xff]
    %v2527 = vld [vmem:[%s13 + $0x3d0] sm:$0xff]
    %v2528 = vld [vmem:[%s13 + $0x3d8] sm:$0xff]
    %v2529 = vld [vmem:[%s13 + $0x3e0] sm:$0xff]
    %v2530 = vld [vmem:[%s13 + $0x3e8] sm:$0xff]
    %v2531 = vld [vmem:[%s13 + $0x3f0] sm:$0xff]
    %v2532 = vld [vmem:[%s13 + $0x3f8] sm:$0xff]
    %v2533 = vld [vmem:[%s13 + $0x400] sm:$0xff]
    %v2534 = vld [vmem:[%s13 + $0x408] sm:$0xff]
    %v2535 = vld [vmem:[%s13 + $0x410] sm:$0xff]
    %v2536 = vld [vmem:[%s13 + $0x418] sm:$0xff]
    %v2537 = vld [vmem:[%s13 + $0x420] sm:$0xff]
    %v2538 = vld [vmem:[%s13 + $0x428] sm:$0xff]
    %v2539 = vld [vmem:[%s13 + $0x430] sm:$0xff]
    %v2540 = vld [vmem:[%s13 + $0x438] sm:$0xff]
    %v2541 = vld [vmem:[%s13 + $0x440] sm:$0xff]
    %v2542 = vld [vmem:[%s13 + $0x448] sm:$0xff]
    %v2543 = vld [vmem:[%s13 + $0x450] sm:$0xff]
    %v2544 = vld [vmem:[%s13 + $0x458] sm:$0xff]
    %v2545 = vld [vmem:[%s13 + $0x460] sm:$0xff]
    %v2546 = vld [vmem:[%s13 + $0x468] sm:$0xff]
    %v2547 = vld [vmem:[%s13 + $0x470] sm:$0xff]
    %v2548 = vld [vmem:[%s13 + $0x478] sm:$0xff]
    %v2549 = vld [vmem:[%s13 + $0x480] sm:$0xff]
    %v2550 = vld [vmem:[%s13 + $0x488] sm:$0xff]
    %v2551 = vld [vmem:[%s13 + $0x490] sm:$0xff]
    %v2552 = vld [vmem:[%s13 + $0x498] sm:$0xff]
    %v2553 = vld [vmem:[%s13 + $0x4a0] sm:$0xff]
    %v2554 = vld [vmem:[%s13 + $0x4a8] sm:$0xff]
    %v2555 = vld [vmem:[%s13 + $0x4b0] sm:$0xff]
    %v2556 = vld [vmem:[%s13 + $0x4b8] sm:$0xff]
    %v2557 = vld [vmem:[%s13 + $0x4c0] sm:$0xff]
    %v2558 = vld [vmem:[%s13 + $0x4c8] sm:$0xff]
    %v2559 = vld [vmem:[%s13 + $0x4d0] sm:$0xff]
    %v2560 = vld [vmem:[%s13 + $0x4d8] sm:$0xff]
    %v2561 = vld [vmem:[%s13 + $0x4e0] sm:$0xff]
    %v2562 = vld [vmem:[%s13 + $0x4e8] sm:$0xff]
    %v2563 = vld [vmem:[%s13 + $0x4f0] sm:$0xff]
    %v2564 = vld [vmem:[%s13 + $0x4f8] sm:$0xff]
    %v2565 = vld [vmem:[%s13 + $0x500] sm:$0xff]
    %v2566 = vld [vmem:[%s13 + $0x508] sm:$0xff]
    %v2567 = vld [vmem:[%s13 + $0x510] sm:$0xff]
    %v2568 = vld [vmem:[%s13 + $0x518] sm:$0xff]
    %v2569 = vld [vmem:[%s13 + $0x520] sm:$0xff]
    %v2570 = vld [vmem:[%s13 + $0x528] sm:$0xff]
    %v2571 = vld [vmem:[%s13 + $0x530] sm:$0xff]
    %v2572 = vld [vmem:[%s13 + $0x538] sm:$0xff]
    %v2573 = vld [vmem:[%s13 + $0x540] sm:$0xff]
    %v2574 = vld [vmem:[%s13 + $0x548] sm:$0xff]
    %v2575 = vld [vmem:[%s13 + $0x550] sm:$0xff]
    %v2576 = vld [vmem:[%s13 + $0x558] sm:$0xff]
    %v2577 = vld [vmem:[%s13 + $0x560] sm:$0xff]
    %v2578 = vld [vmem:[%s13 + $0x568] sm:$0xff]
    %v2579 = vld [vmem:[%s13 + $0x570] sm:$0xff]
    %v2580 = vld [vmem:[%s13 + $0x578] sm:$0xff]
    %v2581 = vld [vmem:[%s13 + $0x580] sm:$0xff]
    %v2582 = vld [vmem:[%s13 + $0x588] sm:$0xff]
    %v2583 = vld [vmem:[%s13 + $0x590] sm:$0xff]
    %v2584 = vld [vmem:[%s13 + $0x598] sm:$0xff]
    %v2585 = vld [vmem:[%s13 + $0x5a0] sm:$0xff]
    %v2586 = vld [vmem:[%s13 + $0x5a8] sm:$0xff]
    %v2587 = vld [vmem:[%s13 + $0x5b0] sm:$0xff]
    %v2588 = vld [vmem:[%s13 + $0x5b8] sm:$0xff]
    %v2589 = vld [vmem:[%s13 + $0x5c0] sm:$0xff]
    %v2590 = vld [vmem:[%s13 + $0x5c8] sm:$0xff]
    %v2591 = vld [vmem:[%s13 + $0x5d0] sm:$0xff]
    %v2592 = vld [vmem:[%s13 + $0x5d8] sm:$0xff]
    %v2593 = vld [vmem:[%s13 + $0x5e0] sm:$0xff]
    %v2594 = vld [vmem:[%s13 + $0x5e8] sm:$0xff]
    %v2595 = vld [vmem:[%s13 + $0x5f0] sm:$0xff]
    %v2596 = vld [vmem:[%s13 + $0x5f8] sm:$0xff]
    %v2597 = vld [vmem:[%s13 + $0x600] sm:$0xff]
    %v2598 = vld [vmem:[%s13 + $0x608] sm:$0xff]
    %v2599 = vld [vmem:[%s13 + $0x610] sm:$0xff]
    %v2600 = vld [vmem:[%s13 + $0x618] sm:$0xff]
    %v2601 = vld [vmem:[%s13 + $0x620] sm:$0xff]
    %v2602 = vld [vmem:[%s13 + $0x628] sm:$0xff]
    %v2603 = vld [vmem:[%s13 + $0x630] sm:$0xff]
    %v2604 = vld [vmem:[%s13 + $0x638] sm:$0xff]
    %v2605 = vld [vmem:[%s13 + $0x640] sm:$0xff]
    %v2606 = vld [vmem:[%s13 + $0x648] sm:$0xff]
    %v2607 = vld [vmem:[%s13 + $0x650] sm:$0xff]
    %v2608 = vld [vmem:[%s13 + $0x658] sm:$0xff]
    %v2609 = vld [vmem:[%s13 + $0x660] sm:$0xff]
    %v2610 = vld [vmem:[%s13 + $0x668] sm:$0xff]
    %v2611 = vld [vmem:[%s13 + $0x670] sm:$0xff]
    %v2612 = vld [vmem:[%s13 + $0x678] sm:$0xff]
    %v2613 = vld [vmem:[%s13 + $0x680] sm:$0xff]
    %v2614 = vld [vmem:[%s13 + $0x688] sm:$0xff]
    %v2615 = vld [vmem:[%s13 + $0x690] sm:$0xff]
    %v2616 = vld [vmem:[%s13 + $0x698] sm:$0xff]
    %v2617 = vld [vmem:[%s13 + $0x6a0] sm:$0xff]
    %v2618 = vld [vmem:[%s13 + $0x6a8] sm:$0xff]
    %v2619 = vld [vmem:[%s13 + $0x6b0] sm:$0xff]
    %v2620 = vld [vmem:[%s13 + $0x6b8] sm:$0xff]
    %v2621 = vld [vmem:[%s13 + $0x6c0] sm:$0xff]
    %v2622 = vld [vmem:[%s13 + $0x6c8] sm:$0xff]
    %v2623 = vld [vmem:[%s13 + $0x6d0] sm:$0xff]
    %v2624 = vld [vmem:[%s13 + $0x6d8] sm:$0xff]
    %v2625 = vld [vmem:[%s13 + $0x6e0] sm:$0xff]
    %v2626 = vld [vmem:[%s13 + $0x6e8] sm:$0xff]
    %v2627 = vld [vmem:[%s13 + $0x6f0] sm:$0xff]
    %v2628 = vld [vmem:[%s13 + $0x6f8] sm:$0xff]
    %v2629 = vld [vmem:[%s13 + $0x700] sm:$0xff]
    %v2630 = vld [vmem:[%s13 + $0x708] sm:$0xff]
    %v2631 = vld [vmem:[%s13 + $0x710] sm:$0xff]
    %v2632 = vld [vmem:[%s13 + $0x718] sm:$0xff]
    %v2633 = vld [vmem:[%s13 + $0x720] sm:$0xff]
    %v2634 = vld [vmem:[%s13 + $0x728] sm:$0xff]
    %v2635 = vld [vmem:[%s13 + $0x730] sm:$0xff]
    %v2636 = vld [vmem:[%s13 + $0x738] sm:$0xff]
    %v2637 = vld [vmem:[%s13 + $0x740] sm:$0xff]
    %v2638 = vld [vmem:[%s13 + $0x748] sm:$0xff]
    %v2639 = vld [vmem:[%s13 + $0x750] sm:$0xff]
    %v2640 = vld [vmem:[%s13 + $0x758] sm:$0xff]
    %v2641 = vld [vmem:[%s13 + $0x760] sm:$0xff]
    %v2642 = vld [vmem:[%s13 + $0x768] sm:$0xff]
    %v2643 = vld [vmem:[%s13 + $0x770] sm:$0xff]
    %v2644 = vld [vmem:[%s13 + $0x778] sm:$0xff]
    %v2645 = vld [vmem:[%s13 + $0x780] sm:$0xff]
    %v2646 = vld [vmem:[%s13 + $0x788] sm:$0xff]
    %v2647 = vld [vmem:[%s13 + $0x790] sm:$0xff]
    %v2648 = vld [vmem:[%s13 + $0x798] sm:$0xff]
    %v2649 = vld [vmem:[%s13 + $0x7a0] sm:$0xff]
    %v2650 = vld [vmem:[%s13 + $0x7a8] sm:$0xff]
    %v2651 = vld [vmem:[%s13 + $0x7b0] sm:$0xff]
    %v2652 = vld [vmem:[%s13 + $0x7b8] sm:$0xff]
    %v2653 = vld [vmem:[%s13 + $0x7c0] sm:$0xff]
    %v2654 = vld [vmem:[%s13 + $0x7c8] sm:$0xff]
    %v2655 = vld [vmem:[%s13 + $0x7d0] sm:$0xff]
    %v2656 = vld [vmem:[%s13 + $0x7d8] sm:$0xff]
    %v2657 = vld [vmem:[%s13 + $0x7e0] sm:$0xff]
    %v2658 = vld [vmem:[%s13 + $0x7e8] sm:$0xff]
    %v2659 = vld [vmem:[%s13 + $0x7f0] sm:$0xff]
    %v2660 = vld [vmem:[%s13 + $0x7f8] sm:$0xff]
    %v2661 = vld [vmem:[%s13 + $0x800] sm:$0xff]
    %v2662 = vld [vmem:[%s13 + $0x808] sm:$0xff]
    %v2663 = vld [vmem:[%s13 + $0x810] sm:$0xff]
    %v2664 = vld [vmem:[%s13 + $0x818] sm:$0xff]
    %v2665 = vld [vmem:[%s13 + $0x820] sm:$0xff]
    %v2666 = vld [vmem:[%s13 + $0x828] sm:$0xff]
    %v2667 = vld [vmem:[%s13 + $0x830] sm:$0xff]
    %v2668 = vld [vmem:[%s13 + $0x838] sm:$0xff]
    %v2669 = vld [vmem:[%s13 + $0x840] sm:$0xff]
    %v2670 = vld [vmem:[%s13 + $0x848] sm:$0xff]
    %v2671 = vld [vmem:[%s13 + $0x850] sm:$0xff]
    %v2672 = vld [vmem:[%s13 + $0x858] sm:$0xff]
    %v2673 = vld [vmem:[%s13 + $0x860] sm:$0xff]
    %v2674 = vld [vmem:[%s13 + $0x868] sm:$0xff]
    %v2675 = vld [vmem:[%s13 + $0x870] sm:$0xff]
    %v2676 = vld [vmem:[%s13 + $0x878] sm:$0xff]
    %v2677 = vld [vmem:[%s13 + $0x880] sm:$0xff]
    %v2678 = vld [vmem:[%s13 + $0x888] sm:$0xff]
    %v2679 = vld [vmem:[%s13 + $0x890] sm:$0xff]
    %v2680 = vld [vmem:[%s13 + $0x898] sm:$0xff]
    %v2681 = vld [vmem:[%s13 + $0x8a0] sm:$0xff]
    %v2682 = vld [vmem:[%s13 + $0x8a8] sm:$0xff]
    %v2683 = vld [vmem:[%s13 + $0x8b0] sm:$0xff]
    %v2684 = vld [vmem:[%s13 + $0x8b8] sm:$0xff]
    %v2685 = vld [vmem:[%s13 + $0x8c0] sm:$0xff]
    %v2686 = vld [vmem:[%s13 + $0x8c8] sm:$0xff]
    %v2687 = vld [vmem:[%s13 + $0x8d0] sm:$0xff]
    %v2688 = vld [vmem:[%s13 + $0x8d8] sm:$0xff]
    %v2689 = vld [vmem:[%s13 + $0x8e0] sm:$0xff]
    %v2690 = vld [vmem:[%s13 + $0x8e8] sm:$0xff]
    %v2691 = vld [vmem:[%s13 + $0x8f0] sm:$0xff]
    %v2692 = vld [vmem:[%s13 + $0x8f8] sm:$0xff]
    %v2693 = vld [vmem:[%s13 + $0x900] sm:$0xff]
    %v2694 = vld [vmem:[%s13 + $0x908] sm:$0xff]
    %v2695 = vld [vmem:[%s13 + $0x910] sm:$0xff]
    %v2696 = vld [vmem:[%s13 + $0x918] sm:$0xff]
    %v2697 = vld [vmem:[%s13 + $0x920] sm:$0xff]
    %v2698 = vld [vmem:[%s13 + $0x928] sm:$0xff]
    %v2699 = vld [vmem:[%s13 + $0x930] sm:$0xff]
    %v2700 = vld [vmem:[%s13 + $0x938] sm:$0xff]
    %v2701 = vld [vmem:[%s13 + $0x940] sm:$0xff]
    %v2702 = vld [vmem:[%s13 + $0x948] sm:$0xff]
    %v2703 = vld [vmem:[%s13 + $0x950] sm:$0xff]
    %v2704 = vld [vmem:[%s13 + $0x958] sm:$0xff]
    %v2705 = vld [vmem:[%s13 + $0x960] sm:$0xff]
    %v2706 = vld [vmem:[%s13 + $0x968] sm:$0xff]
    %v2707 = vld [vmem:[%s13 + $0x970] sm:$0xff]
    %v2708 = vld [vmem:[%s13 + $0x978] sm:$0xff]
    %v2709 = vld [vmem:[%s13 + $0x980] sm:$0xff]
    %v2710 = vld [vmem:[%s13 + $0x988] sm:$0xff]
    %v2711 = vld [vmem:[%s13 + $0x990] sm:$0xff]
    %v2712 = vld [vmem:[%s13 + $0x998] sm:$0xff]
    %v2713 = vld [vmem:[%s13 + $0x9a0] sm:$0xff]
    %v2714 = vld [vmem:[%s13 + $0x9a8] sm:$0xff]
    %v2715 = vld [vmem:[%s13 + $0x9b0] sm:$0xff]
    %v2716 = vld [vmem:[%s13 + $0x9b8] sm:$0xff]
    %v2717 = vld [vmem:[%s13 + $0x9c0] sm:$0xff]
    %v2718 = vld [vmem:[%s13 + $0x9c8] sm:$0xff]
    %v2719 = vld [vmem:[%s13 + $0x9d0] sm:$0xff]
    %v2720 = vld [vmem:[%s13 + $0x9d8] sm:$0xff]
    %v2721 = vld [vmem:[%s13 + $0x9e0] sm:$0xff]
    %v2722 = vld [vmem:[%s13 + $0x9e8] sm:$0xff]
    %v2723 = vld [vmem:[%s13 + $0x9f0] sm:$0xff]
    %v2724 = vld [vmem:[%s13 + $0x9f8] sm:$0xff]
    %v2725 = vld [vmem:[%s13 + $0xa00] sm:$0xff]
    %v2726 = vld [vmem:[%s13 + $0xa08] sm:$0xff]
    %v2727 = vld [vmem:[%s13 + $0xa10] sm:$0xff]
    %v2728 = vld [vmem:[%s13 + $0xa18] sm:$0xff]
    %v2729 = vld [vmem:[%s13 + $0xa20] sm:$0xff]
    %v2730 = vld [vmem:[%s13 + $0xa28] sm:$0xff]
    %v2731 = vld [vmem:[%s13 + $0xa30] sm:$0xff]
    %v2732 = vld [vmem:[%s13 + $0xa38] sm:$0xff]
    %v2733 = vld [vmem:[%s13 + $0xa40] sm:$0xff]
    %v2734 = vld [vmem:[%s13 + $0xa48] sm:$0xff]
    %v2735 = vld [vmem:[%s13 + $0xa50] sm:$0xff]
    %v2736 = vld [vmem:[%s13 + $0xa58] sm:$0xff]
    %v2737 = vld [vmem:[%s13 + $0xa60] sm:$0xff]
    %v2738 = vld [vmem:[%s13 + $0xa68] sm:$0xff]
    %v2739 = vld [vmem:[%s13 + $0xa70] sm:$0xff]
    %v2740 = vld [vmem:[%s13 + $0xa78] sm:$0xff]
    %v2741 = vld [vmem:[%s13 + $0xa80] sm:$0xff]
    %v2742 = vld [vmem:[%s13 + $0xa88] sm:$0xff]
    %v2743 = vld [vmem:[%s13 + $0xa90] sm:$0xff]
    %v2744 = vld [vmem:[%s13 + $0xa98] sm:$0xff]
    %v2745 = vld [vmem:[%s13 + $0xaa0] sm:$0xff]
    %v2746 = vld [vmem:[%s13 + $0xaa8] sm:$0xff]
    %v2747 = vld [vmem:[%s13 + $0xab0] sm:$0xff]
    %v2748 = vld [vmem:[%s13 + $0xab8] sm:$0xff]
    %v2749 = vld [vmem:[%s13 + $0xac0] sm:$0xff]
    %v2750 = vld [vmem:[%s13 + $0xac8] sm:$0xff]
    %v2751 = vld [vmem:[%s13 + $0xad0] sm:$0xff]
    %v2752 = vld [vmem:[%s13 + $0xad8] sm:$0xff]
    %v2753 = vld [vmem:[%s13 + $0xae0] sm:$0xff]
    %v2754 = vld [vmem:[%s13 + $0xae8] sm:$0xff]
    %v2755 = vld [vmem:[%s13 + $0xaf0] sm:$0xff]
    %v2756 = vld [vmem:[%s13 + $0xaf8] sm:$0xff]
    %v2757 = vld [vmem:[%s13 + $0xb00] sm:$0xff]
    %v2758 = vld [vmem:[%s13 + $0xb08] sm:$0xff]
    %v2759 = vld [vmem:[%s13 + $0xb10] sm:$0xff]
    %v2760 = vld [vmem:[%s13 + $0xb18] sm:$0xff]
    %v2761 = vld [vmem:[%s13 + $0xb20] sm:$0xff]
    %v2762 = vld [vmem:[%s13 + $0xb28] sm:$0xff]
    %v2763 = vld [vmem:[%s13 + $0xb30] sm:$0xff]
    %v2764 = vld [vmem:[%s13 + $0xb38] sm:$0xff]
    %v2765 = vld [vmem:[%s13 + $0xb40] sm:$0xff]
    %v2766 = vld [vmem:[%s13 + $0xb48] sm:$0xff]
    %v2767 = vld [vmem:[%s13 + $0xb50] sm:$0xff]
    %v2768 = vld [vmem:[%s13 + $0xb58] sm:$0xff]
    %v2769 = vld [vmem:[%s13 + $0xb60] sm:$0xff]
    %v2770 = vld [vmem:[%s13 + $0xb68] sm:$0xff]
    %v2771 = vld [vmem:[%s13 + $0xb70] sm:$0xff]
    %v2772 = vld [vmem:[%s13 + $0xb78] sm:$0xff]
    %v2773 = vld [vmem:[%s13 + $0xb80] sm:$0xff]
    %v2774 = vld [vmem:[%s13 + $0xb88] sm:$0xff]
    %v2775 = vld [vmem:[%s13 + $0xb90] sm:$0xff]
    %v2776 = vld [vmem:[%s13 + $0xb98] sm:$0xff]
    %v2777 = vld [vmem:[%s13 + $0xba0] sm:$0xff]
    %v2778 = vld [vmem:[%s13 + $0xba8] sm:$0xff]
    %v2779 = vld [vmem:[%s13 + $0xbb0] sm:$0xff]
    %v2780 = vld [vmem:[%s13 + $0xbb8] sm:$0xff]
    %v2781 = vld [vmem:[%s13 + $0xbc0] sm:$0xff]
    %v2782 = vld [vmem:[%s13 + $0xbc8] sm:$0xff]
    %v2783 = vld [vmem:[%s13 + $0xbd0] sm:$0xff]
    %v2784 = vld [vmem:[%s13 + $0xbd8] sm:$0xff]
    %v2785 = vld [vmem:[%s13 + $0xbe0] sm:$0xff]
    %v2786 = vld [vmem:[%s13 + $0xbe8] sm:$0xff]
    %v2787 = vld [vmem:[%s13 + $0xbf0] sm:$0xff]
    %v2788 = vld [vmem:[%s13 + $0xbf8] sm:$0xff]
    %v2789 = vld [vmem:[%s13 + $0xc00] sm:$0xff]
    %v2790 = vld [vmem:[%s13 + $0xc08] sm:$0xff]
    %v2791 = vld [vmem:[%s13 + $0xc10] sm:$0xff]
    %v2792 = vld [vmem:[%s13 + $0xc18] sm:$0xff]
    %v2793 = vld [vmem:[%s13 + $0xc20] sm:$0xff]
    %v2794 = vld [vmem:[%s13 + $0xc28] sm:$0xff]
    %v2795 = vld [vmem:[%s13 + $0xc30] sm:$0xff]
    %v2796 = vld [vmem:[%s13 + $0xc38] sm:$0xff]
    %v2797 = vld [vmem:[%s13 + $0xc40] sm:$0xff]
    %v2798 = vld [vmem:[%s13 + $0xc48] sm:$0xff]
    %v2799 = vld [vmem:[%s13 + $0xc50] sm:$0xff]
    %v2800 = vld [vmem:[%s13 + $0xc58] sm:$0xff]
    %v2801 = vld [vmem:[%s13 + $0xc60] sm:$0xff]
    %v2802 = vld [vmem:[%s13 + $0xc68] sm:$0xff]
    %v2803 = vld [vmem:[%s13 + $0xc70] sm:$0xff]
    %v2804 = vld [vmem:[%s13 + $0xc78] sm:$0xff]
    %v2805 = vld [vmem:[%s13 + $0xc80] sm:$0xff]
    %v2806 = vld [vmem:[%s13 + $0xc88] sm:$0xff]
    %v2807 = vld [vmem:[%s13 + $0xc90] sm:$0xff]
    %v2808 = vld [vmem:[%s13 + $0xc98] sm:$0xff]
    %v2809 = vld [vmem:[%s13 + $0xca0] sm:$0xff]
    %v2810 = vld [vmem:[%s13 + $0xca8] sm:$0xff]
    %v2811 = vld [vmem:[%s13 + $0xcb0] sm:$0xff]
    %v2812 = vld [vmem:[%s13 + $0xcb8] sm:$0xff]
    %v2813 = vld [vmem:[%s13 + $0xcc0] sm:$0xff]
    %v2814 = vld [vmem:[%s13 + $0xcc8] sm:$0xff]
    %v2815 = vld [vmem:[%s13 + $0xcd0] sm:$0xff]
    %v2816 = vld [vmem:[%s13 + $0xcd8] sm:$0xff]
    %v2817 = vld [vmem:[%s13 + $0xce0] sm:$0xff]
    %v2818 = vld [vmem:[%s13 + $0xce8] sm:$0xff]
    %v2819 = vld [vmem:[%s13 + $0xcf0] sm:$0xff]
    %v2820 = vld [vmem:[%s13 + $0xcf8] sm:$0xff]
    %v2821 = vld [vmem:[%s13 + $0xd00] sm:$0xff]
    %v2822 = vld [vmem:[%s13 + $0xd08] sm:$0xff]
    %v2823 = vld [vmem:[%s13 + $0xd10] sm:$0xff]
    %v2824 = vld [vmem:[%s13 + $0xd18] sm:$0xff]
    %v2825 = vld [vmem:[%s13 + $0xd20] sm:$0xff]
    %v2826 = vld [vmem:[%s13 + $0xd28] sm:$0xff]
    %v2827 = vld [vmem:[%s13 + $0xd30] sm:$0xff]
    %v2828 = vld [vmem:[%s13 + $0xd38] sm:$0xff]
    %v2829 = vld [vmem:[%s13 + $0xd40] sm:$0xff]
    %v2830 = vld [vmem:[%s13 + $0xd48] sm:$0xff]
    %v2831 = vld [vmem:[%s13 + $0xd50] sm:$0xff]
    %v2832 = vld [vmem:[%s13 + $0xd58] sm:$0xff]
    %v2833 = vld [vmem:[%s13 + $0xd60] sm:$0xff]
    %v2834 = vld [vmem:[%s13 + $0xd68] sm:$0xff]
    %v2835 = vld [vmem:[%s13 + $0xd70] sm:$0xff]
    %v2836 = vld [vmem:[%s13 + $0xd78] sm:$0xff]
    %v2837 = vld [vmem:[%s13 + $0xd80] sm:$0xff]
    %v2838 = vld [vmem:[%s13 + $0xd88] sm:$0xff]
    %v2839 = vld [vmem:[%s13 + $0xd90] sm:$0xff]
    %v2840 = vld [vmem:[%s13 + $0xd98] sm:$0xff]
    %v2841 = vld [vmem:[%s13 + $0xda0] sm:$0xff]
    %v2842 = vld [vmem:[%s13 + $0xda8] sm:$0xff]
    %v2843 = vld [vmem:[%s13 + $0xdb0] sm:$0xff]
    %v2844 = vld [vmem:[%s13 + $0xdb8] sm:$0xff]
    %v2845 = vld [vmem:[%s13 + $0xdc0] sm:$0xff]
    %v2846 = vld [vmem:[%s13 + $0xdc8] sm:$0xff]
    %v2847 = vld [vmem:[%s13 + $0xdd0] sm:$0xff]
    %v2848 = vld [vmem:[%s13 + $0xdd8] sm:$0xff]
    %v2849 = vld [vmem:[%s13 + $0xde0] sm:$0xff]
    %v2850 = vld [vmem:[%s13 + $0xde8] sm:$0xff]
    %v2851 = vld [vmem:[%s13 + $0xdf0] sm:$0xff]
    %v2852 = vld [vmem:[%s13 + $0xdf8] sm:$0xff]
    %v2853 = vld [vmem:[%s13 + $0xe00] sm:$0xff]
    %v2854 = vld [vmem:[%s13 + $0xe08] sm:$0xff]
    %v2855 = vld [vmem:[%s13 + $0xe10] sm:$0xff]
    %v2856 = vld [vmem:[%s13 + $0xe18] sm:$0xff]
    %v2857 = vld [vmem:[%s13 + $0xe20] sm:$0xff]
    %v2858 = vld [vmem:[%s13 + $0xe28] sm:$0xff]
    %v2859 = vld [vmem:[%s13 + $0xe30] sm:$0xff]
    %v2860 = vld [vmem:[%s13 + $0xe38] sm:$0xff]
    %v2861 = vld [vmem:[%s13 + $0xe40] sm:$0xff]
    %v2862 = vld [vmem:[%s13 + $0xe48] sm:$0xff]
    %v2863 = vld [vmem:[%s13 + $0xe50] sm:$0xff]
    %v2864 = vld [vmem:[%s13 + $0xe58] sm:$0xff]
    %v2865 = vld [vmem:[%s13 + $0xe60] sm:$0xff]
    %v2866 = vld [vmem:[%s13 + $0xe68] sm:$0xff]
    %v2867 = vld [vmem:[%s13 + $0xe70] sm:$0xff]
    %v2868 = vld [vmem:[%s13 + $0xe78] sm:$0xff]
    %v2869 = vld [vmem:[%s13 + $0xe80] sm:$0xff]
    %v2870 = vld [vmem:[%s13 + $0xe88] sm:$0xff]
    %v2871 = vld [vmem:[%s13 + $0xe90] sm:$0xff]
    %v2872 = vld [vmem:[%s13 + $0xe98] sm:$0xff]
    %v2873 = vld [vmem:[%s13 + $0xea0] sm:$0xff]
    %v2874 = vld [vmem:[%s13 + $0xea8] sm:$0xff]
    %v2875 = vld [vmem:[%s13 + $0xeb0] sm:$0xff]
    %v2876 = vld [vmem:[%s13 + $0xeb8] sm:$0xff]
    %v2877 = vld [vmem:[%s13 + $0xec0] sm:$0xff]
    %v2878 = vld [vmem:[%s13 + $0xec8] sm:$0xff]
    %v2879 = vld [vmem:[%s13 + $0xed0] sm:$0xff]
    %v2880 = vld [vmem:[%s13 + $0xed8] sm:$0xff]
    %v2881 = vld [vmem:[%s13 + $0xee0] sm:$0xff]
    %v2882 = vld [vmem:[%s13 + $0xee8] sm:$0xff]
    %v2883 = vld [vmem:[%s13 + $0xef0] sm:$0xff]
    %v2884 = vld [vmem:[%s13 + $0xef8] sm:$0xff]
    %v2885 = vld [vmem:[%s13 + $0xf00] sm:$0xff]
    %v2886 = vld [vmem:[%s13 + $0xf08] sm:$0xff]
    %v2887 = vld [vmem:[%s13 + $0xf10] sm:$0xff]
    %v2888 = vld [vmem:[%s13 + $0xf18] sm:$0xff]
    %v2889 = vld [vmem:[%s13 + $0xf20] sm:$0xff]
    %v2890 = vld [vmem:[%s13 + $0xf28] sm:$0xff]
    %v2891 = vld [vmem:[%s13 + $0xf30] sm:$0xff]
    %v2892 = vld [vmem:[%s13 + $0xf38] sm:$0xff]
    %v2893 = vld [vmem:[%s13 + $0xf40] sm:$0xff]
    %v2894 = vld [vmem:[%s13 + $0xf48] sm:$0xff]
    %v2895 = vld [vmem:[%s13 + $0xf50] sm:$0xff]
    %v2896 = vld [vmem:[%s13 + $0xf58] sm:$0xff]
    %v2897 = vld [vmem:[%s13 + $0xf60] sm:$0xff]
    %v2898 = vld [vmem:[%s13 + $0xf68] sm:$0xff]
    %v2899 = vld [vmem:[%s13 + $0xf70] sm:$0xff]
    %v2900 = vld [vmem:[%s13 + $0xf78] sm:$0xff]
    %v2901 = vld [vmem:[%s13 + $0xf80] sm:$0xff]
    %v2902 = vld [vmem:[%s13 + $0xf88] sm:$0xff]
    %v2903 = vld [vmem:[%s13 + $0xf90] sm:$0xff]
    %v2904 = vld [vmem:[%s13 + $0xf98] sm:$0xff]
    %v2905 = vld [vmem:[%s13 + $0xfa0] sm:$0xff]
    %v2906 = vld [vmem:[%s13 + $0xfa8] sm:$0xff]
    %v2907 = vld [vmem:[%s13 + $0xfb0] sm:$0xff]
    %v2908 = vld [vmem:[%s13 + $0xfb8] sm:$0xff]
    %v2909 = vld [vmem:[%s13 + $0xfc0] sm:$0xff]
    %v2910 = vld [vmem:[%s13 + $0xfc8] sm:$0xff]
    %v2911 = vld [vmem:[%s13 + $0xfd0] sm:$0xff]
    %v2912 = vld [vmem:[%s13 + $0xfd8] sm:$0xff]
    %v2913 = vld [vmem:[%s13 + $0xfe0] sm:$0xff]
    %v2914 = vld [vmem:[%s13 + $0xfe8] sm:$0xff]
    %v2915 = vld [vmem:[%s13 + $0xff0] sm:$0xff]
    %v2916 = vld [vmem:[%s13 + $0xff8] sm:$0xff]
    %v2917 = vld [vmem:[%s13 + $0x1000] sm:$0xff]
    %v2918 = vld [vmem:[%s13 + $0x1008] sm:$0xff]
    %v2919 = vld [vmem:[%s13 + $0x1010] sm:$0xff]
    %v2920 = vld [vmem:[%s13 + $0x1018] sm:$0xff]
    %v2921 = vld [vmem:[%s13 + $0x1020] sm:$0xff]
    %v2922 = vld [vmem:[%s13 + $0x1028] sm:$0xff]
    %v2923 = vld [vmem:[%s13 + $0x1030] sm:$0xff]
    %v2924 = vld [vmem:[%s13 + $0x1038] sm:$0xff]
    %v2925 = vld [vmem:[%s13 + $0x1040] sm:$0xff]
    %v2926 = vld [vmem:[%s13 + $0x1048] sm:$0xff]
    %v2927 = vld [vmem:[%s13 + $0x1050] sm:$0xff]
    %v2928 = vld [vmem:[%s13 + $0x1058] sm:$0xff]
    %v2929 = vld [vmem:[%s13 + $0x1060] sm:$0xff]
    %v2930 = vld [vmem:[%s13 + $0x1068] sm:$0xff]
    %v2931 = vld [vmem:[%s13 + $0x1070] sm:$0xff]
    %v2932 = vld [vmem:[%s13 + $0x1078] sm:$0xff]
    %v2933 = vld [vmem:[%s13 + $0x1080] sm:$0xff]
    %v2934 = vld [vmem:[%s13 + $0x1088] sm:$0xff]
    %v2935 = vld [vmem:[%s13 + $0x1090] sm:$0xff]
    %v2936 = vld [vmem:[%s13 + $0x1098] sm:$0xff]
    %v2937 = vld [vmem:[%s13 + $0x10a0] sm:$0xff]
    %v2938 = vld [vmem:[%s13 + $0x10a8] sm:$0xff]
    %v2939 = vld [vmem:[%s13 + $0x10b0] sm:$0xff]
    %v2940 = vld [vmem:[%s13 + $0x10b8] sm:$0xff]
    %v2941 = vld [vmem:[%s13 + $0x10c0] sm:$0xff]
    %v2942 = vld [vmem:[%s13 + $0x10c8] sm:$0xff]
    %v2943 = vld [vmem:[%s13 + $0x10d0] sm:$0xff]
    %v2944 = vld [vmem:[%s13 + $0x10d8] sm:$0xff]
    %v2945 = vld [vmem:[%s13 + $0x10e0] sm:$0xff]
    %v2946 = vld [vmem:[%s13 + $0x10e8] sm:$0xff]
    %v2947 = vld [vmem:[%s13 + $0x10f0] sm:$0xff]
    %v2948 = vld [vmem:[%s13 + $0x10f8] sm:$0xff]
    %v2949 = vld [vmem:[%s13 + $0x1100] sm:$0xff]
    %v2950 = vld [vmem:[%s13 + $0x1108] sm:$0xff]
    %v2951 = vld [vmem:[%s13 + $0x1110] sm:$0xff]
    %v2952 = vld [vmem:[%s13 + $0x1118] sm:$0xff]
    %v2953 = vld [vmem:[%s13 + $0x1120] sm:$0xff]
    %v2954 = vld [vmem:[%s13 + $0x1128] sm:$0xff]
    %v2955 = vld [vmem:[%s13 + $0x1130] sm:$0xff]
    %v2956 = vld [vmem:[%s13 + $0x1138] sm:$0xff]
    %v2957 = vld [vmem:[%s13 + $0x1140] sm:$0xff]
    %v2958 = vld [vmem:[%s13 + $0x1148] sm:$0xff]
    %v2959 = vld [vmem:[%s13 + $0x1150] sm:$0xff]
    %v2960 = vld [vmem:[%s13 + $0x1158] sm:$0xff]
    %v2961 = vld [vmem:[%s13 + $0x1160] sm:$0xff]
    %v2962 = vld [vmem:[%s13 + $0x1168] sm:$0xff]
    %v2963 = vld [vmem:[%s13 + $0x1170] sm:$0xff]
    %v2964 = vld [vmem:[%s13 + $0x1178] sm:$0xff]
    %v2965 = vld [vmem:[%s13 + $0x1180] sm:$0xff]
    %v2966 = vld [vmem:[%s13 + $0x1188] sm:$0xff]
    %v2967 = vld [vmem:[%s13 + $0x1190] sm:$0xff]
    %v2968 = vld [vmem:[%s13 + $0x1198] sm:$0xff]
    %v2969 = vld [vmem:[%s13 + $0x11a0] sm:$0xff]
    %v2970 = vld [vmem:[%s13 + $0x11a8] sm:$0xff]
    %v2971 = vld [vmem:[%s13 + $0x11b0] sm:$0xff]
    %v2972 = vld [vmem:[%s13 + $0x11b8] sm:$0xff]
    %v2973 = vld [vmem:[%s13 + $0x11c0] sm:$0xff]
    %v2974 = vld [vmem:[%s13 + $0x11c8] sm:$0xff]
    %v2975 = vld [vmem:[%s13 + $0x11d0] sm:$0xff]
    %v2976 = vld [vmem:[%s13 + $0x11d8] sm:$0xff]
    %v2977 = vld [vmem:[%s13 + $0x11e0] sm:$0xff]
    %v2978 = vld [vmem:[%s13 + $0x11e8] sm:$0xff]
    %v2979 = vld [vmem:[%s13 + $0x11f0] sm:$0xff]
    %v2980 = vld [vmem:[%s13 + $0x11f8] sm:$0xff]
    %v2981 = vld [vmem:[%s13 + $0x1200] sm:$0xff]
    %v2982 = vld [vmem:[%s13 + $0x1208] sm:$0xff]
    %v2983 = vld [vmem:[%s13 + $0x1210] sm:$0xff]
    %v2984 = vld [vmem:[%s13 + $0x1218] sm:$0xff]
    %v2985 = vld [vmem:[%s13 + $0x1220] sm:$0xff]
    %v2986 = vld [vmem:[%s13 + $0x1228] sm:$0xff]
    %v2987 = vld [vmem:[%s13 + $0x1230] sm:$0xff]
    %v2988 = vld [vmem:[%s13 + $0x1238] sm:$0xff]
    %v2989 = vld [vmem:[%s13 + $0x1240] sm:$0xff]
    %v2990 = vld [vmem:[%s13 + $0x1248] sm:$0xff]
    %v2991 = vld [vmem:[%s13 + $0x1250] sm:$0xff]
    %v2992 = vld [vmem:[%s13 + $0x1258] sm:$0xff]
    %v2993 = vld [vmem:[%s13 + $0x1260] sm:$0xff]
    %v2994 = vld [vmem:[%s13 + $0x1268] sm:$0xff]
    %v2995 = vld [vmem:[%s13 + $0x1270] sm:$0xff]
    %v2996 = vld [vmem:[%s13 + $0x1278] sm:$0xff]
    %v2997 = vld [vmem:[%s13 + $0x1280] sm:$0xff]
    %v2998 = vld [vmem:[%s13 + $0x1288] sm:$0xff]
    %v2999 = vld [vmem:[%s13 + $0x1290] sm:$0xff]
    %v3000 = vld [vmem:[%s13 + $0x1298] sm:$0xff]
    %v3001 = vld [vmem:[%s13 + $0x12a0] sm:$0xff]
    %v3002 = vld [vmem:[%s13 + $0x12a8] sm:$0xff]
    %v3003 = vld [vmem:[%s13 + $0x12b0] sm:$0xff]
    %v3004 = vld [vmem:[%s13 + $0x12b8] sm:$0xff]
    %v3005 = vld [vmem:[%s13 + $0x12c0] sm:$0xff]
    %v3006 = vld [vmem:[%s13 + $0x12c8] sm:$0xff]
    %v3007 = vld [vmem:[%s13 + $0x12d0] sm:$0xff]
    %v3008 = vld [vmem:[%s13 + $0x12d8] sm:$0xff]
    %v3009 = vld [vmem:[%s13 + $0x12e0] sm:$0xff]
    %v3010 = vld [vmem:[%s13 + $0x12e8] sm:$0xff]
    %v3011 = vld [vmem:[%s13 + $0x12f0] sm:$0xff]
    %v3012 = vld [vmem:[%s13 + $0x12f8] sm:$0xff]
    %v3013 = vld [vmem:[%s13 + $0x1300] sm:$0xff]
    %v3014 = vld [vmem:[%s13 + $0x1308] sm:$0xff]
    %v3015 = vld [vmem:[%s13 + $0x1310] sm:$0xff]
    %v3016 = vld [vmem:[%s13 + $0x1318] sm:$0xff]
    %v3017 = vld [vmem:[%s13 + $0x1320] sm:$0xff]
    %v3018 = vld [vmem:[%s13 + $0x1328] sm:$0xff]
    %v3019 = vld [vmem:[%s13 + $0x1330] sm:$0xff]
    %v3020 = vld [vmem:[%s13 + $0x1338] sm:$0xff]
    %v3021 = vld [vmem:[%s13 + $0x1340] sm:$0xff]
    %v3022 = vld [vmem:[%s13 + $0x1348] sm:$0xff]
    %v3023 = vld [vmem:[%s13 + $0x1350] sm:$0xff]
    %v3024 = vld [vmem:[%s13 + $0x1358] sm:$0xff]
    %v3025 = vld [vmem:[%s13 + $0x1360] sm:$0xff]
    %v3026 = vld [vmem:[%s13 + $0x1368] sm:$0xff]
    %v3027 = vld [vmem:[%s13 + $0x1370] sm:$0xff]
    %v3028 = vld [vmem:[%s13 + $0x1378] sm:$0xff]
    %v3029 = vld [vmem:[%s13 + $0x1380] sm:$0xff]
    %v3030 = vld [vmem:[%s13 + $0x1388] sm:$0xff]
    %v3031 = vld [vmem:[%s13 + $0x1390] sm:$0xff]
    %v3032 = vld [vmem:[%s13 + $0x1398] sm:$0xff]
    %v3033 = vld [vmem:[%s13 + $0x13a0] sm:$0xff]
    %v3034 = vld [vmem:[%s13 + $0x13a8] sm:$0xff]
    %v3035 = vld [vmem:[%s13 + $0x13b0] sm:$0xff]
    %v3036 = vld [vmem:[%s13 + $0x13b8] sm:$0xff]
    %v3037 = vld [vmem:[%s13 + $0x13c0] sm:$0xff]
    %v3038 = vld [vmem:[%s13 + $0x13c8] sm:$0xff]
    %v3039 = vld [vmem:[%s13 + $0x13d0] sm:$0xff]
    %v3040 = vld [vmem:[%s13 + $0x13d8] sm:$0xff]
    %v3041 = vld [vmem:[%s13 + $0x13e0] sm:$0xff]
    %v3042 = vld [vmem:[%s13 + $0x13e8] sm:$0xff]
    %v3043 = vld [vmem:[%s13 + $0x13f0] sm:$0xff]
    %v3044 = vld [vmem:[%s13 + $0x13f8] sm:$0xff]
    %v3045 = vld [vmem:[%s13 + $0x1400] sm:$0xff]
    %v3046 = vld [vmem:[%s13 + $0x1408] sm:$0xff]
    %v3047 = vld [vmem:[%s13 + $0x1410] sm:$0xff]
    %v3048 = vld [vmem:[%s13 + $0x1418] sm:$0xff]
    %v3049 = vld [vmem:[%s13 + $0x1420] sm:$0xff]
    %v3050 = vld [vmem:[%s13 + $0x1428] sm:$0xff]
    %v3051 = vld [vmem:[%s13 + $0x1430] sm:$0xff]
    %v3052 = vld [vmem:[%s13 + $0x1438] sm:$0xff]
    %v3053 = vld [vmem:[%s13 + $0x1440] sm:$0xff]
    %v3054 = vld [vmem:[%s13 + $0x1448] sm:$0xff]
    %v3055 = vld [vmem:[%s13 + $0x1450] sm:$0xff]
    %v3056 = vld [vmem:[%s13 + $0x1458] sm:$0xff]
    %v3057 = vld [vmem:[%s13 + $0x1460] sm:$0xff]
    %v3058 = vld [vmem:[%s13 + $0x1468] sm:$0xff]
    %v3059 = vld [vmem:[%s13 + $0x1470] sm:$0xff]
    %v3060 = vld [vmem:[%s13 + $0x1478] sm:$0xff]
    %v3061 = vld [vmem:[%s13 + $0x1480] sm:$0xff]
    %v3062 = vld [vmem:[%s13 + $0x1488] sm:$0xff]
    %v3063 = vld [vmem:[%s13 + $0x1490] sm:$0xff]
    %v3064 = vld [vmem:[%s13 + $0x1498] sm:$0xff]
    %v3065 = vld [vmem:[%s13 + $0x14a0] sm:$0xff]
    %v3066 = vld [vmem:[%s13 + $0x14a8] sm:$0xff]
    %v3067 = vld [vmem:[%s13 + $0x14b0] sm:$0xff]
    %v3068 = vld [vmem:[%s13 + $0x14b8] sm:$0xff]
    %v3069 = vld [vmem:[%s13 + $0x14c0] sm:$0xff]
    %v3070 = vld [vmem:[%s13 + $0x14c8] sm:$0xff]
    %v3071 = vld [vmem:[%s13 + $0x14d0] sm:$0xff]
    %v3072 = vld [vmem:[%s13 + $0x14d8] sm:$0xff]
    %v3073 = vld [vmem:[%s13 + $0x14e0] sm:$0xff]
    %v3074 = vld [vmem:[%s13 + $0x14e8] sm:$0xff]
    %v3075 = vld [vmem:[%s13 + $0x14f0] sm:$0xff]
    %v3076 = vld [vmem:[%s13 + $0x14f8] sm:$0xff]
    %v3077 = vld [vmem:[%s13 + $0x1500] sm:$0xff]
    %v3078 = vld [vmem:[%s13 + $0x1508] sm:$0xff]
    %v3079 = vld [vmem:[%s13 + $0x1510] sm:$0xff]
    %v3080 = vld [vmem:[%s13 + $0x1518] sm:$0xff]
    %v3081 = vld [vmem:[%s13 + $0x1520] sm:$0xff]
    %v3082 = vld [vmem:[%s13 + $0x1528] sm:$0xff]
    %v3083 = vld [vmem:[%s13 + $0x1530] sm:$0xff]
    %v3084 = vld [vmem:[%s13 + $0x1538] sm:$0xff]
    %v3085 = vld [vmem:[%s13 + $0x1540] sm:$0xff]
    %v3086 = vld [vmem:[%s13 + $0x1548] sm:$0xff]
    %v3087 = vld [vmem:[%s13 + $0x1550] sm:$0xff]
    %v3088 = vld [vmem:[%s13 + $0x1558] sm:$0xff]
    %v3089 = vld [vmem:[%s13 + $0x1560] sm:$0xff]
    %v3090 = vld [vmem:[%s13 + $0x1568] sm:$0xff]
    %v3091 = vld [vmem:[%s13 + $0x1570] sm:$0xff]
    %v3092 = vld [vmem:[%s13 + $0x1578] sm:$0xff]
    %v3093 = vld [vmem:[%s13 + $0x1580] sm:$0xff]
    %v3094 = vld [vmem:[%s13 + $0x1588] sm:$0xff]
    %v3095 = vld [vmem:[%s13 + $0x1590] sm:$0xff]
    %v3096 = vld [vmem:[%s13 + $0x1598] sm:$0xff]
    %v3097 = vld [vmem:[%s13 + $0x15a0] sm:$0xff]
    %v3098 = vld [vmem:[%s13 + $0x15a8] sm:$0xff]
    %v3099 = vld [vmem:[%s13 + $0x15b0] sm:$0xff]
    %v3100 = vld [vmem:[%s13 + $0x15b8] sm:$0xff]
    %v3101 = vld [vmem:[%s13 + $0x15c0] sm:$0xff]
    %v3102 = vld [vmem:[%s13 + $0x15c8] sm:$0xff]
    %v3103 = vld [vmem:[%s13 + $0x15d0] sm:$0xff]
    %v3104 = vld [vmem:[%s13 + $0x15d8] sm:$0xff]
    %v3105 = vld [vmem:[%s13 + $0x15e0] sm:$0xff]
    %v3106 = vld [vmem:[%s13 + $0x15e8] sm:$0xff]
    %v3107 = vld [vmem:[%s13 + $0x15f0] sm:$0xff]
    %v3108 = vld [vmem:[%s13 + $0x15f8] sm:$0xff]
    %v3109 = vld [vmem:[%s13 + $0x1600] sm:$0xff]
    %v3110 = vld [vmem:[%s13 + $0x1608] sm:$0xff]
    %v3111 = vld [vmem:[%s13 + $0x1610] sm:$0xff]
    %v3112 = vld [vmem:[%s13 + $0x1618] sm:$0xff]
    %v3113 = vld [vmem:[%s13 + $0x1620] sm:$0xff]
    %v3114 = vld [vmem:[%s13 + $0x1628] sm:$0xff]
    %v3115 = vld [vmem:[%s13 + $0x1630] sm:$0xff]
    %v3116 = vld [vmem:[%s13 + $0x1638] sm:$0xff]
    %v3117 = vld [vmem:[%s13 + $0x1640] sm:$0xff]
    %v3118 = vld [vmem:[%s13 + $0x1648] sm:$0xff]
    %v3119 = vld [vmem:[%s13 + $0x1650] sm:$0xff]
    %v3120 = vld [vmem:[%s13 + $0x1658] sm:$0xff]
    %v3121 = vld [vmem:[%s13 + $0x1660] sm:$0xff]
    %v3122 = vld [vmem:[%s13 + $0x1668] sm:$0xff]
    %v3123 = vld [vmem:[%s13 + $0x1670] sm:$0xff]
    %v3124 = vld [vmem:[%s13 + $0x1678] sm:$0xff]
    %v3125 = vld [vmem:[%s13 + $0x1680] sm:$0xff]
    %v3126 = vld [vmem:[%s13 + $0x1688] sm:$0xff]
    %v3127 = vld [vmem:[%s13 + $0x1690] sm:$0xff]
    %v3128 = vld [vmem:[%s13 + $0x1698] sm:$0xff]
    %v3129 = vld [vmem:[%s13 + $0x16a0] sm:$0xff]
    %v3130 = vld [vmem:[%s13 + $0x16a8] sm:$0xff]
    %v3131 = vld [vmem:[%s13 + $0x16b0] sm:$0xff]
    %v3132 = vld [vmem:[%s13 + $0x16b8] sm:$0xff]
    %v3133 = vld [vmem:[%s13 + $0x16c0] sm:$0xff]
    %v3134 = vld [vmem:[%s13 + $0x16c8] sm:$0xff]
    %v3135 = vld [vmem:[%s13 + $0x16d0] sm:$0xff]
    %v3136 = vld [vmem:[%s13 + $0x16d8] sm:$0xff]
    %v3137 = vld [vmem:[%s13 + $0x16e0] sm:$0xff]
    %v3138 = vld [vmem:[%s13 + $0x16e8] sm:$0xff]
    %v3139 = vld [vmem:[%s13 + $0x16f0] sm:$0xff]
    %v3140 = vld [vmem:[%s13 + $0x16f8] sm:$0xff]
    %v3141 = vld [vmem:[%s13 + $0x1700] sm:$0xff]
    %v3142 = vld [vmem:[%s13 + $0x1708] sm:$0xff]
    %v3143 = vld [vmem:[%s13 + $0x1710] sm:$0xff]
    %v3144 = vld [vmem:[%s13 + $0x1718] sm:$0xff]
    %v3145 = vld [vmem:[%s13 + $0x1720] sm:$0xff]
    %v3146 = vld [vmem:[%s13 + $0x1728] sm:$0xff]
    %v3147 = vld [vmem:[%s13 + $0x1730] sm:$0xff]
    %v3148 = vld [vmem:[%s13 + $0x1738] sm:$0xff]
    %v3149 = vld [vmem:[%s13 + $0x1740] sm:$0xff]
    %v3150 = vld [vmem:[%s13 + $0x1748] sm:$0xff]
    %v3151 = vld [vmem:[%s13 + $0x1750] sm:$0xff]
    %v3152 = vld [vmem:[%s13 + $0x1758] sm:$0xff]
    %v3153 = vld [vmem:[%s13 + $0x1760] sm:$0xff]
    %v3154 = vld [vmem:[%s13 + $0x1768] sm:$0xff]
    %v3155 = vld [vmem:[%s13 + $0x1770] sm:$0xff]
    %v3156 = vld [vmem:[%s13 + $0x1778] sm:$0xff]
    %v3157 = vld [vmem:[%s13 + $0x1780] sm:$0xff]
    %v3158 = vld [vmem:[%s13 + $0x1788] sm:$0xff]
    %v3159 = vld [vmem:[%s13 + $0x1790] sm:$0xff]
    %v3160 = vld [vmem:[%s13 + $0x1798] sm:$0xff]
    %v3161 = vld [vmem:[%s13 + $0x17a0] sm:$0xff]
    %v3162 = vld [vmem:[%s13 + $0x17a8] sm:$0xff]
    %v3163 = vld [vmem:[%s13 + $0x17b0] sm:$0xff]
    %v3164 = vld [vmem:[%s13 + $0x17b8] sm:$0xff]
    %v3165 = vld [vmem:[%s13 + $0x17c0] sm:$0xff]
    %v3166 = vld [vmem:[%s13 + $0x17c8] sm:$0xff]
    %v3167 = vld [vmem:[%s13 + $0x17d0] sm:$0xff]
    %v3168 = vld [vmem:[%s13 + $0x17d8] sm:$0xff]
    %v3169 = vld [vmem:[%s13 + $0x17e0] sm:$0xff]
    %v3170 = vld [vmem:[%s13 + $0x17e8] sm:$0xff]
    %v3171 = vld [vmem:[%s13 + $0x17f0] sm:$0xff]
    %v3172 = vld [vmem:[%s13 + $0x17f8] sm:$0xff]
    %v3173 = vld [vmem:[%s14] sm:$0xff]
    %v3175 = vlaneseq
    %v3176 = vshrl.u32 %v3175, 7
    %v3177 = vsub.s32 0, %v3176
    %v3178 = vrot.slane %v3173, %v3177
    %v3179 = vlaneseq
    %v3180 = vshrl.u32 %v3179, 7
    %v3181 = vsub.s32 1, %v3180
    %v3182 = vrot.slane %v3173, %v3181
    %v3183 = vlaneseq
    %v3184 = vshrl.u32 %v3183, 7
    %v3185 = vsub.s32 2, %v3184
    %v3186 = vrot.slane %v3173, %v3185
    %v3187 = vlaneseq
    %v3188 = vshrl.u32 %v3187, 7
    %v3189 = vsub.s32 3, %v3188
    %v3190 = vrot.slane %v3173, %v3189
    %v3191 = vlaneseq
    %v3192 = vshrl.u32 %v3191, 7
    %v3193 = vsub.s32 4, %v3192
    %v3194 = vrot.slane %v3173, %v3193
    %v3195 = vlaneseq
    %v3196 = vshrl.u32 %v3195, 7
    %v3197 = vsub.s32 5, %v3196
    %v3198 = vrot.slane %v3173, %v3197
    %v3199 = vlaneseq
    %v3200 = vshrl.u32 %v3199, 7
    %v3201 = vsub.s32 6, %v3200
    %v3202 = vrot.slane %v3173, %v3201
    %v3203 = vlaneseq
    %v3204 = vshrl.u32 %v3203, 7
    %v3205 = vsub.s32 7, %v3204
    %v3206 = vrot.slane %v3173, %v3205
    %v3217 = vcombine.high %v2403, %v2403
    %v3219 = vunpack.c.l.s4 1983009808
    %v3220 = vunpack.c.0.s8 %v3219
    %v3221 = vlaneseq
    %v3222 = vshrl.u32 %v3221, 7
    %v3223 = vsub.s32 %v3220, %v3222
    %v3224 = vrot.slane %v2403, %v3223
    %v3226 = vunpack.c.l.s4 1983009808
    %v3227 = vunpack.c.0.s8 %v3226
    %v3228 = vlaneseq
    %v3229 = vshrl.u32 %v3228, 7
    %v3230 = vsub.s32 %v3227, %v3229
    %v3231 = vrot.slane %v3217, %v3230
    %v3232 = vcombine.high %v3224, %v3224
    %v3233 = vcombine.high %v3231, %v3231
    %v3235 = vunpack.c.l.s4 1983009808
    %v3236 = vunpack.c.0.s8 %v3235
    %v3237 = vlaneseq
    %v3238 = vshrl.u32 %v3237, 7
    %v3239 = vsub.s32 %v3236, %v3238
    %v3240 = vrot.slane %v2404, %v3239
    %v3241 = vcombine.high %v3240, %v3240
    %3248 = vmatprep.subr.mxu0 %v2406
    %3249 = vmatpush1.msra.mxu0 %v2405
    %3250 = vmatprep.subr.mxu0 %v2414
    %3251 = vmatpush1.msra.mxu0 %v2413
    %3252 = vmatprep.subr.mxu0 %v2422
    %3253 = vmatpush1.msra.mxu0 %v2421
    %3254 = vmatprep.subr.mxu0 %v2430
    %3255 = vmatpush1.msra.mxu0 %v2429
    %3256 = vmatprep.subr.mxu0 %v2438
    %3257 = vmatpush1.msra.mxu0 %v2437
    %3258 = vmatprep.subr.mxu0 %v2446
    %3259 = vmatpush1.msra.mxu0 %v2445
    %3260 = vmatprep.subr.mxu0 %v2454
    %3261 = vmatpush1.msra.mxu0 %v2453
    %3262 = vmatprep.subr.mxu0 %v2462
    %3263 = vmatpush1.msra.mxu0 %v2461
    %3264 = vmatprep.subr.mxu0 %v2470
    %3265 = vmatpush1.msra.mxu0 %v2469
    %3266 = vmatprep.subr.mxu0 %v2478
    %3267 = vmatpush1.msra.mxu0 %v2477
    %3268 = vmatprep.subr.mxu0 %v2486
    %3269 = vmatpush1.msra.mxu0 %v2485
    %3270 = vmatprep.subr.mxu0 %v2494
    %3271 = vmatpush1.msra.mxu0 %v2493
    %3272 = vmatprep.subr.mxu0 %v2502
    %3273 = vmatpush1.msra.mxu0 %v2501
    %3274 = vmatprep.subr.mxu0 %v2510
    %3275 = vmatpush1.msra.mxu0 %v2509
    %3276 = vmatprep.subr.mxu0 %v2518
    %3277 = vmatpush1.msra.mxu0 %v2517
    %3278 = vmatprep.subr.mxu0 %v2526
    %3279 = vmatpush1.msra.mxu0 %v2525
    %3280 = vmatprep.subr.mxu0 %v2534
    %3281 = vmatpush1.msra.mxu0 %v2533
    %3282 = vmatprep.subr.mxu0 %v2542
    %3283 = vmatpush1.msra.mxu0 %v2541
    %3284 = vmatprep.subr.mxu0 %v2550
    %3285 = vmatpush1.msra.mxu0 %v2549
    %3286 = vmatprep.subr.mxu0 %v2558
    %3287 = vmatpush1.msra.mxu0 %v2557
    %3288 = vmatprep.subr.mxu0 %v2566
    %3289 = vmatpush1.msra.mxu0 %v2565
    %3290 = vmatprep.subr.mxu0 %v2574
    %3291 = vmatpush1.msra.mxu0 %v2573
    %3292 = vmatprep.subr.mxu0 %v2582
    %3293 = vmatpush1.msra.mxu0 %v2581
    %3294 = vmatprep.subr.mxu0 %v2590
    %3295 = vmatpush1.msra.mxu0 %v2589
    %3296 = vmatprep.subr.mxu0 %v2598
    %3297 = vmatpush1.msra.mxu0 %v2597
    %3298 = vmatprep.subr.mxu0 %v2606
    %3299 = vmatpush1.msra.mxu0 %v2605
    %3300 = vmatprep.subr.mxu0 %v2614
    %3301 = vmatpush1.msra.mxu0 %v2613
    %3302 = vmatprep.subr.mxu0 %v2622
    %3303 = vmatpush1.msra.mxu0 %v2621
    %3304 = vmatprep.subr.mxu0 %v2630
    %3305 = vmatpush1.msra.mxu0 %v2629
    %3306 = vmatprep.subr.mxu0 %v2638
    %3307 = vmatpush1.msra.mxu0 %v2637
    %3308 = vmatprep.subr.mxu0 %v2646
    %3309 = vmatpush1.msra.mxu0 %v2645
    %3310 = vmatprep.subr.mxu0 %v2654
    %3311 = vmatpush1.msra.mxu0 %v2653
    %3312 = vmatprep.mubr.f32.mxu0 %v3232
    %3313 = vmatmul.mubr.f32.gmra.mrb[0].mxu0 %v3224
    %v3314 = vpop.f32.mrb[0].mxu0
    %v3315 = vadd.f32 %v3178, %v3314
    %v3316 = vpop.f32.mrb[0].mxu0
    %v3317 = vadd.f32 %v3182, %v3316
    %3318 = vdwg.mxu0
    %3319 = vmatprep.subr.mxu0 %v2662
    %3320 = vmatpush1.msra.mxu0 %v2661
    %3321 = vmatprep.subr.mxu0 %v2670
    %3322 = vmatpush1.msra.mxu0 %v2669
    %3323 = vmatprep.subr.mxu0 %v2678
    %3324 = vmatpush1.msra.mxu0 %v2677
    %3325 = vmatprep.subr.mxu0 %v2686
    %3326 = vmatpush1.msra.mxu0 %v2685
    %3327 = vmatprep.subr.mxu0 %v2694
    %3328 = vmatpush1.msra.mxu0 %v2693
    %3329 = vmatprep.subr.mxu0 %v2702
    %3330 = vmatpush1.msra.mxu0 %v2701
    %3331 = vmatprep.subr.mxu0 %v2710
    %3332 = vmatpush1.msra.mxu0 %v2709
    %3333 = vmatprep.subr.mxu0 %v2718
    %3334 = vmatpush1.msra.mxu0 %v2717
    %3335 = vmatprep.subr.mxu0 %v2726
    %3336 = vmatpush1.msra.mxu0 %v2725
    %3337 = vmatprep.subr.mxu0 %v2734
    %3338 = vmatpush1.msra.mxu0 %v2733
    %3339 = vmatprep.subr.mxu0 %v2742
    %3340 = vmatpush1.msra.mxu0 %v2741
    %3341 = vmatprep.subr.mxu0 %v2750
    %3342 = vmatpush1.msra.mxu0 %v2749
    %3343 = vmatprep.subr.mxu0 %v2758
    %3344 = vmatpush1.msra.mxu0 %v2757
    %3345 = vmatprep.subr.mxu0 %v2766
    %3346 = vmatpush1.msra.mxu0 %v2765
    %3347 = vmatprep.subr.mxu0 %v2774
    %3348 = vmatpush1.msra.mxu0 %v2773
    %3349 = vmatprep.subr.mxu0 %v2782
    %3350 = vmatpush1.msra.mxu0 %v2781
    %3351 = vmatprep.subr.mxu0 %v2790
    %3352 = vmatpush1.msra.mxu0 %v2789
    %3353 = vmatprep.subr.mxu0 %v2798
    %3354 = vmatpush1.msra.mxu0 %v2797
    %3355 = vmatprep.subr.mxu0 %v2806
    %3356 = vmatpush1.msra.mxu0 %v2805
    %3357 = vmatprep.subr.mxu0 %v2814
    %3358 = vmatpush1.msra.mxu0 %v2813
    %3359 = vmatprep.subr.mxu0 %v2822
    %3360 = vmatpush1.msra.mxu0 %v2821
    %3361 = vmatprep.subr.mxu0 %v2830
    %3362 = vmatpush1.msra.mxu0 %v2829
    %3363 = vmatprep.subr.mxu0 %v2838
    %3364 = vmatpush1.msra.mxu0 %v2837
    %3365 = vmatprep.subr.mxu0 %v2846
    %3366 = vmatpush1.msra.mxu0 %v2845
    %3367 = vmatprep.subr.mxu0 %v2854
    %3368 = vmatpush1.msra.mxu0 %v2853
    %3369 = vmatprep.subr.mxu0 %v2862
    %3370 = vmatpush1.msra.mxu0 %v2861
    %3371 = vmatprep.subr.mxu0 %v2870
    %3372 = vmatpush1.msra.mxu0 %v2869
    %3373 = vmatprep.subr.mxu0 %v2878
    %3374 = vmatpush1.msra.mxu0 %v2877
    %3375 = vmatprep.subr.mxu0 %v2886
    %3376 = vmatpush1.msra.mxu0 %v2885
    %3377 = vmatprep.subr.mxu0 %v2894
    %3378 = vmatpush1.msra.mxu0 %v2893
    %3379 = vmatprep.subr.mxu0 %v2902
    %3380 = vmatpush1.msra.mxu0 %v2901
    %3381 = vmatprep.subr.mxu0 %v2910
    %3382 = vmatpush1.msra.mxu0 %v2909
    %3383 = vmatprep.mubr.f32.mxu0 %v3233
    %3384 = vmatmul.mubr.f32.gmra.mrb[0].mxu0 %v3231
    %v3385 = vpop.f32.mrb[0].mxu0
    %v3386 = vadd.f32 %v3315, %v3385
    %v3387 = vpop.f32.mrb[0].mxu0
    %v3388 = vadd.f32 %v3317, %v3387
    %3389 = vdwg.mxu0
    %3390 = vmatprep.subr.mxu0 %v2918
    %3391 = vmatpush1.msra.mxu0 %v2917
    %3392 = vmatprep.subr.mxu0 %v2926
    %3393 = vmatpush1.msra.mxu0 %v2925
    %3394 = vmatprep.subr.mxu0 %v2934
    %3395 = vmatpush1.msra.mxu0 %v2933
    %3396 = vmatprep.subr.mxu0 %v2942
    %3397 = vmatpush1.msra.mxu0 %v2941
    %3398 = vmatprep.subr.mxu0 %v2950
    %3399 = vmatpush1.msra.mxu0 %v2949
    %3400 = vmatprep.subr.mxu0 %v2958
    %3401 = vmatpush1.msra.mxu0 %v2957
    %3402 = vmatprep.subr.mxu0 %v2966
    %3403 = vmatpush1.msra.mxu0 %v2965
    %3404 = vmatprep.subr.mxu0 %v2974
    %3405 = vmatpush1.msra.mxu0 %v2973
    %3406 = vmatprep.subr.mxu0 %v2982
    %3407 = vmatpush1.msra.mxu0 %v2981
    %3408 = vmatprep.subr.mxu0 %v2990
    %3409 = vmatpush1.msra.mxu0 %v2989
    %3410 = vmatprep.subr.mxu0 %v2998
    %3411 = vmatpush1.msra.mxu0 %v2997
    %3412 = vmatprep.subr.mxu0 %v3006
    %3413 = vmatpush1.msra.mxu0 %v3005
    %3414 = vmatprep.subr.mxu0 %v3014
    %3415 = vmatpush1.msra.mxu0 %v3013
    %3416 = vmatprep.subr.mxu0 %v3022
    %3417 = vmatpush1.msra.mxu0 %v3021
    %3418 = vmatprep.subr.mxu0 %v3030
    %3419 = vmatpush1.msra.mxu0 %v3029
    %3420 = vmatprep.subr.mxu0 %v3038
    %3421 = vmatpush1.msra.mxu0 %v3037
    %3422 = vmatprep.subr.mxu0 %v3046
    %3423 = vmatpush1.msra.mxu0 %v3045
    %3424 = vmatprep.subr.mxu0 %v3054
    %3425 = vmatpush1.msra.mxu0 %v3053
    %3426 = vmatprep.subr.mxu0 %v3062
    %3427 = vmatpush1.msra.mxu0 %v3061
    %3428 = vmatprep.subr.mxu0 %v3070
    %3429 = vmatpush1.msra.mxu0 %v3069
    %3430 = vmatprep.subr.mxu0 %v3078
    %3431 = vmatpush1.msra.mxu0 %v3077
    %3432 = vmatprep.subr.mxu0 %v3086
    %3433 = vmatpush1.msra.mxu0 %v3085
    %3434 = vmatprep.subr.mxu0 %v3094
    %3435 = vmatpush1.msra.mxu0 %v3093
    %3436 = vmatprep.subr.mxu0 %v3102
    %3437 = vmatpush1.msra.mxu0 %v3101
    %3438 = vmatprep.subr.mxu0 %v3110
    %3439 = vmatpush1.msra.mxu0 %v3109
    %3440 = vmatprep.subr.mxu0 %v3118
    %3441 = vmatpush1.msra.mxu0 %v3117
    %3442 = vmatprep.subr.mxu0 %v3126
    %3443 = vmatpush1.msra.mxu0 %v3125
    %3444 = vmatprep.subr.mxu0 %v3134
    %3445 = vmatpush1.msra.mxu0 %v3133
    %3446 = vmatprep.subr.mxu0 %v3142
    %3447 = vmatpush1.msra.mxu0 %v3141
    %3448 = vmatprep.subr.mxu0 %v3150
    %3449 = vmatpush1.msra.mxu0 %v3149
    %3450 = vmatprep.subr.mxu0 %v3158
    %3451 = vmatpush1.msra.mxu0 %v3157
    %3452 = vmatprep.subr.mxu0 %v3166
    %3453 = vmatpush1.msra.mxu0 %v3165
    %3454 = vmatprep.mubr.f32.mxu0 %v3241
    %3455 = vmatmul.mubr.f32.gmra.mrb[0].mxu0 %v3240
    %v3456 = vpop.f32.mrb[0].mxu0
    %v3457 = vadd.f32 %v3386, %v3456
    %v3458 = vpop.f32.mrb[0].mxu0
    %v3459 = vadd.f32 %v3388, %v3458
    %3460 = vdwg.mxu0
    %3461 = vmatprep.subr.mxu0 %v2408
    %3462 = vmatpush1.msra.mxu0 %v2407
    %3463 = vmatprep.subr.mxu0 %v2416
    %3464 = vmatpush1.msra.mxu0 %v2415
    %3465 = vmatprep.subr.mxu0 %v2424
    %3466 = vmatpush1.msra.mxu0 %v2423
    %3467 = vmatprep.subr.mxu0 %v2432
    %3468 = vmatpush1.msra.mxu0 %v2431
    %3469 = vmatprep.subr.mxu0 %v2440
    %3470 = vmatpush1.msra.mxu0 %v2439
    %3471 = vmatprep.subr.mxu0 %v2448
    %3472 = vmatpush1.msra.mxu0 %v2447
    %3473 = vmatprep.subr.mxu0 %v2456
    %3474 = vmatpush1.msra.mxu0 %v2455
    %3475 = vmatprep.subr.mxu0 %v2464
    %3476 = vmatpush1.msra.mxu0 %v2463
    %3477 = vmatprep.subr.mxu0 %v2472
    %3478 = vmatpush1.msra.mxu0 %v2471
    %3479 = vmatprep.subr.mxu0 %v2480
    %3480 = vmatpush1.msra.mxu0 %v2479
    %3481 = vmatprep.subr.mxu0 %v2488
    %3482 = vmatpush1.msra.mxu0 %v2487
    %3483 = vmatprep.subr.mxu0 %v2496
    %3484 = vmatpush1.msra.mxu0 %v2495
    %3485 = vmatprep.subr.mxu0 %v2504
    %3486 = vmatpush1.msra.mxu0 %v2503
    %3487 = vmatprep.subr.mxu0 %v2512
    %3488 = vmatpush1.msra.mxu0 %v2511
    %3489 = vmatprep.subr.mxu0 %v2520
    %3490 = vmatpush1.msra.mxu0 %v2519
    %3491 = vmatprep.subr.mxu0 %v2528
    %3492 = vmatpush1.msra.mxu0 %v2527
    %3493 = vmatprep.subr.mxu0 %v2536
    %3494 = vmatpush1.msra.mxu0 %v2535
    %3495 = vmatprep.subr.mxu0 %v2544
    %3496 = vmatpush1.msra.mxu0 %v2543
    %3497 = vmatprep.subr.mxu0 %v2552
    %3498 = vmatpush1.msra.mxu0 %v2551
    %3499 = vmatprep.subr.mxu0 %v2560
    %3500 = vmatpush1.msra.mxu0 %v2559
    %3501 = vmatprep.subr.mxu0 %v2568
    %3502 = vmatpush1.msra.mxu0 %v2567
    %3503 = vmatprep.subr.mxu0 %v2576
    %3504 = vmatpush1.msra.mxu0 %v2575
    %3505 = vmatprep.subr.mxu0 %v2584
    %3506 = vmatpush1.msra.mxu0 %v2583
    %3507 = vmatprep.subr.mxu0 %v2592
    %3508 = vmatpush1.msra.mxu0 %v2591
    %3509 = vmatprep.subr.mxu0 %v2600
    %3510 = vmatpush1.msra.mxu0 %v2599
    %3511 = vmatprep.subr.mxu0 %v2608
    %3512 = vmatpush1.msra.mxu0 %v2607
    %3513 = vmatprep.subr.mxu0 %v2616
    %3514 = vmatpush1.msra.mxu0 %v2615
    %3515 = vmatprep.subr.mxu0 %v2624
    %3516 = vmatpush1.msra.mxu0 %v2623
    %3517 = vmatprep.subr.mxu0 %v2632
    %3518 = vmatpush1.msra.mxu0 %v2631
    %3519 = vmatprep.subr.mxu0 %v2640
    %3520 = vmatpush1.msra.mxu0 %v2639
    %3521 = vmatprep.subr.mxu0 %v2648
    %3522 = vmatpush1.msra.mxu0 %v2647
    %3523 = vmatprep.subr.mxu0 %v2656
    %3524 = vmatpush1.msra.mxu0 %v2655
    %3525 = vmatprep.mubr.f32.mxu0 %v3232
    %3526 = vmatmul.mubr.f32.gmra.mrb[0].mxu0 %v3224
    %v3527 = vpop.f32.mrb[0].mxu0
    %v3528 = vadd.f32 %v3186, %v3527
    %v3529 = vpop.f32.mrb[0].mxu0
    %v3530 = vadd.f32 %v3190, %v3529
    %3531 = vdwg.mxu0
    %3532 = vmatprep.subr.mxu0 %v2664
    %3533 = vmatpush1.msra.mxu0 %v2663
    %3534 = vmatprep.subr.mxu0 %v2672
    %3535 = vmatpush1.msra.mxu0 %v2671
    %3536 = vmatprep.subr.mxu0 %v2680
    %3537 = vmatpush1.msra.mxu0 %v2679
    %3538 = vmatprep.subr.mxu0 %v2688
    %3539 = vmatpush1.msra.mxu0 %v2687
    %3540 = vmatprep.subr.mxu0 %v2696
    %3541 = vmatpush1.msra.mxu0 %v2695
    %3542 = vmatprep.subr.mxu0 %v2704
    %3543 = vmatpush1.msra.mxu0 %v2703
    %3544 = vmatprep.subr.mxu0 %v2712
    %3545 = vmatpush1.msra.mxu0 %v2711
    %3546 = vmatprep.subr.mxu0 %v2720
    %3547 = vmatpush1.msra.mxu0 %v2719
    %3548 = vmatprep.subr.mxu0 %v2728
    %3549 = vmatpush1.msra.mxu0 %v2727
    %3550 = vmatprep.subr.mxu0 %v2736
    %3551 = vmatpush1.msra.mxu0 %v2735
    %3552 = vmatprep.subr.mxu0 %v2744
    %3553 = vmatpush1.msra.mxu0 %v2743
    %3554 = vmatprep.subr.mxu0 %v2752
    %3555 = vmatpush1.msra.mxu0 %v2751
    %3556 = vmatprep.subr.mxu0 %v2760
    %3557 = vmatpush1.msra.mxu0 %v2759
    %3558 = vmatprep.subr.mxu0 %v2768
    %3559 = vmatpush1.msra.mxu0 %v2767
    %3560 = vmatprep.subr.mxu0 %v2776
    %3561 = vmatpush1.msra.mxu0 %v2775
    %3562 = vmatprep.subr.mxu0 %v2784
    %3563 = vmatpush1.msra.mxu0 %v2783
    %3564 = vmatprep.subr.mxu0 %v2792
    %3565 = vmatpush1.msra.mxu0 %v2791
    %3566 = vmatprep.subr.mxu0 %v2800
    %3567 = vmatpush1.msra.mxu0 %v2799
    %3568 = vmatprep.subr.mxu0 %v2808
    %3569 = vmatpush1.msra.mxu0 %v2807
    %3570 = vmatprep.subr.mxu0 %v2816
    %3571 = vmatpush1.msra.mxu0 %v2815
    %3572 = vmatprep.subr.mxu0 %v2824
    %3573 = vmatpush1.msra.mxu0 %v2823
    %3574 = vmatprep.subr.mxu0 %v2832
    %3575 = vmatpush1.msra.mxu0 %v2831
    %3576 = vmatprep.subr.mxu0 %v2840
    %3577 = vmatpush1.msra.mxu0 %v2839
    %3578 = vmatprep.subr.mxu0 %v2848
    %3579 = vmatpush1.msra.mxu0 %v2847
    %3580 = vmatprep.subr.mxu0 %v2856
    %3581 = vmatpush1.msra.mxu0 %v2855
    %3582 = vmatprep.subr.mxu0 %v2864
    %3583 = vmatpush1.msra.mxu0 %v2863
    %3584 = vmatprep.subr.mxu0 %v2872
    %3585 = vmatpush1.msra.mxu0 %v2871
    %3586 = vmatprep.subr.mxu0 %v2880
    %3587 = vmatpush1.msra.mxu0 %v2879
    %3588 = vmatprep.subr.mxu0 %v2888
    %3589 = vmatpush1.msra.mxu0 %v2887
    %3590 = vmatprep.subr.mxu0 %v2896
    %3591 = vmatpush1.msra.mxu0 %v2895
    %3592 = vmatprep.subr.mxu0 %v2904
    %3593 = vmatpush1.msra.mxu0 %v2903
    %3594 = vmatprep.subr.mxu0 %v2912
    %3595 = vmatpush1.msra.mxu0 %v2911
    %3596 = vmatprep.mubr.f32.mxu0 %v3233
    %3597 = vmatmul.mubr.f32.gmra.mrb[0].mxu0 %v3231
    %v3598 = vpop.f32.mrb[0].mxu0
    %v3599 = vadd.f32 %v3528, %v3598
    %v3600 = vpop.f32.mrb[0].mxu0
    %v3601 = vadd.f32 %v3530, %v3600
    %3602 = vdwg.mxu0
    %3603 = vmatprep.subr.mxu0 %v2920
    %3604 = vmatpush1.msra.mxu0 %v2919
    %3605 = vmatprep.subr.mxu0 %v2928
    %3606 = vmatpush1.msra.mxu0 %v2927
    %3607 = vmatprep.subr.mxu0 %v2936
    %3608 = vmatpush1.msra.mxu0 %v2935
    %3609 = vmatprep.subr.mxu0 %v2944
    %3610 = vmatpush1.msra.mxu0 %v2943
    %3611 = vmatprep.subr.mxu0 %v2952
    %3612 = vmatpush1.msra.mxu0 %v2951
    %3613 = vmatprep.subr.mxu0 %v2960
    %3614 = vmatpush1.msra.mxu0 %v2959
    %3615 = vmatprep.subr.mxu0 %v2968
    %3616 = vmatpush1.msra.mxu0 %v2967
    %3617 = vmatprep.subr.mxu0 %v2976
    %3618 = vmatpush1.msra.mxu0 %v2975
    %3619 = vmatprep.subr.mxu0 %v2984
    %3620 = vmatpush1.msra.mxu0 %v2983
    %3621 = vmatprep.subr.mxu0 %v2992
    %3622 = vmatpush1.msra.mxu0 %v2991
    %3623 = vmatprep.subr.mxu0 %v3000
    %3624 = vmatpush1.msra.mxu0 %v2999
    %3625 = vmatprep.subr.mxu0 %v3008
    %3626 = vmatpush1.msra.mxu0 %v3007
    %3627 = vmatprep.subr.mxu0 %v3016
    %3628 = vmatpush1.msra.mxu0 %v3015
    %3629 = vmatprep.subr.mxu0 %v3024
    %3630 = vmatpush1.msra.mxu0 %v3023
    %3631 = vmatprep.subr.mxu0 %v3032
    %3632 = vmatpush1.msra.mxu0 %v3031
    %3633 = vmatprep.subr.mxu0 %v3040
    %3634 = vmatpush1.msra.mxu0 %v3039
    %3635 = vmatprep.subr.mxu0 %v3048
    %3636 = vmatpush1.msra.mxu0 %v3047
    %3637 = vmatprep.subr.mxu0 %v3056
    %3638 = vmatpush1.msra.mxu0 %v3055
    %3639 = vmatprep.subr.mxu0 %v3064
    %3640 = vmatpush1.msra.mxu0 %v3063
    %3641 = vmatprep.subr.mxu0 %v3072
    %3642 = vmatpush1.msra.mxu0 %v3071
    %3643 = vmatprep.subr.mxu0 %v3080
    %3644 = vmatpush1.msra.mxu0 %v3079
    %3645 = vmatprep.subr.mxu0 %v3088
    %3646 = vmatpush1.msra.mxu0 %v3087
    %3647 = vmatprep.subr.mxu0 %v3096
    %3648 = vmatpush1.msra.mxu0 %v3095
    %3649 = vmatprep.subr.mxu0 %v3104
    %3650 = vmatpush1.msra.mxu0 %v3103
    %3651 = vmatprep.subr.mxu0 %v3112
    %3652 = vmatpush1.msra.mxu0 %v3111
    %3653 = vmatprep.subr.mxu0 %v3120
    %3654 = vmatpush1.msra.mxu0 %v3119
    %3655 = vmatprep.subr.mxu0 %v3128
    %3656 = vmatpush1.msra.mxu0 %v3127
    %3657 = vmatprep.subr.mxu0 %v3136
    %3658 = vmatpush1.msra.mxu0 %v3135
    %3659 = vmatprep.subr.mxu0 %v3144
    %3660 = vmatpush1.msra.mxu0 %v3143
    %3661 = vmatprep.subr.mxu0 %v3152
    %3662 = vmatpush1.msra.mxu0 %v3151
    %3663 = vmatprep.subr.mxu0 %v3160
    %3664 = vmatpush1.msra.mxu0 %v3159
    %3665 = vmatprep.subr.mxu0 %v3168
    %3666 = vmatpush1.msra.mxu0 %v3167
    %3667 = vmatprep.mubr.f32.mxu0 %v3241
    %3668 = vmatmul.mubr.f32.gmra.mrb[0].mxu0 %v3240
    %v3669 = vpop.f32.mrb[0].mxu0
    %v3670 = vadd.f32 %v3599, %v3669
    %v3671 = vpop.f32.mrb[0].mxu0
    %v3672 = vadd.f32 %v3601, %v3671
    %3673 = vdwg.mxu0
    %3674 = vmatprep.subr.mxu0 %v2410
    %3675 = vmatpush1.msra.mxu0 %v2409
    %3676 = vmatprep.subr.mxu0 %v2418
    %3677 = vmatpush1.msra.mxu0 %v2417
    %3678 = vmatprep.subr.mxu0 %v2426
    %3679 = vmatpush1.msra.mxu0 %v2425
    %3680 = vmatprep.subr.mxu0 %v2434
    %3681 = vmatpush1.msra.mxu0 %v2433
    %3682 = vmatprep.subr.mxu0 %v2442
    %3683 = vmatpush1.msra.mxu0 %v2441
    %3684 = vmatprep.subr.mxu0 %v2450
    %3685 = vmatpush1.msra.mxu0 %v2449
    %3686 = vmatprep.subr.mxu0 %v2458
    %3687 = vmatpush1.msra.mxu0 %v2457
    %3688 = vmatprep.subr.mxu0 %v2466
    %3689 = vmatpush1.msra.mxu0 %v2465
    %3690 = vmatprep.subr.mxu0 %v2474
    %3691 = vmatpush1.msra.mxu0 %v2473
    %3692 = vmatprep.subr.mxu0 %v2482
    %3693 = vmatpush1.msra.mxu0 %v2481
    %3694 = vmatprep.subr.mxu0 %v2490
    %3695 = vmatpush1.msra.mxu0 %v2489
    %3696 = vmatprep.subr.mxu0 %v2498
    %3697 = vmatpush1.msra.mxu0 %v2497
    %3698 = vmatprep.subr.mxu0 %v2506
    %3699 = vmatpush1.msra.mxu0 %v2505
    %3700 = vmatprep.subr.mxu0 %v2514
    %3701 = vmatpush1.msra.mxu0 %v2513
    %3702 = vmatprep.subr.mxu0 %v2522
    %3703 = vmatpush1.msra.mxu0 %v2521
    %3704 = vmatprep.subr.mxu0 %v2530
    %3705 = vmatpush1.msra.mxu0 %v2529
    %3706 = vmatprep.subr.mxu0 %v2538
    %3707 = vmatpush1.msra.mxu0 %v2537
    %3708 = vmatprep.subr.mxu0 %v2546
    %3709 = vmatpush1.msra.mxu0 %v2545
    %3710 = vmatprep.subr.mxu0 %v2554
    %3711 = vmatpush1.msra.mxu0 %v2553
    %3712 = vmatprep.subr.mxu0 %v2562
    %3713 = vmatpush1.msra.mxu0 %v2561
    %3714 = vmatprep.subr.mxu0 %v2570
    %3715 = vmatpush1.msra.mxu0 %v2569
    %3716 = vmatprep.subr.mxu0 %v2578
    %3717 = vmatpush1.msra.mxu0 %v2577
    %3718 = vmatprep.subr.mxu0 %v2586
    %3719 = vmatpush1.msra.mxu0 %v2585
    %3720 = vmatprep.subr.mxu0 %v2594
    %3721 = vmatpush1.msra.mxu0 %v2593
    %3722 = vmatprep.subr.mxu0 %v2602
    %3723 = vmatpush1.msra.mxu0 %v2601
    %3724 = vmatprep.subr.mxu0 %v2610
    %3725 = vmatpush1.msra.mxu0 %v2609
    %3726 = vmatprep.subr.mxu0 %v2618
    %3727 = vmatpush1.msra.mxu0 %v2617
    %3728 = vmatprep.subr.mxu0 %v2626
    %3729 = vmatpush1.msra.mxu0 %v2625
    %3730 = vmatprep.subr.mxu0 %v2634
    %3731 = vmatpush1.msra.mxu0 %v2633
    %3732 = vmatprep.subr.mxu0 %v2642
    %3733 = vmatpush1.msra.mxu0 %v2641
    %3734 = vmatprep.subr.mxu0 %v2650
    %3735 = vmatpush1.msra.mxu0 %v2649
    %3736 = vmatprep.subr.mxu0 %v2658
    %3737 = vmatpush1.msra.mxu0 %v2657
    %3738 = vmatprep.mubr.f32.mxu0 %v3232
    %3739 = vmatmul.mubr.f32.gmra.mrb[0].mxu0 %v3224
    %v3740 = vpop.f32.mrb[0].mxu0
    %v3741 = vadd.f32 %v3194, %v3740
    %v3742 = vpop.f32.mrb[0].mxu0
    %v3743 = vadd.f32 %v3198, %v3742
    %3744 = vdwg.mxu0
    %3745 = vmatprep.subr.mxu0 %v2666
    %3746 = vmatpush1.msra.mxu0 %v2665
    %3747 = vmatprep.subr.mxu0 %v2674
    %3748 = vmatpush1.msra.mxu0 %v2673
    %3749 = vmatprep.subr.mxu0 %v2682
    %3750 = vmatpush1.msra.mxu0 %v2681
    %3751 = vmatprep.subr.mxu0 %v2690
    %3752 = vmatpush1.msra.mxu0 %v2689
    %3753 = vmatprep.subr.mxu0 %v2698
    %3754 = vmatpush1.msra.mxu0 %v2697
    %3755 = vmatprep.subr.mxu0 %v2706
    %3756 = vmatpush1.msra.mxu0 %v2705
    %3757 = vmatprep.subr.mxu0 %v2714
    %3758 = vmatpush1.msra.mxu0 %v2713
    %3759 = vmatprep.subr.mxu0 %v2722
    %3760 = vmatpush1.msra.mxu0 %v2721
    %3761 = vmatprep.subr.mxu0 %v2730
    %3762 = vmatpush1.msra.mxu0 %v2729
    %3763 = vmatprep.subr.mxu0 %v2738
    %3764 = vmatpush1.msra.mxu0 %v2737
    %3765 = vmatprep.subr.mxu0 %v2746
    %3766 = vmatpush1.msra.mxu0 %v2745
    %3767 = vmatprep.subr.mxu0 %v2754
    %3768 = vmatpush1.msra.mxu0 %v2753
    %3769 = vmatprep.subr.mxu0 %v2762
    %3770 = vmatpush1.msra.mxu0 %v2761
    %3771 = vmatprep.subr.mxu0 %v2770
    %3772 = vmatpush1.msra.mxu0 %v2769
    %3773 = vmatprep.subr.mxu0 %v2778
    %3774 = vmatpush1.msra.mxu0 %v2777
    %3775 = vmatprep.subr.mxu0 %v2786
    %3776 = vmatpush1.msra.mxu0 %v2785
    %3777 = vmatprep.subr.mxu0 %v2794
    %3778 = vmatpush1.msra.mxu0 %v2793
    %3779 = vmatprep.subr.mxu0 %v2802
    %3780 = vmatpush1.msra.mxu0 %v2801
    %3781 = vmatprep.subr.mxu0 %v2810
    %3782 = vmatpush1.msra.mxu0 %v2809
    %3783 = vmatprep.subr.mxu0 %v2818
    %3784 = vmatpush1.msra.mxu0 %v2817
    %3785 = vmatprep.subr.mxu0 %v2826
    %3786 = vmatpush1.msra.mxu0 %v2825
    %3787 = vmatprep.subr.mxu0 %v2834
    %3788 = vmatpush1.msra.mxu0 %v2833
    %3789 = vmatprep.subr.mxu0 %v2842
    %3790 = vmatpush1.msra.mxu0 %v2841
    %3791 = vmatprep.subr.mxu0 %v2850
    %3792 = vmatpush1.msra.mxu0 %v2849
    %3793 = vmatprep.subr.mxu0 %v2858
    %3794 = vmatpush1.msra.mxu0 %v2857
    %3795 = vmatprep.subr.mxu0 %v2866
    %3796 = vmatpush1.msra.mxu0 %v2865
    %3797 = vmatprep.subr.mxu0 %v2874
    %3798 = vmatpush1.msra.mxu0 %v2873
    %3799 = vmatprep.subr.mxu0 %v2882
    %3800 = vmatpush1.msra.mxu0 %v2881
    %3801 = vmatprep.subr.mxu0 %v2890
    %3802 = vmatpush1.msra.mxu0 %v2889
    %3803 = vmatprep.subr.mxu0 %v2898
    %3804 = vmatpush1.msra.mxu0 %v2897
    %3805 = vmatprep.subr.mxu0 %v2906
    %3806 = vmatpush1.msra.mxu0 %v2905
    %3807 = vmatprep.subr.mxu0 %v2914
    %3808 = vmatpush1.msra.mxu0 %v2913
    %3809 = vmatprep.mubr.f32.mxu0 %v3233
    %3810 = vmatmul.mubr.f32.gmra.mrb[0].mxu0 %v3231
    %v3811 = vpop.f32.mrb[0].mxu0
    %v3812 = vadd.f32 %v3741, %v3811
    %v3813 = vpop.f32.mrb[0].mxu0
    %v3814 = vadd.f32 %v3743, %v3813
    %3815 = vdwg.mxu0
    %3816 = vmatprep.subr.mxu0 %v2922
    %3817 = vmatpush1.msra.mxu0 %v2921
    %3818 = vmatprep.subr.mxu0 %v2930
    %3819 = vmatpush1.msra.mxu0 %v2929
    %3820 = vmatprep.subr.mxu0 %v2938
    %3821 = vmatpush1.msra.mxu0 %v2937
    %3822 = vmatprep.subr.mxu0 %v2946
    %3823 = vmatpush1.msra.mxu0 %v2945
    %3824 = vmatprep.subr.mxu0 %v2954
    %3825 = vmatpush1.msra.mxu0 %v2953
    %3826 = vmatprep.subr.mxu0 %v2962
    %3827 = vmatpush1.msra.mxu0 %v2961
    %3828 = vmatprep.subr.mxu0 %v2970
    %3829 = vmatpush1.msra.mxu0 %v2969
    %3830 = vmatprep.subr.mxu0 %v2978
    %3831 = vmatpush1.msra.mxu0 %v2977
    %3832 = vmatprep.subr.mxu0 %v2986
    %3833 = vmatpush1.msra.mxu0 %v2985
    %3834 = vmatprep.subr.mxu0 %v2994
    %3835 = vmatpush1.msra.mxu0 %v2993
    %3836 = vmatprep.subr.mxu0 %v3002
    %3837 = vmatpush1.msra.mxu0 %v3001
    %3838 = vmatprep.subr.mxu0 %v3010
    %3839 = vmatpush1.msra.mxu0 %v3009
    %3840 = vmatprep.subr.mxu0 %v3018
    %3841 = vmatpush1.msra.mxu0 %v3017
    %3842 = vmatprep.subr.mxu0 %v3026
    %3843 = vmatpush1.msra.mxu0 %v3025
    %3844 = vmatprep.subr.mxu0 %v3034
    %3845 = vmatpush1.msra.mxu0 %v3033
    %3846 = vmatprep.subr.mxu0 %v3042
    %3847 = vmatpush1.msra.mxu0 %v3041
    %3848 = vmatprep.subr.mxu0 %v3050
    %3849 = vmatpush1.msra.mxu0 %v3049
    %3850 = vmatprep.subr.mxu0 %v3058
    %3851 = vmatpush1.msra.mxu0 %v3057
    %3852 = vmatprep.subr.mxu0 %v3066
    %3853 = vmatpush1.msra.mxu0 %v3065
    %3854 = vmatprep.subr.mxu0 %v3074
    %3855 = vmatpush1.msra.mxu0 %v3073
    %3856 = vmatprep.subr.mxu0 %v3082
    %3857 = vmatpush1.msra.mxu0 %v3081
    %3858 = vmatprep.subr.mxu0 %v3090
    %3859 = vmatpush1.msra.mxu0 %v3089
    %3860 = vmatprep.subr.mxu0 %v3098
    %3861 = vmatpush1.msra.mxu0 %v3097
    %3862 = vmatprep.subr.mxu0 %v3106
    %3863 = vmatpush1.msra.mxu0 %v3105
    %3864 = vmatprep.subr.mxu0 %v3114
    %3865 = vmatpush1.msra.mxu0 %v3113
    %3866 = vmatprep.subr.mxu0 %v3122
    %3867 = vmatpush1.msra.mxu0 %v3121
    %3868 = vmatprep.subr.mxu0 %v3130
    %3869 = vmatpush1.msra.mxu0 %v3129
    %3870 = vmatprep.subr.mxu0 %v3138
    %3871 = vmatpush1.msra.mxu0 %v3137
    %3872 = vmatprep.subr.mxu0 %v3146
    %3873 = vmatpush1.msra.mxu0 %v3145
    %3874 = vmatprep.subr.mxu0 %v3154
    %3875 = vmatpush1.msra.mxu0 %v3153
    %3876 = vmatprep.subr.mxu0 %v3162
    %3877 = vmatpush1.msra.mxu0 %v3161
    %3878 = vmatprep.subr.mxu0 %v3170
    %3879 = vmatpush1.msra.mxu0 %v3169
    %3880 = vmatprep.mubr.f32.mxu0 %v3241
    %3881 = vmatmul.mubr.f32.gmra.mrb[0].mxu0 %v3240
    %v3882 = vpop.f32.mrb[0].mxu0
    %v3883 = vadd.f32 %v3812, %v3882
    %v3884 = vpop.f32.mrb[0].mxu0
    %v3885 = vadd.f32 %v3814, %v3884
    %3886 = vdwg.mxu0
    %3887 = vmatprep.subr.mxu0 %v2412
    %3888 = vmatpush1.msra.mxu0 %v2411
    %3889 = vmatprep.subr.mxu0 %v2420
    %3890 = vmatpush1.msra.mxu0 %v2419
    %3891 = vmatprep.subr.mxu0 %v2428
    %3892 = vmatpush1.msra.mxu0 %v2427
    %3893 = vmatprep.subr.mxu0 %v2436
    %3894 = vmatpush1.msra.mxu0 %v2435
    %3895 = vmatprep.subr.mxu0 %v2444
    %3896 = vmatpush1.msra.mxu0 %v2443
    %3897 = vmatprep.subr.mxu0 %v2452
    %3898 = vmatpush1.msra.mxu0 %v2451
    %3899 = vmatprep.subr.mxu0 %v2460
    %3900 = vmatpush1.msra.mxu0 %v2459
    %3901 = vmatprep.subr.mxu0 %v2468
    %3902 = vmatpush1.msra.mxu0 %v2467
    %3903 = vmatprep.subr.mxu0 %v2476
    %3904 = vmatpush1.msra.mxu0 %v2475
    %3905 = vmatprep.subr.mxu0 %v2484
    %3906 = vmatpush1.msra.mxu0 %v2483
    %3907 = vmatprep.subr.mxu0 %v2492
    %3908 = vmatpush1.msra.mxu0 %v2491
    %3909 = vmatprep.subr.mxu0 %v2500
    %3910 = vmatpush1.msra.mxu0 %v2499
    %3911 = vmatprep.subr.mxu0 %v2508
    %3912 = vmatpush1.msra.mxu0 %v2507
    %3913 = vmatprep.subr.mxu0 %v2516
    %3914 = vmatpush1.msra.mxu0 %v2515
    %3915 = vmatprep.subr.mxu0 %v2524
    %3916 = vmatpush1.msra.mxu0 %v2523
    %3917 = vmatprep.subr.mxu0 %v2532
    %3918 = vmatpush1.msra.mxu0 %v2531
    %3919 = vmatprep.subr.mxu0 %v2540
    %3920 = vmatpush1.msra.mxu0 %v2539
    %3921 = vmatprep.subr.mxu0 %v2548
    %3922 = vmatpush1.msra.mxu0 %v2547
    %3923 = vmatprep.subr.mxu0 %v2556
    %3924 = vmatpush1.msra.mxu0 %v2555
    %3925 = vmatprep.subr.mxu0 %v2564
    %3926 = vmatpush1.msra.mxu0 %v2563
    %3927 = vmatprep.subr.mxu0 %v2572
    %3928 = vmatpush1.msra.mxu0 %v2571
    %3929 = vmatprep.subr.mxu0 %v2580
    %3930 = vmatpush1.msra.mxu0 %v2579
    %3931 = vmatprep.subr.mxu0 %v2588
    %3932 = vmatpush1.msra.mxu0 %v2587
    %3933 = vmatprep.subr.mxu0 %v2596
    %3934 = vmatpush1.msra.mxu0 %v2595
    %3935 = vmatprep.subr.mxu0 %v2604
    %3936 = vmatpush1.msra.mxu0 %v2603
    %3937 = vmatprep.subr.mxu0 %v2612
    %3938 = vmatpush1.msra.mxu0 %v2611
    %3939 = vmatprep.subr.mxu0 %v2620
    %3940 = vmatpush1.msra.mxu0 %v2619
    %3941 = vmatprep.subr.mxu0 %v2628
    %3942 = vmatpush1.msra.mxu0 %v2627
    %3943 = vmatprep.subr.mxu0 %v2636
    %3944 = vmatpush1.msra.mxu0 %v2635
    %3945 = vmatprep.subr.mxu0 %v2644
    %3946 = vmatpush1.msra.mxu0 %v2643
    %3947 = vmatprep.subr.mxu0 %v2652
    %3948 = vmatpush1.msra.mxu0 %v2651
    %3949 = vmatprep.subr.mxu0 %v2660
    %3950 = vmatpush1.msra.mxu0 %v2659
    %3951 = vmatprep.mubr.f32.mxu0 %v3232
    %3952 = vmatmul.mubr.f32.gmra.mrb[0].mxu0 %v3224
    %v3953 = vpop.f32.mrb[0].mxu0
    %v3954 = vadd.f32 %v3202, %v3953
    %v3955 = vpop.f32.mrb[0].mxu0
    %v3956 = vadd.f32 %v3206, %v3955
    %3957 = vdwg.mxu0
    %3958 = vmatprep.subr.mxu0 %v2668
    %3959 = vmatpush1.msra.mxu0 %v2667
    %3960 = vmatprep.subr.mxu0 %v2676
    %3961 = vmatpush1.msra.mxu0 %v2675
    %3962 = vmatprep.subr.mxu0 %v2684
    %3963 = vmatpush1.msra.mxu0 %v2683
    %3964 = vmatprep.subr.mxu0 %v2692
    %3965 = vmatpush1.msra.mxu0 %v2691
    %3966 = vmatprep.subr.mxu0 %v2700
    %3967 = vmatpush1.msra.mxu0 %v2699
    %3968 = vmatprep.subr.mxu0 %v2708
    %3969 = vmatpush1.msra.mxu0 %v2707
    %3970 = vmatprep.subr.mxu0 %v2716
    %3971 = vmatpush1.msra.mxu0 %v2715
    %3972 = vmatprep.subr.mxu0 %v2724
    %3973 = vmatpush1.msra.mxu0 %v2723
    %3974 = vmatprep.subr.mxu0 %v2732
    %3975 = vmatpush1.msra.mxu0 %v2731
    %3976 = vmatprep.subr.mxu0 %v2740
    %3977 = vmatpush1.msra.mxu0 %v2739
    %3978 = vmatprep.subr.mxu0 %v2748
    %3979 = vmatpush1.msra.mxu0 %v2747
    %3980 = vmatprep.subr.mxu0 %v2756
    %3981 = vmatpush1.msra.mxu0 %v2755
    %3982 = vmatprep.subr.mxu0 %v2764
    %3983 = vmatpush1.msra.mxu0 %v2763
    %3984 = vmatprep.subr.mxu0 %v2772
    %3985 = vmatpush1.msra.mxu0 %v2771
    %3986 = vmatprep.subr.mxu0 %v2780
    %3987 = vmatpush1.msra.mxu0 %v2779
    %3988 = vmatprep.subr.mxu0 %v2788
    %3989 = vmatpush1.msra.mxu0 %v2787
    %3990 = vmatprep.subr.mxu0 %v2796
    %3991 = vmatpush1.msra.mxu0 %v2795
    %3992 = vmatprep.subr.mxu0 %v2804
    %3993 = vmatpush1.msra.mxu0 %v2803
    %3994 = vmatprep.subr.mxu0 %v2812
    %3995 = vmatpush1.msra.mxu0 %v2811
    %3996 = vmatprep.subr.mxu0 %v2820
    %3997 = vmatpush1.msra.mxu0 %v2819
    %3998 = vmatprep.subr.mxu0 %v2828
    %3999 = vmatpush1.msra.mxu0 %v2827
    %4000 = vmatprep.subr.mxu0 %v2836
    %4001 = vmatpush1.msra.mxu0 %v2835
    %4002 = vmatprep.subr.mxu0 %v2844
    %4003 = vmatpush1.msra.mxu0 %v2843
    %4004 = vmatprep.subr.mxu0 %v2852
    %4005 = vmatpush1.msra.mxu0 %v2851
    %4006 = vmatprep.subr.mxu0 %v2860
    %4007 = vmatpush1.msra.mxu0 %v2859
    %4008 = vmatprep.subr.mxu0 %v2868
    %4009 = vmatpush1.msra.mxu0 %v2867
    %4010 = vmatprep.subr.mxu0 %v2876
    %4011 = vmatpush1.msra.mxu0 %v2875
    %4012 = vmatprep.subr.mxu0 %v2884
    %4013 = vmatpush1.msra.mxu0 %v2883
    %4014 = vmatprep.subr.mxu0 %v2892
    %4015 = vmatpush1.msra.mxu0 %v2891
    %4016 = vmatprep.subr.mxu0 %v2900
    %4017 = vmatpush1.msra.mxu0 %v2899
    %4018 = vmatprep.subr.mxu0 %v2908
    %4019 = vmatpush1.msra.mxu0 %v2907
    %4020 = vmatprep.subr.mxu0 %v2916
    %4021 = vmatpush1.msra.mxu0 %v2915
    %4022 = vmatprep.mubr.f32.mxu0 %v3233
    %4023 = vmatmul.mubr.f32.gmra.mrb[0].mxu0 %v3231
    %v4024 = vpop.f32.mrb[0].mxu0
    %v4025 = vadd.f32 %v3954, %v4024
    %v4026 = vpop.f32.mrb[0].mxu0
    %v4027 = vadd.f32 %v3956, %v4026
    %4028 = vdwg.mxu0
    %4029 = vmatprep.subr.mxu0 %v2924
    %4030 = vmatpush1.msra.mxu0 %v2923
    %4031 = vmatprep.subr.mxu0 %v2932
    %4032 = vmatpush1.msra.mxu0 %v2931
    %4033 = vmatprep.subr.mxu0 %v2940
    %4034 = vmatpush1.msra.mxu0 %v2939
    %4035 = vmatprep.subr.mxu0 %v2948
    %4036 = vmatpush1.msra.mxu0 %v2947
    %4037 = vmatprep.subr.mxu0 %v2956
    %4038 = vmatpush1.msra.mxu0 %v2955
    %4039 = vmatprep.subr.mxu0 %v2964
    %4040 = vmatpush1.msra.mxu0 %v2963
    %4041 = vmatprep.subr.mxu0 %v2972
    %4042 = vmatpush1.msra.mxu0 %v2971
    %4043 = vmatprep.subr.mxu0 %v2980
    %4044 = vmatpush1.msra.mxu0 %v2979
    %4045 = vmatprep.subr.mxu0 %v2988
    %4046 = vmatpush1.msra.mxu0 %v2987
    %4047 = vmatprep.subr.mxu0 %v2996
    %4048 = vmatpush1.msra.mxu0 %v2995
    %4049 = vmatprep.subr.mxu0 %v3004
    %4050 = vmatpush1.msra.mxu0 %v3003
    %4051 = vmatprep.subr.mxu0 %v3012
    %4052 = vmatpush1.msra.mxu0 %v3011
    %4053 = vmatprep.subr.mxu0 %v3020
    %4054 = vmatpush1.msra.mxu0 %v3019
    %4055 = vmatprep.subr.mxu0 %v3028
    %4056 = vmatpush1.msra.mxu0 %v3027
    %4057 = vmatprep.subr.mxu0 %v3036
    %4058 = vmatpush1.msra.mxu0 %v3035
    %4059 = vmatprep.subr.mxu0 %v3044
    %4060 = vmatpush1.msra.mxu0 %v3043
    %4061 = vmatprep.subr.mxu0 %v3052
    %4062 = vmatpush1.msra.mxu0 %v3051
    %4063 = vmatprep.subr.mxu0 %v3060
    %4064 = vmatpush1.msra.mxu0 %v3059
    %4065 = vmatprep.subr.mxu0 %v3068
    %4066 = vmatpush1.msra.mxu0 %v3067
    %4067 = vmatprep.subr.mxu0 %v3076
    %4068 = vmatpush1.msra.mxu0 %v3075
    %4069 = vmatprep.subr.mxu0 %v3084
    %4070 = vmatpush1.msra.mxu0 %v3083
    %4071 = vmatprep.subr.mxu0 %v3092
    %4072 = vmatpush1.msra.mxu0 %v3091
    %4073 = vmatprep.subr.mxu0 %v3100
    %4074 = vmatpush1.msra.mxu0 %v3099
    %4075 = vmatprep.subr.mxu0 %v3108
    %4076 = vmatpush1.msra.mxu0 %v3107
    %4077 = vmatprep.subr.mxu0 %v3116
    %4078 = vmatpush1.msra.mxu0 %v3115
    %4079 = vmatprep.subr.mxu0 %v3124
    %4080 = vmatpush1.msra.mxu0 %v3123
    %4081 = vmatprep.subr.mxu0 %v3132
    %4082 = vmatpush1.msra.mxu0 %v3131
    %4083 = vmatprep.subr.mxu0 %v3140
    %4084 = vmatpush1.msra.mxu0 %v3139
    %4085 = vmatprep.subr.mxu0 %v3148
    %4086 = vmatpush1.msra.mxu0 %v3147
    %4087 = vmatprep.subr.mxu0 %v3156
    %4088 = vmatpush1.msra.mxu0 %v3155
    %4089 = vmatprep.subr.mxu0 %v3164
    %4090 = vmatpush1.msra.mxu0 %v3163
    %4091 = vmatprep.subr.mxu0 %v3172
    %4092 = vmatpush1.msra.mxu0 %v3171
    %4093 = vmatprep.mubr.f32.mxu0 %v3241
    %4094 = vmatmul.mubr.f32.gmra.mrb[0].mxu0 %v3240
    %v4095 = vpop.f32.mrb[0].mxu0
    %v4096 = vadd.f32 %v4025, %v4095
    %v4097 = vpop.f32.mrb[0].mxu0
    %v4098 = vadd.f32 %v4027, %v4097
    %4099 = vdwg.mxu0
    %v4108 = vcombine.low %v3457, %v3459
    %v4109 = vcombine.low %v3670, %v3672
    %v4111 = vunpack.c.l.s4 1983009808
    %v4112 = vunpack.c.0.s8 %v4111
    %v4113 = vlaneseq
    %v4114 = vshrl.u32 %v4113, 7
    %v4115 = vsub.s32 %v4112, %v4114
    %v4116 = vrot.slane %v4108, %v4115
    %v4118 = vunpack.c.l.s4 1983009808
    %v4119 = vunpack.c.0.s8 %v4118
    %v4120 = vlaneseq
    %v4121 = vshrl.u32 %v4120, 7
    %v4122 = vsub.s32 %v4119, %v4121
    %v4123 = vrot.slane %v4109, %v4122
    %v4124 = vcombine.low %v4116, %v4123
    %v4125 = vcombine.low %v3883, %v3885
    %v4126 = vcombine.low %v4096, %v4098
    %v4128 = vunpack.c.l.s4 1983009808
    %v4129 = vunpack.c.0.s8 %v4128
    %v4130 = vlaneseq
    %v4131 = vshrl.u32 %v4130, 7
    %v4132 = vsub.s32 %v4129, %v4131
    %v4133 = vrot.slane %v4125, %v4132
    %v4135 = vunpack.c.l.s4 1983009808
    %v4136 = vunpack.c.0.s8 %v4135
    %v4137 = vlaneseq
    %v4138 = vshrl.u32 %v4137, 7
    %v4139 = vsub.s32 %v4136, %v4138
    %v4140 = vrot.slane %v4126, %v4139
    %v4141 = vcombine.low %v4133, %v4140
    %4144 = vst [vmem:[#allocation5] sm:$0xff] %v4124
    %vm4145 = vcmask 1043458
    %vm4146 = vmor %vm4145, %vm210
    %vm4147 = vcmask 1045508
    %vm4148 = vmor %vm4147, %vm4146
    %vm4149 = vcmask 850950
    %vm4150 = vmor %vm4149, %vm4148
    %4151 = vst.msk [vmem:[#allocation5 + $0x8] sm:$0xff] %vm4150, %v4141
    %v4152 = vld [vmem:[%s15] sm:$0xff]
    %v4153 = vld [vmem:[%s15 + $0x8] sm:$0xff]
    %v4154 = vld [vmem:[%s15 + $0x10] sm:$0xff]
    %v4155 = vld [vmem:[%s15 + $0x18] sm:$0xff]
    %v4156 = vld [vmem:[%s15 + $0x20] sm:$0xff]
    %v4157 = vld [vmem:[%s15 + $0x28] sm:$0xff]
    %v4158 = vld [vmem:[%s15 + $0x30] sm:$0xff]
    %v4159 = vld [vmem:[%s15 + $0x38] sm:$0xff]
    %v4160 = vld [vmem:[%s15 + $0x40] sm:$0xff]
    %v4161 = vld [vmem:[%s15 + $0x48] sm:$0xff]
    %v4162 = vld [vmem:[%s15 + $0x50] sm:$0xff]
    %v4163 = vld [vmem:[%s15 + $0x58] sm:$0xff]
    %v4164 = vld [vmem:[%s15 + $0x60] sm:$0xff]
    %v4165 = vld [vmem:[%s15 + $0x68] sm:$0xff]
    %v4166 = vld [vmem:[%s15 + $0x70] sm:$0xff]
    %v4167 = vld [vmem:[%s15 + $0x78] sm:$0xff]
    %v4168 = vld [vmem:[%s15 + $0x80] sm:$0xff]
    %v4169 = vld [vmem:[%s15 + $0x88] sm:$0xff]
    %v4170 = vld [vmem:[%s15 + $0x90] sm:$0xff]
    %v4171 = vld [vmem:[%s15 + $0x98] sm:$0xff]
    %v4172 = vld [vmem:[%s15 + $0xa0] sm:$0xff]
    %v4173 = vld [vmem:[%s15 + $0xa8] sm:$0xff]
    %v4174 = vld [vmem:[%s15 + $0xb0] sm:$0xff]
    %v4175 = vld [vmem:[%s15 + $0xb8] sm:$0xff]
    %v4176 = vld [vmem:[%s15 + $0xc0] sm:$0xff]
    %v4177 = vld [vmem:[%s15 + $0xc8] sm:$0xff]
    %v4178 = vld [vmem:[%s15 + $0xd0] sm:$0xff]
    %v4179 = vld [vmem:[%s15 + $0xd8] sm:$0xff]
    %v4180 = vld [vmem:[%s15 + $0xe0] sm:$0xff]
    %v4181 = vld [vmem:[%s15 + $0xe8] sm:$0xff]
    %v4182 = vld [vmem:[%s15 + $0xf0] sm:$0xff]
    %v4183 = vld [vmem:[%s15 + $0xf8] sm:$0xff]
    %v4184 = vld [vmem:[%s15 + $0x100] sm:$0xff]
    %v4185 = vld [vmem:[%s15 + $0x108] sm:$0xff]
    %v4186 = vld [vmem:[%s15 + $0x110] sm:$0xff]
    %v4187 = vld [vmem:[%s15 + $0x118] sm:$0xff]
    %v4188 = vld [vmem:[%s15 + $0x120] sm:$0xff]
    %v4189 = vld [vmem:[%s15 + $0x128] sm:$0xff]
    %v4190 = vld [vmem:[%s15 + $0x130] sm:$0xff]
    %v4191 = vld [vmem:[%s15 + $0x138] sm:$0xff]
    %v4192 = vld [vmem:[%s15 + $0x140] sm:$0xff]
    %v4193 = vld [vmem:[%s15 + $0x148] sm:$0xff]
    %v4194 = vld [vmem:[%s15 + $0x150] sm:$0xff]
    %v4195 = vld [vmem:[%s15 + $0x158] sm:$0xff]
    %v4196 = vld [vmem:[%s15 + $0x160] sm:$0xff]
    %v4197 = vld [vmem:[%s15 + $0x168] sm:$0xff]
    %v4198 = vld [vmem:[%s15 + $0x170] sm:$0xff]
    %v4199 = vld [vmem:[%s15 + $0x178] sm:$0xff]
    %v4200 = vld [vmem:[%s15 + $0x180] sm:$0xff]
    %v4201 = vld [vmem:[%s15 + $0x188] sm:$0xff]
    %v4202 = vld [vmem:[%s15 + $0x190] sm:$0xff]
    %v4203 = vld [vmem:[%s15 + $0x198] sm:$0xff]
    %v4204 = vld [vmem:[%s15 + $0x1a0] sm:$0xff]
    %v4205 = vld [vmem:[%s15 + $0x1a8] sm:$0xff]
    %v4206 = vld [vmem:[%s15 + $0x1b0] sm:$0xff]
    %v4207 = vld [vmem:[%s15 + $0x1b8] sm:$0xff]
    %v4208 = vld [vmem:[%s15 + $0x1c0] sm:$0xff]
    %v4209 = vld [vmem:[%s15 + $0x1c8] sm:$0xff]
    %v4210 = vld [vmem:[%s15 + $0x1d0] sm:$0xff]
    %v4211 = vld [vmem:[%s15 + $0x1d8] sm:$0xff]
    %v4212 = vld [vmem:[%s15 + $0x1e0] sm:$0xff]
    %v4213 = vld [vmem:[%s15 + $0x1e8] sm:$0xff]
    %v4214 = vld [vmem:[%s15 + $0x1f0] sm:$0xff]
    %v4215 = vld [vmem:[%s15 + $0x1f8] sm:$0xff]
    %v4216 = vld [vmem:[%s15 + $0x200] sm:$0xff]
    %v4217 = vld [vmem:[%s15 + $0x208] sm:$0xff]
    %v4218 = vld [vmem:[%s15 + $0x210] sm:$0xff]
    %v4219 = vld [vmem:[%s15 + $0x218] sm:$0xff]
    %v4220 = vld [vmem:[%s15 + $0x220] sm:$0xff]
    %v4221 = vld [vmem:[%s15 + $0x228] sm:$0xff]
    %v4222 = vld [vmem:[%s15 + $0x230] sm:$0xff]
    %v4223 = vld [vmem:[%s15 + $0x238] sm:$0xff]
    %v4224 = vld [vmem:[%s15 + $0x240] sm:$0xff]
    %v4225 = vld [vmem:[%s15 + $0x248] sm:$0xff]
    %v4226 = vld [vmem:[%s15 + $0x250] sm:$0xff]
    %v4227 = vld [vmem:[%s15 + $0x258] sm:$0xff]
    %v4228 = vld [vmem:[%s15 + $0x260] sm:$0xff]
    %v4229 = vld [vmem:[%s15 + $0x268] sm:$0xff]
    %v4230 = vld [vmem:[%s15 + $0x270] sm:$0xff]
    %v4231 = vld [vmem:[%s15 + $0x278] sm:$0xff]
    %v4232 = vld [vmem:[%s15 + $0x280] sm:$0xff]
    %v4233 = vld [vmem:[%s15 + $0x288] sm:$0xff]
    %v4234 = vld [vmem:[%s15 + $0x290] sm:$0xff]
    %v4235 = vld [vmem:[%s15 + $0x298] sm:$0xff]
    %v4236 = vld [vmem:[%s15 + $0x2a0] sm:$0xff]
    %v4237 = vld [vmem:[%s15 + $0x2a8] sm:$0xff]
    %v4238 = vld [vmem:[%s15 + $0x2b0] sm:$0xff]
    %v4239 = vld [vmem:[%s15 + $0x2b8] sm:$0xff]
    %v4240 = vld [vmem:[%s15 + $0x2c0] sm:$0xff]
    %v4241 = vld [vmem:[%s15 + $0x2c8] sm:$0xff]
    %v4242 = vld [vmem:[%s15 + $0x2d0] sm:$0xff]
    %v4243 = vld [vmem:[%s15 + $0x2d8] sm:$0xff]
    %v4244 = vld [vmem:[%s15 + $0x2e0] sm:$0xff]
    %v4245 = vld [vmem:[%s15 + $0x2e8] sm:$0xff]
    %v4246 = vld [vmem:[%s15 + $0x2f0] sm:$0xff]
    %v4247 = vld [vmem:[%s15 + $0x2f8] sm:$0xff]
    %v4248 = vld [vmem:[%s15 + $0x300] sm:$0xff]
    %v4249 = vld [vmem:[%s15 + $0x308] sm:$0xff]
    %v4250 = vld [vmem:[%s15 + $0x310] sm:$0xff]
    %v4251 = vld [vmem:[%s15 + $0x318] sm:$0xff]
    %v4252 = vld [vmem:[%s15 + $0x320] sm:$0xff]
    %v4253 = vld [vmem:[%s15 + $0x328] sm:$0xff]
    %v4254 = vld [vmem:[%s15 + $0x330] sm:$0xff]
    %v4255 = vld [vmem:[%s15 + $0x338] sm:$0xff]
    %v4256 = vld [vmem:[%s15 + $0x340] sm:$0xff]
    %v4257 = vld [vmem:[%s15 + $0x348] sm:$0xff]
    %v4258 = vld [vmem:[%s15 + $0x350] sm:$0xff]
    %v4259 = vld [vmem:[%s15 + $0x358] sm:$0xff]
    %v4260 = vld [vmem:[%s15 + $0x360] sm:$0xff]
    %v4261 = vld [vmem:[%s15 + $0x368] sm:$0xff]
    %v4262 = vld [vmem:[%s15 + $0x370] sm:$0xff]
    %v4263 = vld [vmem:[%s15 + $0x378] sm:$0xff]
    %v4264 = vld [vmem:[%s15 + $0x380] sm:$0xff]
    %v4265 = vld [vmem:[%s15 + $0x388] sm:$0xff]
    %v4266 = vld [vmem:[%s15 + $0x390] sm:$0xff]
    %v4267 = vld [vmem:[%s15 + $0x398] sm:$0xff]
    %v4268 = vld [vmem:[%s15 + $0x3a0] sm:$0xff]
    %v4269 = vld [vmem:[%s15 + $0x3a8] sm:$0xff]
    %v4270 = vld [vmem:[%s15 + $0x3b0] sm:$0xff]
    %v4271 = vld [vmem:[%s15 + $0x3b8] sm:$0xff]
    %v4272 = vld [vmem:[%s15 + $0x3c0] sm:$0xff]
    %v4273 = vld [vmem:[%s15 + $0x3c8] sm:$0xff]
    %v4274 = vld [vmem:[%s15 + $0x3d0] sm:$0xff]
    %v4275 = vld [vmem:[%s15 + $0x3d8] sm:$0xff]
    %v4276 = vld [vmem:[%s15 + $0x3e0] sm:$0xff]
    %v4277 = vld [vmem:[%s16] sm:$0xff]
    %v4278 = vld [vmem:[%s16 + $0x8] sm:$0xff]
    %v4279 = vld [vmem:[%s16 + $0x10] sm:$0xff]
    %v4280 = vld [vmem:[%s16 + $0x18] sm:$0xff]
    %v4281 = vld [vmem:[%s16 + $0x20] sm:$0xff]
    %v4282 = vld [vmem:[%s16 + $0x28] sm:$0xff]
    %v4283 = vld [vmem:[%s16 + $0x30] sm:$0xff]
    %v4284 = vld [vmem:[%s16 + $0x38] sm:$0xff]
    %v4285 = vld [vmem:[%s16 + $0x40] sm:$0xff]
    %v4286 = vld [vmem:[%s16 + $0x48] sm:$0xff]
    %v4287 = vld [vmem:[%s16 + $0x50] sm:$0xff]
    %v4288 = vld [vmem:[%s16 + $0x58] sm:$0xff]
    %v4289 = vld [vmem:[%s16 + $0x60] sm:$0xff]
    %v4290 = vld [vmem:[%s16 + $0x68] sm:$0xff]
    %v4291 = vld [vmem:[%s16 + $0x70] sm:$0xff]
    %v4292 = vld [vmem:[%s16 + $0x78] sm:$0xff]
    %v4293 = vld [vmem:[%s16 + $0x80] sm:$0xff]
    %v4294 = vld [vmem:[%s16 + $0x88] sm:$0xff]
    %v4295 = vld [vmem:[%s16 + $0x90] sm:$0xff]
    %v4296 = vld [vmem:[%s16 + $0x98] sm:$0xff]
    %v4297 = vld [vmem:[%s16 + $0xa0] sm:$0xff]
    %v4298 = vld [vmem:[%s16 + $0xa8] sm:$0xff]
    %v4299 = vld [vmem:[%s16 + $0xb0] sm:$0xff]
    %v4300 = vld [vmem:[%s16 + $0xb8] sm:$0xff]
    %v4301 = vld [vmem:[%s16 + $0xc0] sm:$0xff]
    %v4302 = vld [vmem:[%s16 + $0xc8] sm:$0xff]
    %v4303 = vld [vmem:[%s16 + $0xd0] sm:$0xff]
    %v4304 = vld [vmem:[%s16 + $0xd8] sm:$0xff]
    %v4305 = vld [vmem:[%s16 + $0xe0] sm:$0xff]
    %v4306 = vld [vmem:[%s16 + $0xe8] sm:$0xff]
    %v4307 = vld [vmem:[%s16 + $0xf0] sm:$0xff]
    %v4308 = vld [vmem:[%s16 + $0xf8] sm:$0xff]
    %v4309 = vld [vmem:[%s16 + $0x100] sm:$0xff]
    %v4310 = vld [vmem:[%s16 + $0x108] sm:$0xff]
    %v4311 = vld [vmem:[%s16 + $0x110] sm:$0xff]
    %v4312 = vld [vmem:[%s16 + $0x118] sm:$0xff]
    %v4313 = vld [vmem:[%s16 + $0x120] sm:$0xff]
    %v4314 = vld [vmem:[%s16 + $0x128] sm:$0xff]
    %v4315 = vld [vmem:[%s16 + $0x130] sm:$0xff]
    %v4316 = vld [vmem:[%s16 + $0x138] sm:$0xff]
    %v4317 = vld [vmem:[%s16 + $0x140] sm:$0xff]
    %v4318 = vld [vmem:[%s16 + $0x148] sm:$0xff]
    %v4319 = vld [vmem:[%s16 + $0x150] sm:$0xff]
    %v4320 = vld [vmem:[%s16 + $0x158] sm:$0xff]
    %v4321 = vld [vmem:[%s16 + $0x160] sm:$0xff]
    %v4322 = vld [vmem:[%s16 + $0x168] sm:$0xff]
    %v4323 = vld [vmem:[%s16 + $0x170] sm:$0xff]
    %v4324 = vld [vmem:[%s16 + $0x178] sm:$0xff]
    %v4325 = vld [vmem:[%s16 + $0x180] sm:$0xff]
    %v4326 = vld [vmem:[%s16 + $0x188] sm:$0xff]
    %v4327 = vld [vmem:[%s16 + $0x190] sm:$0xff]
    %v4328 = vld [vmem:[%s16 + $0x198] sm:$0xff]
    %v4329 = vld [vmem:[%s16 + $0x1a0] sm:$0xff]
    %v4330 = vld [vmem:[%s16 + $0x1a8] sm:$0xff]
    %v4331 = vld [vmem:[%s16 + $0x1b0] sm:$0xff]
    %v4332 = vld [vmem:[%s16 + $0x1b8] sm:$0xff]
    %v4333 = vld [vmem:[%s16 + $0x1c0] sm:$0xff]
    %v4334 = vld [vmem:[%s16 + $0x1c8] sm:$0xff]
    %v4335 = vld [vmem:[%s16 + $0x1d0] sm:$0xff]
    %v4336 = vld [vmem:[%s16 + $0x1d8] sm:$0xff]
    %v4337 = vld [vmem:[%s16 + $0x1e0] sm:$0xff]
    %v4338 = vld [vmem:[%s16 + $0x1e8] sm:$0xff]
    %v4339 = vld [vmem:[%s16 + $0x1f0] sm:$0xff]
    %v4340 = vld [vmem:[%s16 + $0x1f8] sm:$0xff]
    %v4341 = vld [vmem:[%s16 + $0x200] sm:$0xff]
    %v4342 = vld [vmem:[%s16 + $0x208] sm:$0xff]
    %v4343 = vld [vmem:[%s16 + $0x210] sm:$0xff]
    %v4344 = vld [vmem:[%s16 + $0x218] sm:$0xff]
    %v4345 = vld [vmem:[%s16 + $0x220] sm:$0xff]
    %v4346 = vld [vmem:[%s16 + $0x228] sm:$0xff]
    %v4347 = vld [vmem:[%s16 + $0x230] sm:$0xff]
    %v4348 = vld [vmem:[%s16 + $0x238] sm:$0xff]
    %v4349 = vld [vmem:[%s16 + $0x240] sm:$0xff]
    %v4350 = vld [vmem:[%s16 + $0x248] sm:$0xff]
    %v4351 = vld [vmem:[%s16 + $0x250] sm:$0xff]
    %v4352 = vld [vmem:[%s16 + $0x258] sm:$0xff]
    %v4353 = vld [vmem:[%s16 + $0x260] sm:$0xff]
    %v4354 = vld [vmem:[%s16 + $0x268] sm:$0xff]
    %v4355 = vld [vmem:[%s16 + $0x270] sm:$0xff]
    %v4356 = vld [vmem:[%s16 + $0x278] sm:$0xff]
    %v4357 = vld [vmem:[%s16 + $0x280] sm:$0xff]
    %v4358 = vld [vmem:[%s16 + $0x288] sm:$0xff]
    %v4359 = vld [vmem:[%s16 + $0x290] sm:$0xff]
    %v4360 = vld [vmem:[%s16 + $0x298] sm:$0xff]
    %v4361 = vld [vmem:[%s16 + $0x2a0] sm:$0xff]
    %v4362 = vld [vmem:[%s16 + $0x2a8] sm:$0xff]
    %v4363 = vld [vmem:[%s16 + $0x2b0] sm:$0xff]
    %v4364 = vld [vmem:[%s16 + $0x2b8] sm:$0xff]
    %v4365 = vld [vmem:[%s16 + $0x2c0] sm:$0xff]
    %v4366 = vld [vmem:[%s16 + $0x2c8] sm:$0xff]
    %v4367 = vld [vmem:[%s16 + $0x2d0] sm:$0xff]
    %v4368 = vld [vmem:[%s16 + $0x2d8] sm:$0xff]
    %v4369 = vld [vmem:[%s16 + $0x2e0] sm:$0xff]
    %v4370 = vld [vmem:[%s16 + $0x2e8] sm:$0xff]
    %v4371 = vld [vmem:[%s16 + $0x2f0] sm:$0xff]
    %v4372 = vld [vmem:[%s16 + $0x2f8] sm:$0xff]
    %v4373 = vld [vmem:[%s16 + $0x300] sm:$0xff]
    %v4374 = vld [vmem:[%s16 + $0x308] sm:$0xff]
    %v4375 = vld [vmem:[%s16 + $0x310] sm:$0xff]
    %v4376 = vld [vmem:[%s16 + $0x318] sm:$0xff]
    %v4377 = vld [vmem:[%s16 + $0x320] sm:$0xff]
    %v4378 = vld [vmem:[%s16 + $0x328] sm:$0xff]
    %v4379 = vld [vmem:[%s16 + $0x330] sm:$0xff]
    %v4380 = vld [vmem:[%s16 + $0x338] sm:$0xff]
    %v4381 = vld [vmem:[%s16 + $0x340] sm:$0xff]
    %v4382 = vld [vmem:[%s16 + $0x348] sm:$0xff]
    %v4383 = vld [vmem:[%s16 + $0x350] sm:$0xff]
    %v4384 = vld [vmem:[%s16 + $0x358] sm:$0xff]
    %v4385 = vld [vmem:[%s16 + $0x360] sm:$0xff]
    %v4386 = vld [vmem:[%s16 + $0x368] sm:$0xff]
    %v4387 = vld [vmem:[%s16 + $0x370] sm:$0xff]
    %v4388 = vld [vmem:[%s16 + $0x378] sm:$0xff]
    %v4389 = vld [vmem:[%s16 + $0x380] sm:$0xff]
    %v4390 = vld [vmem:[%s16 + $0x388] sm:$0xff]
    %v4391 = vld [vmem:[%s16 + $0x390] sm:$0xff]
    %v4392 = vld [vmem:[%s16 + $0x398] sm:$0xff]
    %v4393 = vld [vmem:[%s16 + $0x3a0] sm:$0xff]
    %v4394 = vld [vmem:[%s16 + $0x3a8] sm:$0xff]
    %v4395 = vld [vmem:[%s16 + $0x3b0] sm:$0xff]
    %v4396 = vld [vmem:[%s16 + $0x3b8] sm:$0xff]
    %v4397 = vld [vmem:[%s16 + $0x3c0] sm:$0xff]
    %v4398 = vld [vmem:[%s16 + $0x3c8] sm:$0xff]
    %v4399 = vld [vmem:[%s16 + $0x3d0] sm:$0xff]
    %v4400 = vld [vmem:[%s16 + $0x3d8] sm:$0xff]
    %v4401 = vld [vmem:[%s16 + $0x3e0] sm:$0xff]
    %v4402 = vld [vmem:[%s16 + $0x3e8] sm:$0xff]
    %v4403 = vld [vmem:[%s16 + $0x3f0] sm:$0xff]
    %v4404 = vld [vmem:[%s16 + $0x3f8] sm:$0xff]
    %v4405 = vld [vmem:[%s16 + $0x400] sm:$0xff]
    %v4406 = vld [vmem:[%s16 + $0x408] sm:$0xff]
    %v4407 = vld [vmem:[%s16 + $0x410] sm:$0xff]
    %v4408 = vld [vmem:[%s16 + $0x418] sm:$0xff]
    %v4409 = vld [vmem:[%s16 + $0x420] sm:$0xff]
    %v4410 = vld [vmem:[%s16 + $0x428] sm:$0xff]
    %v4411 = vld [vmem:[%s16 + $0x430] sm:$0xff]
    %v4412 = vld [vmem:[%s16 + $0x438] sm:$0xff]
    %v4413 = vld [vmem:[%s16 + $0x440] sm:$0xff]
    %v4414 = vld [vmem:[%s16 + $0x448] sm:$0xff]
    %v4415 = vld [vmem:[%s16 + $0x450] sm:$0xff]
    %v4416 = vld [vmem:[%s16 + $0x458] sm:$0xff]
    %v4417 = vld [vmem:[%s16 + $0x460] sm:$0xff]
    %v4418 = vld [vmem:[%s16 + $0x468] sm:$0xff]
    %v4419 = vld [vmem:[%s16 + $0x470] sm:$0xff]
    %v4420 = vld [vmem:[%s16 + $0x478] sm:$0xff]
    %v4421 = vld [vmem:[%s16 + $0x480] sm:$0xff]
    %v4422 = vld [vmem:[%s16 + $0x488] sm:$0xff]
    %v4423 = vld [vmem:[%s16 + $0x490] sm:$0xff]
    %v4424 = vld [vmem:[%s16 + $0x498] sm:$0xff]
    %v4425 = vld [vmem:[%s16 + $0x4a0] sm:$0xff]
    %v4426 = vld [vmem:[%s16 + $0x4a8] sm:$0xff]
    %v4427 = vld [vmem:[%s16 + $0x4b0] sm:$0xff]
    %v4428 = vld [vmem:[%s16 + $0x4b8] sm:$0xff]
    %vm4429 = vcmask 523264
    %v4430 = vsel %vm4429, %v2314, 0
    %4432 = vmatprep.subr.mxu0 0.0
    %4433 = vmatpush1.msra.mxu0 %v4277
    %4434 = vmatprep.subr.mxu0 0.0
    %4435 = vmatpush1.msra.mxu0 %v4278
    %4436 = vmatprep.subr.mxu0 0.0
    %4437 = vmatpush1.msra.mxu0 %v4279
    %4438 = vmatprep.subr.mxu0 0.0
    %4439 = vmatpush1.msra.mxu0 %v4280
    %4440 = vmatprep.subr.mxu0 0.0
    %4441 = vmatpush1.msra.mxu0 %v4281
    %4442 = vmatprep.subr.mxu0 0.0
    %4443 = vmatpush1.msra.mxu0 %v4282
    %4444 = vmatprep.subr.mxu0 0.0
    %4445 = vmatpush1.msra.mxu0 %v4283
    %4446 = vmatprep.subr.mxu0 0.0
    %4447 = vmatpush1.msra.mxu0 %v4284
    %4448 = vmatprep.subr.mxu0 0.0
    %4449 = vmatpush1.msra.mxu0 %v4285
    %4450 = vmatprep.subr.mxu0 0.0
    %4451 = vmatpush1.msra.mxu0 %v4286
    %4452 = vmatprep.subr.mxu0 0.0
    %4453 = vmatpush1.msra.mxu0 %v4287
    %4454 = vmatprep.subr.mxu0 0.0
    %4455 = vmatpush1.msra.mxu0 %v4288
    %4456 = vmatprep.subr.mxu0 0.0
    %4457 = vmatpush1.msra.mxu0 %v4289
    %4458 = vmatprep.subr.mxu0 0.0
    %4459 = vmatpush1.msra.mxu0 %v4290
    %4460 = vmatprep.subr.mxu0 0.0
    %4461 = vmatpush1.msra.mxu0 %v4291
    %4462 = vmatprep.subr.mxu0 0.0
    %4463 = vmatpush1.msra.mxu0 %v4292
    %4464 = vmatprep.subr.mxu0 0.0
    %4465 = vmatpush1.msra.mxu0 %v4293
    %4466 = vmatprep.subr.mxu0 0.0
    %4467 = vmatpush1.msra.mxu0 %v4294
    %4468 = vmatprep.subr.mxu0 0.0
    %4469 = vmatpush1.msra.mxu0 %v4295
    %4470 = vmatprep.subr.mxu0 0.0
    %4471 = vmatpush1.msra.mxu0 %v4296
    %4472 = vmatprep.subr.mxu0 0.0
    %4473 = vmatpush1.msra.mxu0 %v4297
    %4474 = vmatprep.subr.mxu0 0.0
    %4475 = vmatpush1.msra.mxu0 %v4298
    %4476 = vmatprep.subr.mxu0 0.0
    %4477 = vmatpush1.msra.mxu0 %v4299
    %4478 = vmatprep.subr.mxu0 0.0
    %4479 = vmatpush1.msra.mxu0 %v4300
    %4480 = vmatprep.subr.mxu0 0.0
    %4481 = vmatpush1.msra.mxu0 %v4301
    %4482 = vmatprep.subr.mxu0 0.0
    %4483 = vmatpush1.msra.mxu0 %v4302
    %4484 = vmatprep.subr.mxu0 0.0
    %4485 = vmatpush1.msra.mxu0 %v4303
    %4486 = vmatprep.subr.mxu0 0.0
    %4487 = vmatpush1.msra.mxu0 %v4304
    %4488 = vmatprep.subr.mxu0 0.0
    %4489 = vmatpush1.msra.mxu0 %v4305
    %4490 = vmatprep.subr.mxu0 0.0
    %4491 = vmatpush1.msra.mxu0 %v4306
    %4492 = vmatprep.subr.mxu0 0.0
    %4493 = vmatpush1.msra.mxu0 %v4307
    %4494 = vmatprep.subr.mxu0 0.0
    %4495 = vmatpush1.msra.mxu0 %v4308
    %4496 = vmatprep.mubr.f32.mxu0 %v2319
    %4497 = vmatmul.mubr.f32.gmra.mrb[0].mxu0 %v2316
    %v4498 = vpop.f32.mrb[0].mxu0
    %v4499 = vadd.f32 0.0, %v4498
    %v4500 = vpop.f32.mrb[0].mxu0
    %4501 = vdwg.mxu0
    %4502 = vmatprep.subr.mxu0 0.0
    %4503 = vmatpush1.msra.mxu0 %v4309
    %4504 = vmatprep.subr.mxu0 0.0
    %4505 = vmatpush1.msra.mxu0 %v4310
    %4506 = vmatprep.subr.mxu0 0.0
    %4507 = vmatpush1.msra.mxu0 %v4311
    %4508 = vmatprep.subr.mxu0 0.0
    %4509 = vmatpush1.msra.mxu0 %v4312
    %4510 = vmatprep.subr.mxu0 0.0
    %4511 = vmatpush1.msra.mxu0 %v4313
    %4512 = vmatprep.subr.mxu0 0.0
    %4513 = vmatpush1.msra.mxu0 %v4314
    %4514 = vmatprep.subr.mxu0 0.0
    %4515 = vmatpush1.msra.mxu0 %v4315
    %4516 = vmatprep.subr.mxu0 0.0
    %4517 = vmatpush1.msra.mxu0 %v4316
    %4518 = vmatprep.subr.mxu0 0.0
    %4519 = vmatpush1.msra.mxu0 %v4317
    %4520 = vmatprep.subr.mxu0 0.0
    %4521 = vmatpush1.msra.mxu0 %v4318
    %4522 = vmatprep.subr.mxu0 0.0
    %4523 = vmatpush1.msra.mxu0 %v4319
    %4524 = vmatprep.subr.mxu0 0.0
    %4525 = vmatpush1.msra.mxu0 %v4320
    %4526 = vmatprep.subr.mxu0 0.0
    %4527 = vmatpush1.msra.mxu0 %v4321
    %4528 = vmatprep.subr.mxu0 0.0
    %4529 = vmatpush1.msra.mxu0 %v4322
    %4530 = vmatprep.subr.mxu0 0.0
    %4531 = vmatpush1.msra.mxu0 %v4323
    %4532 = vmatprep.subr.mxu0 0.0
    %4533 = vmatpush1.msra.mxu0 %v4324
    %4534 = vmatprep.subr.mxu0 0.0
    %4535 = vmatpush1.msra.mxu0 %v4325
    %4536 = vmatprep.subr.mxu0 0.0
    %4537 = vmatpush1.msra.mxu0 %v4326
    %4538 = vmatprep.subr.mxu0 0.0
    %4539 = vmatpush1.msra.mxu0 %v4327
    %4540 = vmatprep.subr.mxu0 0.0
    %4541 = vmatpush1.msra.mxu0 %v4328
    %4542 = vmatprep.subr.mxu0 0.0
    %4543 = vmatpush1.msra.mxu0 %v4329
    %4544 = vmatprep.subr.mxu0 0.0
    %4545 = vmatpush1.msra.mxu0 %v4330
    %4546 = vmatprep.subr.mxu0 0.0
    %4547 = vmatpush1.msra.mxu0 %v4331
    %4548 = vmatprep.subr.mxu0 0.0
    %4549 = vmatpush1.msra.mxu0 %v4332
    %4550 = vmatprep.subr.mxu0 0.0
    %4551 = vmatpush1.msra.mxu0 %v4333
    %4552 = vmatprep.subr.mxu0 0.0
    %4553 = vmatpush1.msra.mxu0 %v4334
    %4554 = vmatprep.subr.mxu0 0.0
    %4555 = vmatpush1.msra.mxu0 %v4335
    %4556 = vmatprep.subr.mxu0 0.0
    %4557 = vmatpush1.msra.mxu0 %v4336
    %4558 = vmatprep.subr.mxu0 0.0
    %4559 = vmatpush1.msra.mxu0 %v4337
    %4560 = vmatprep.subr.mxu0 0.0
    %4561 = vmatpush1.msra.mxu0 %v4338
    %4562 = vmatprep.subr.mxu0 0.0
    %4563 = vmatpush1.msra.mxu0 %v4339
    %4564 = vmatprep.subr.mxu0 0.0
    %4565 = vmatpush1.msra.mxu0 %v4340
    %4566 = vmatprep.mubr.f32.mxu0 %v2325
    %4567 = vmatmul.mubr.f32.gmra.mrb[0].mxu0 %v2323
    %v4568 = vpop.f32.mrb[0].mxu0
    %v4569 = vadd.f32 %v4499, %v4568
    %v4570 = vpop.f32.mrb[0].mxu0
    %4571 = vdwg.mxu0
    %4572 = vmatprep.subr.mxu0 0.0
    %4573 = vmatpush1.msra.mxu0 %v4341
    %4574 = vmatprep.subr.mxu0 0.0
    %4575 = vmatpush1.msra.mxu0 %v4342
    %4576 = vmatprep.subr.mxu0 0.0
    %4577 = vmatpush1.msra.mxu0 %v4343
    %4578 = vmatprep.subr.mxu0 0.0
    %4579 = vmatpush1.msra.mxu0 %v4344
    %4580 = vmatprep.subr.mxu0 0.0
    %4581 = vmatpush1.msra.mxu0 %v4345
    %4582 = vmatprep.subr.mxu0 0.0
    %4583 = vmatpush1.msra.mxu0 %v4346
    %4584 = vmatprep.subr.mxu0 0.0
    %4585 = vmatpush1.msra.mxu0 %v4347
    %4586 = vmatprep.subr.mxu0 0.0
    %4587 = vmatpush1.msra.mxu0 %v4348
    %4588 = vmatprep.subr.mxu0 0.0
    %4589 = vmatpush1.msra.mxu0 %v4349
    %4590 = vmatprep.subr.mxu0 0.0
    %4591 = vmatpush1.msra.mxu0 %v4350
    %4592 = vmatprep.subr.mxu0 0.0
    %4593 = vmatpush1.msra.mxu0 %v4351
    %4594 = vmatprep.subr.mxu0 0.0
    %4595 = vmatpush1.msra.mxu0 %v4352
    %4596 = vmatprep.subr.mxu0 0.0
    %4597 = vmatpush1.msra.mxu0 %v4353
    %4598 = vmatprep.subr.mxu0 0.0
    %4599 = vmatpush1.msra.mxu0 %v4354
    %4600 = vmatprep.subr.mxu0 0.0
    %4601 = vmatpush1.msra.mxu0 %v4355
    %4602 = vmatprep.subr.mxu0 0.0
    %4603 = vmatpush1.msra.mxu0 %v4356
    %4604 = vmatprep.subr.mxu0 0.0
    %4605 = vmatpush1.msra.mxu0 %v4357
    %4606 = vmatprep.subr.mxu0 0.0
    %4607 = vmatpush1.msra.mxu0 %v4358
    %4608 = vmatprep.subr.mxu0 0.0
    %4609 = vmatpush1.msra.mxu0 %v4359
    %4610 = vmatprep.subr.mxu0 0.0
    %4611 = vmatpush1.msra.mxu0 %v4360
    %4612 = vmatprep.subr.mxu0 0.0
    %4613 = vmatpush1.msra.mxu0 %v4361
    %4614 = vmatprep.subr.mxu0 0.0
    %4615 = vmatpush1.msra.mxu0 %v4362
    %4616 = vmatprep.subr.mxu0 0.0
    %4617 = vmatpush1.msra.mxu0 %v4363
    %4618 = vmatprep.subr.mxu0 0.0
    %4619 = vmatpush1.msra.mxu0 %v4364
    %4620 = vmatprep.subr.mxu0 0.0
    %4621 = vmatpush1.msra.mxu0 %v4365
    %4622 = vmatprep.subr.mxu0 0.0
    %4623 = vmatpush1.msra.mxu0 %v4366
    %4624 = vmatprep.subr.mxu0 0.0
    %4625 = vmatpush1.msra.mxu0 %v4367
    %4626 = vmatprep.subr.mxu0 0.0
    %4627 = vmatpush1.msra.mxu0 %v4368
    %4628 = vmatprep.subr.mxu0 0.0
    %4629 = vmatpush1.msra.mxu0 %v4369
    %4630 = vmatprep.subr.mxu0 0.0
    %4631 = vmatpush1.msra.mxu0 %v4370
    %4632 = vmatprep.subr.mxu0 0.0
    %4633 = vmatpush1.msra.mxu0 %v4371
    %4634 = vmatprep.subr.mxu0 0.0
    %4635 = vmatpush1.msra.mxu0 %v4372
    %4636 = vmatprep.mubr.f32.mxu0 %v2333
    %4637 = vmatmul.mubr.f32.gmra.mrb[0].mxu0 %v2329
    %v4638 = vpop.f32.mrb[0].mxu0
    %v4639 = vadd.f32 %v4569, %v4638
    %v4640 = vpop.f32.mrb[0].mxu0
    %4641 = vdwg.mxu0
    %4642 = vmatprep.subr.mxu0 0.0
    %4643 = vmatpush1.msra.mxu0 %v4373
    %4644 = vmatprep.subr.mxu0 0.0
    %4645 = vmatpush1.msra.mxu0 %v4374
    %4646 = vmatprep.subr.mxu0 0.0
    %4647 = vmatpush1.msra.mxu0 %v4375
    %4648 = vmatprep.subr.mxu0 0.0
    %4649 = vmatpush1.msra.mxu0 %v4376
    %4650 = vmatprep.subr.mxu0 0.0
    %4651 = vmatpush1.msra.mxu0 %v4377
    %4652 = vmatprep.subr.mxu0 0.0
    %4653 = vmatpush1.msra.mxu0 %v4378
    %4654 = vmatprep.subr.mxu0 0.0
    %4655 = vmatpush1.msra.mxu0 %v4379
    %4656 = vmatprep.subr.mxu0 0.0
    %4657 = vmatpush1.msra.mxu0 %v4380
    %4658 = vmatprep.subr.mxu0 0.0
    %4659 = vmatpush1.msra.mxu0 %v4381
    %4660 = vmatprep.subr.mxu0 0.0
    %4661 = vmatpush1.msra.mxu0 %v4382
    %4662 = vmatprep.subr.mxu0 0.0
    %4663 = vmatpush1.msra.mxu0 %v4383
    %4664 = vmatprep.subr.mxu0 0.0
    %4665 = vmatpush1.msra.mxu0 %v4384
    %4666 = vmatprep.subr.mxu0 0.0
    %4667 = vmatpush1.msra.mxu0 %v4385
    %4668 = vmatprep.subr.mxu0 0.0
    %4669 = vmatpush1.msra.mxu0 %v4386
    %4670 = vmatprep.subr.mxu0 0.0
    %4671 = vmatpush1.msra.mxu0 %v4387
    %4672 = vmatprep.subr.mxu0 0.0
    %4673 = vmatpush1.msra.mxu0 %v4388
    %4674 = vmatprep.subr.mxu0 0.0
    %4675 = vmatpush1.msra.mxu0 %v4389
    %4676 = vmatprep.subr.mxu0 0.0
    %4677 = vmatpush1.msra.mxu0 %v4390
    %4678 = vmatprep.subr.mxu0 0.0
    %4679 = vmatpush1.msra.mxu0 %v4391
    %4680 = vmatprep.subr.mxu0 0.0
    %4681 = vmatpush1.msra.mxu0 %v4392
    %4682 = vmatprep.subr.mxu0 0.0
    %4683 = vmatpush1.msra.mxu0 %v4393
    %4684 = vmatprep.subr.mxu0 0.0
    %4685 = vmatpush1.msra.mxu0 %v4394
    %4686 = vmatprep.subr.mxu0 0.0
    %4687 = vmatpush1.msra.mxu0 %v4395
    %4688 = vmatprep.subr.mxu0 0.0
    %4689 = vmatpush1.msra.mxu0 %v4396
    %4690 = vmatprep.subr.mxu0 0.0
    %4691 = vmatpush1.msra.mxu0 %v4397
    %4692 = vmatprep.subr.mxu0 0.0
    %4693 = vmatpush1.msra.mxu0 %v4398
    %4694 = vmatprep.subr.mxu0 0.0
    %4695 = vmatpush1.msra.mxu0 %v4399
    %4696 = vmatprep.subr.mxu0 0.0
    %4697 = vmatpush1.msra.mxu0 %v4400
    %4698 = vmatprep.subr.mxu0 0.0
    %4699 = vmatpush1.msra.mxu0 %v4401
    %4700 = vmatprep.subr.mxu0 0.0
    %4701 = vmatpush1.msra.mxu0 %v4402
    %4702 = vmatprep.subr.mxu0 0.0
    %4703 = vmatpush1.msra.mxu0 %v4403
    %4704 = vmatprep.subr.mxu0 0.0
    %4705 = vmatpush1.msra.mxu0 %v4404
    %4706 = vmatprep.mubr.f32.mxu0 %v2339
    %4707 = vmatmul.mubr.f32.gmra.mrb[0].mxu0 %v2335
    %v4708 = vpop.f32.mrb[0].mxu0
    %v4709 = vadd.f32 %v4639, %v4708
    %v4710 = vpop.f32.mrb[0].mxu0
    %4711 = vdwg.mxu0
    %4712 = vmatprep.subr.mxu0 0.0
    %4713 = vmatpush1.msra.mxu0 %v4405
    %4714 = vmatprep.subr.mxu0 0.0
    %4715 = vmatpush1.msra.mxu0 %v4406
    %4716 = vmatprep.subr.mxu0 0.0
    %4717 = vmatpush1.msra.mxu0 %v4407
    %4718 = vmatprep.subr.mxu0 0.0
    %4719 = vmatpush1.msra.mxu0 %v4408
    %4720 = vmatprep.subr.mxu0 0.0
    %4721 = vmatpush1.msra.mxu0 %v4409
    %4722 = vmatprep.subr.mxu0 0.0
    %4723 = vmatpush1.msra.mxu0 %v4410
    %4724 = vmatprep.subr.mxu0 0.0
    %4725 = vmatpush1.msra.mxu0 %v4411
    %4726 = vmatprep.subr.mxu0 0.0
    %4727 = vmatpush1.msra.mxu0 %v4412
    %4728 = vmatprep.subr.mxu0 0.0
    %4729 = vmatpush1.msra.mxu0 %v4413
    %4730 = vmatprep.subr.mxu0 0.0
    %4731 = vmatpush1.msra.mxu0 %v4414
    %4732 = vmatprep.subr.mxu0 0.0
    %4733 = vmatpush1.msra.mxu0 %v4415
    %4734 = vmatprep.subr.mxu0 0.0
    %4735 = vmatpush1.msra.mxu0 %v4416
    %4736 = vmatprep.subr.mxu0 0.0
    %4737 = vmatpush1.msra.mxu0 %v4417
    %4738 = vmatprep.subr.mxu0 0.0
    %4739 = vmatpush1.msra.mxu0 %v4418
    %4740 = vmatprep.subr.mxu0 0.0
    %4741 = vmatpush1.msra.mxu0 %v4419
    %4742 = vmatprep.subr.mxu0 0.0
    %4743 = vmatpush1.msra.mxu0 %v4420
    %4744 = vmatprep.subr.mxu0 0.0
    %4745 = vmatpush1.msra.mxu0 %v4421
    %4746 = vmatprep.subr.mxu0 0.0
    %4747 = vmatpush1.msra.mxu0 %v4422
    %4748 = vmatprep.subr.mxu0 0.0
    %4749 = vmatpush1.msra.mxu0 %v4423
    %4750 = vmatprep.subr.mxu0 0.0
    %4751 = vmatpush1.msra.mxu0 %v4424
    %4752 = vmatprep.subr.mxu0 0.0
    %4753 = vmatpush1.msra.mxu0 %v4425
    %4754 = vmatprep.subr.mxu0 0.0
    %4755 = vmatpush1.msra.mxu0 %v4426
    %4756 = vmatprep.subr.mxu0 0.0
    %4757 = vmatpush1.msra.mxu0 %v4427
    %4758 = vmatprep.subr.mxu0 0.0
    %4759 = vmatpush1.msra.mxu0 %v4428
    %4760 = vmatprep.subr.mxu0 0.0
    %4761 = vmatpush1.msra.mxu0 0.0
    %4762 = vmatprep.subr.mxu0 0.0
    %4763 = vmatpush1.msra.mxu0 0.0
    %4764 = vmatprep.subr.mxu0 0.0
    %4765 = vmatpush1.msra.mxu0 0.0
    %4766 = vmatprep.subr.mxu0 0.0
    %4767 = vmatpush1.msra.mxu0 0.0
    %4768 = vmatprep.subr.mxu0 0.0
    %4769 = vmatpush1.msra.mxu0 0.0
    %4770 = vmatprep.subr.mxu0 0.0
    %4771 = vmatpush1.msra.mxu0 0.0
    %4772 = vmatprep.subr.mxu0 0.0
    %4773 = vmatpush1.msra.mxu0 0.0
    %4774 = vmatprep.subr.mxu0 0.0
    %4775 = vmatpush1.msra.mxu0 0.0
    %4776 = vmatprep.mubr.f32.mxu0 %v4430
    %4777 = vmatmul.mubr.f32.gmra.mrb[0].mxu0 %v2343
    %v4778 = vpop.f32.mrb[0].mxu0
    %v4779 = vadd.f32 %v4709, %v4778
    %v4780 = vpop.f32.mrb[0].mxu0
    %4781 = vdwg.mxu0
    %vm4782 = vcmask 850944
    %v4783 = vsel %vm4782, %v4098, 0
    %4785 = vmatprep.subr.mxu0 0.0
    %4786 = vmatpush1.msra.mxu0 %v4152
    %4787 = vmatprep.subr.mxu0 0.0
    %4788 = vmatpush1.msra.mxu0 %v4153
    %4789 = vmatprep.subr.mxu0 0.0
    %4790 = vmatpush1.msra.mxu0 %v4154
    %4791 = vmatprep.subr.mxu0 0.0
    %4792 = vmatpush1.msra.mxu0 %v4155
    %4793 = vmatprep.subr.mxu0 0.0
    %4794 = vmatpush1.msra.mxu0 %v4156
    %4795 = vmatprep.subr.mxu0 0.0
    %4796 = vmatpush1.msra.mxu0 %v4157
    %4797 = vmatprep.subr.mxu0 0.0
    %4798 = vmatpush1.msra.mxu0 %v4158
    %4799 = vmatprep.subr.mxu0 0.0
    %4800 = vmatpush1.msra.mxu0 %v4159
    %4801 = vmatprep.subr.mxu0 0.0
    %4802 = vmatpush1.msra.mxu0 %v4160
    %4803 = vmatprep.subr.mxu0 0.0
    %4804 = vmatpush1.msra.mxu0 %v4161
    %4805 = vmatprep.subr.mxu0 0.0
    %4806 = vmatpush1.msra.mxu0 %v4162
    %4807 = vmatprep.subr.mxu0 0.0
    %4808 = vmatpush1.msra.mxu0 %v4163
    %4809 = vmatprep.subr.mxu0 0.0
    %4810 = vmatpush1.msra.mxu0 %v4164
    %4811 = vmatprep.subr.mxu0 0.0
    %4812 = vmatpush1.msra.mxu0 %v4165
    %4813 = vmatprep.subr.mxu0 0.0
    %4814 = vmatpush1.msra.mxu0 %v4166
    %4815 = vmatprep.subr.mxu0 0.0
    %4816 = vmatpush1.msra.mxu0 %v4167
    %4817 = vmatprep.subr.mxu0 0.0
    %4818 = vmatpush1.msra.mxu0 %v4168
    %4819 = vmatprep.subr.mxu0 0.0
    %4820 = vmatpush1.msra.mxu0 %v4169
    %4821 = vmatprep.subr.mxu0 0.0
    %4822 = vmatpush1.msra.mxu0 %v4170
    %4823 = vmatprep.subr.mxu0 0.0
    %4824 = vmatpush1.msra.mxu0 %v4171
    %4825 = vmatprep.subr.mxu0 0.0
    %4826 = vmatpush1.msra.mxu0 %v4172
    %4827 = vmatprep.subr.mxu0 0.0
    %4828 = vmatpush1.msra.mxu0 %v4173
    %4829 = vmatprep.subr.mxu0 0.0
    %4830 = vmatpush1.msra.mxu0 %v4174
    %4831 = vmatprep.subr.mxu0 0.0
    %4832 = vmatpush1.msra.mxu0 %v4175
    %4833 = vmatprep.subr.mxu0 0.0
    %4834 = vmatpush1.msra.mxu0 %v4176
    %4835 = vmatprep.subr.mxu0 0.0
    %4836 = vmatpush1.msra.mxu0 %v4177
    %4837 = vmatprep.subr.mxu0 0.0
    %4838 = vmatpush1.msra.mxu0 %v4178
    %4839 = vmatprep.subr.mxu0 0.0
    %4840 = vmatpush1.msra.mxu0 %v4179
    %4841 = vmatprep.subr.mxu0 0.0
    %4842 = vmatpush1.msra.mxu0 %v4180
    %4843 = vmatprep.subr.mxu0 0.0
    %4844 = vmatpush1.msra.mxu0 %v4181
    %4845 = vmatprep.subr.mxu0 0.0
    %4846 = vmatpush1.msra.mxu0 %v4182
    %4847 = vmatprep.subr.mxu0 0.0
    %4848 = vmatpush1.msra.mxu0 %v4183
    %4849 = vmatprep.mubr.f32.mxu0 %v3459
    %4850 = vmatmul.mubr.f32.gmra.mrb[0].mxu0 %v3457
    %v4851 = vpop.f32.mrb[0].mxu0
    %v4852 = vadd.f32 %v4779, %v4851
    %v4853 = vpop.f32.mrb[0].mxu0
    %4854 = vdwg.mxu0
    %4855 = vmatprep.subr.mxu0 0.0
    %4856 = vmatpush1.msra.mxu0 %v4184
    %4857 = vmatprep.subr.mxu0 0.0
    %4858 = vmatpush1.msra.mxu0 %v4185
    %4859 = vmatprep.subr.mxu0 0.0
    %4860 = vmatpush1.msra.mxu0 %v4186
    %4861 = vmatprep.subr.mxu0 0.0
    %4862 = vmatpush1.msra.mxu0 %v4187
    %4863 = vmatprep.subr.mxu0 0.0
    %4864 = vmatpush1.msra.mxu0 %v4188
    %4865 = vmatprep.subr.mxu0 0.0
    %4866 = vmatpush1.msra.mxu0 %v4189
    %4867 = vmatprep.subr.mxu0 0.0
    %4868 = vmatpush1.msra.mxu0 %v4190
    %4869 = vmatprep.subr.mxu0 0.0
    %4870 = vmatpush1.msra.mxu0 %v4191
    %4871 = vmatprep.subr.mxu0 0.0
    %4872 = vmatpush1.msra.mxu0 %v4192
    %4873 = vmatprep.subr.mxu0 0.0
    %4874 = vmatpush1.msra.mxu0 %v4193
    %4875 = vmatprep.subr.mxu0 0.0
    %4876 = vmatpush1.msra.mxu0 %v4194
    %4877 = vmatprep.subr.mxu0 0.0
    %4878 = vmatpush1.msra.mxu0 %v4195
    %4879 = vmatprep.subr.mxu0 0.0
    %4880 = vmatpush1.msra.mxu0 %v4196
    %4881 = vmatprep.subr.mxu0 0.0
    %4882 = vmatpush1.msra.mxu0 %v4197
    %4883 = vmatprep.subr.mxu0 0.0
    %4884 = vmatpush1.msra.mxu0 %v4198
    %4885 = vmatprep.subr.mxu0 0.0
    %4886 = vmatpush1.msra.mxu0 %v4199
    %4887 = vmatprep.subr.mxu0 0.0
    %4888 = vmatpush1.msra.mxu0 %v4200
    %4889 = vmatprep.subr.mxu0 0.0
    %4890 = vmatpush1.msra.mxu0 %v4201
    %4891 = vmatprep.subr.mxu0 0.0
    %4892 = vmatpush1.msra.mxu0 %v4202
    %4893 = vmatprep.subr.mxu0 0.0
    %4894 = vmatpush1.msra.mxu0 %v4203
    %4895 = vmatprep.subr.mxu0 0.0
    %4896 = vmatpush1.msra.mxu0 %v4204
    %4897 = vmatprep.subr.mxu0 0.0
    %4898 = vmatpush1.msra.mxu0 %v4205
    %4899 = vmatprep.subr.mxu0 0.0
    %4900 = vmatpush1.msra.mxu0 %v4206
    %4901 = vmatprep.subr.mxu0 0.0
    %4902 = vmatpush1.msra.mxu0 %v4207
    %4903 = vmatprep.subr.mxu0 0.0
    %4904 = vmatpush1.msra.mxu0 %v4208
    %4905 = vmatprep.subr.mxu0 0.0
    %4906 = vmatpush1.msra.mxu0 %v4209
    %4907 = vmatprep.subr.mxu0 0.0
    %4908 = vmatpush1.msra.mxu0 %v4210
    %4909 = vmatprep.subr.mxu0 0.0
    %4910 = vmatpush1.msra.mxu0 %v4211
    %4911 = vmatprep.subr.mxu0 0.0
    %4912 = vmatpush1.msra.mxu0 %v4212
    %4913 = vmatprep.subr.mxu0 0.0
    %4914 = vmatpush1.msra.mxu0 %v4213
    %4915 = vmatprep.subr.mxu0 0.0
    %4916 = vmatpush1.msra.mxu0 %v4214
    %4917 = vmatprep.subr.mxu0 0.0
    %4918 = vmatpush1.msra.mxu0 %v4215
    %4919 = vmatprep.mubr.f32.mxu0 %v3672
    %4920 = vmatmul.mubr.f32.gmra.mrb[0].mxu0 %v3670
    %v4921 = vpop.f32.mrb[0].mxu0
    %v4922 = vadd.f32 %v4852, %v4921
    %v4923 = vpop.f32.mrb[0].mxu0
    %4924 = vdwg.mxu0
    %4925 = vmatprep.subr.mxu0 0.0
    %4926 = vmatpush1.msra.mxu0 %v4216
    %4927 = vmatprep.subr.mxu0 0.0
    %4928 = vmatpush1.msra.mxu0 %v4217
    %4929 = vmatprep.subr.mxu0 0.0
    %4930 = vmatpush1.msra.mxu0 %v4218
    %4931 = vmatprep.subr.mxu0 0.0
    %4932 = vmatpush1.msra.mxu0 %v4219
    %4933 = vmatprep.subr.mxu0 0.0
    %4934 = vmatpush1.msra.mxu0 %v4220
    %4935 = vmatprep.subr.mxu0 0.0
    %4936 = vmatpush1.msra.mxu0 %v4221
    %4937 = vmatprep.subr.mxu0 0.0
    %4938 = vmatpush1.msra.mxu0 %v4222
    %4939 = vmatprep.subr.mxu0 0.0
    %4940 = vmatpush1.msra.mxu0 %v4223
    %4941 = vmatprep.subr.mxu0 0.0
    %4942 = vmatpush1.msra.mxu0 %v4224
    %4943 = vmatprep.subr.mxu0 0.0
    %4944 = vmatpush1.msra.mxu0 %v4225
    %4945 = vmatprep.subr.mxu0 0.0
    %4946 = vmatpush1.msra.mxu0 %v4226
    %4947 = vmatprep.subr.mxu0 0.0
    %4948 = vmatpush1.msra.mxu0 %v4227
    %4949 = vmatprep.subr.mxu0 0.0
    %4950 = vmatpush1.msra.mxu0 %v4228
    %4951 = vmatprep.subr.mxu0 0.0
    %4952 = vmatpush1.msra.mxu0 %v4229
    %4953 = vmatprep.subr.mxu0 0.0
    %4954 = vmatpush1.msra.mxu0 %v4230
    %4955 = vmatprep.subr.mxu0 0.0
    %4956 = vmatpush1.msra.mxu0 %v4231
    %4957 = vmatprep.subr.mxu0 0.0
    %4958 = vmatpush1.msra.mxu0 %v4232
    %4959 = vmatprep.subr.mxu0 0.0
    %4960 = vmatpush1.msra.mxu0 %v4233
    %4961 = vmatprep.subr.mxu0 0.0
    %4962 = vmatpush1.msra.mxu0 %v4234
    %4963 = vmatprep.subr.mxu0 0.0
    %4964 = vmatpush1.msra.mxu0 %v4235
    %4965 = vmatprep.subr.mxu0 0.0
    %4966 = vmatpush1.msra.mxu0 %v4236
    %4967 = vmatprep.subr.mxu0 0.0
    %4968 = vmatpush1.msra.mxu0 %v4237
    %4969 = vmatprep.subr.mxu0 0.0
    %4970 = vmatpush1.msra.mxu0 %v4238
    %4971 = vmatprep.subr.mxu0 0.0
    %4972 = vmatpush1.msra.mxu0 %v4239
    %4973 = vmatprep.subr.mxu0 0.0
    %4974 = vmatpush1.msra.mxu0 %v4240
    %4975 = vmatprep.subr.mxu0 0.0
    %4976 = vmatpush1.msra.mxu0 %v4241
    %4977 = vmatprep.subr.mxu0 0.0
    %4978 = vmatpush1.msra.mxu0 %v4242
    %4979 = vmatprep.subr.mxu0 0.0
    %4980 = vmatpush1.msra.mxu0 %v4243
    %4981 = vmatprep.subr.mxu0 0.0
    %4982 = vmatpush1.msra.mxu0 %v4244
    %4983 = vmatprep.subr.mxu0 0.0
    %4984 = vmatpush1.msra.mxu0 %v4245
    %4985 = vmatprep.subr.mxu0 0.0
    %4986 = vmatpush1.msra.mxu0 %v4246
    %4987 = vmatprep.subr.mxu0 0.0
    %4988 = vmatpush1.msra.mxu0 %v4247
    %4989 = vmatprep.mubr.f32.mxu0 %v3885
    %4990 = vmatmul.mubr.f32.gmra.mrb[0].mxu0 %v3883
    %v4991 = vpop.f32.mrb[0].mxu0
    %v4992 = vadd.f32 %v4922, %v4991
    %v4993 = vpop.f32.mrb[0].mxu0
    %4994 = vdwg.mxu0
    %4995 = vmatprep.subr.mxu0 0.0
    %4996 = vmatpush1.msra.mxu0 %v4248
    %4997 = vmatprep.subr.mxu0 0.0
    %4998 = vmatpush1.msra.mxu0 %v4249
    %4999 = vmatprep.subr.mxu0 0.0
    %5000 = vmatpush1.msra.mxu0 %v4250
    %5001 = vmatprep.subr.mxu0 0.0
    %5002 = vmatpush1.msra.mxu0 %v4251
    %5003 = vmatprep.subr.mxu0 0.0
    %5004 = vmatpush1.msra.mxu0 %v4252
    %5005 = vmatprep.subr.mxu0 0.0
    %5006 = vmatpush1.msra.mxu0 %v4253
    %5007 = vmatprep.subr.mxu0 0.0
    %5008 = vmatpush1.msra.mxu0 %v4254
    %5009 = vmatprep.subr.mxu0 0.0
    %5010 = vmatpush1.msra.mxu0 %v4255
    %5011 = vmatprep.subr.mxu0 0.0
    %5012 = vmatpush1.msra.mxu0 %v4256
    %5013 = vmatprep.subr.mxu0 0.0
    %5014 = vmatpush1.msra.mxu0 %v4257
    %5015 = vmatprep.subr.mxu0 0.0
    %5016 = vmatpush1.msra.mxu0 %v4258
    %5017 = vmatprep.subr.mxu0 0.0
    %5018 = vmatpush1.msra.mxu0 %v4259
    %5019 = vmatprep.subr.mxu0 0.0
    %5020 = vmatpush1.msra.mxu0 %v4260
    %5021 = vmatprep.subr.mxu0 0.0
    %5022 = vmatpush1.msra.mxu0 %v4261
    %5023 = vmatprep.subr.mxu0 0.0
    %5024 = vmatpush1.msra.mxu0 %v4262
    %5025 = vmatprep.subr.mxu0 0.0
    %5026 = vmatpush1.msra.mxu0 %v4263
    %5027 = vmatprep.subr.mxu0 0.0
    %5028 = vmatpush1.msra.mxu0 %v4264
    %5029 = vmatprep.subr.mxu0 0.0
    %5030 = vmatpush1.msra.mxu0 %v4265
    %5031 = vmatprep.subr.mxu0 0.0
    %5032 = vmatpush1.msra.mxu0 %v4266
    %5033 = vmatprep.subr.mxu0 0.0
    %5034 = vmatpush1.msra.mxu0 %v4267
    %5035 = vmatprep.subr.mxu0 0.0
    %5036 = vmatpush1.msra.mxu0 %v4268
    %5037 = vmatprep.subr.mxu0 0.0
    %5038 = vmatpush1.msra.mxu0 %v4269
    %5039 = vmatprep.subr.mxu0 0.0
    %5040 = vmatpush1.msra.mxu0 %v4270
    %5041 = vmatprep.subr.mxu0 0.0
    %5042 = vmatpush1.msra.mxu0 %v4271
    %5043 = vmatprep.subr.mxu0 0.0
    %5044 = vmatpush1.msra.mxu0 %v4272
    %5045 = vmatprep.subr.mxu0 0.0
    %5046 = vmatpush1.msra.mxu0 %v4273
    %5047 = vmatprep.subr.mxu0 0.0
    %5048 = vmatpush1.msra.mxu0 %v4274
    %5049 = vmatprep.subr.mxu0 0.0
    %5050 = vmatpush1.msra.mxu0 %v4275
    %5051 = vmatprep.subr.mxu0 0.0
    %5052 = vmatpush1.msra.mxu0 %v4276
    %5053 = vmatprep.subr.mxu0 0.0
    %5054 = vmatpush1.msra.mxu0 0.0
    %5055 = vmatprep.subr.mxu0 0.0
    %5056 = vmatpush1.msra.mxu0 0.0
    %5057 = vmatprep.subr.mxu0 0.0
    %5058 = vmatpush1.msra.mxu0 0.0
    %5059 = vmatprep.mubr.f32.mxu0 %v4783
    %5060 = vmatmul.mubr.f32.gmra.mrb[0].mxu0 %v4096
    %v5061 = vpop.f32.mrb[0].mxu0
    %v5062 = vadd.f32 %v4992, %v5061
    %v5063 = vpop.f32.mrb[0].mxu0
    %5064 = vdwg.mxu0
    %v5065 = vld [vmem:[%s17] sm:$0x1]
    %v5067 = vlaneseq
    %v5068 = vshrl.u32 %v5067, 7
    %v5069 = vsub.s32 0, %v5068
    %v5070 = vrot.slane %v5065, %v5069
    %v5072 = vadd.f32 %v5062, %v5070
    %v5073 = vmax.f32 %v5072, 0.0
    %v5074 = vld [vmem:[%s18] sm:$0xff]
    %v5075 = vld [vmem:[%s18 + $0x8] sm:$0xff]
    %v5076 = vld [vmem:[%s18 + $0x10] sm:$0xff]
    %v5077 = vld [vmem:[%s18 + $0x18] sm:$0xff]
    %v5078 = vld [vmem:[%s18 + $0x20] sm:$0xff]
    %v5079 = vld [vmem:[%s18 + $0x28] sm:$0xff]
    %v5080 = vld [vmem:[%s18 + $0x30] sm:$0xff]
    %v5081 = vld [vmem:[%s18 + $0x38] sm:$0xff]
    %v5082 = vld [vmem:[%s18 + $0x40] sm:$0xff]
    %v5083 = vld [vmem:[%s18 + $0x48] sm:$0xff]
    %v5084 = vld [vmem:[%s18 + $0x50] sm:$0xff]
    %v5085 = vld [vmem:[%s18 + $0x58] sm:$0xff]
    %v5086 = vld [vmem:[%s18 + $0x60] sm:$0xff]
    %v5087 = vld [vmem:[%s18 + $0x68] sm:$0xff]
    %v5088 = vld [vmem:[%s18 + $0x70] sm:$0xff]
    %v5089 = vld [vmem:[%s19] sm:$0x1]
    %v5091 = vlaneseq
    %v5092 = vshrl.u32 %v5091, 7
    %v5093 = vsub.s32 0, %v5092
    %v5094 = vrot.slane %v5089, %v5093
    %v5097 = vsel %vm2332, %v5073, 0
    %5099 = vmatprep.subr.mxu0 0.0
    %5100 = vmatpush1.msra.mxu0 %v5074
    %5101 = vmatprep.subr.mxu0 0.0
    %5102 = vmatpush1.msra.mxu0 %v5075
    %5103 = vmatprep.subr.mxu0 0.0
    %5104 = vmatpush1.msra.mxu0 %v5076
    %5105 = vmatprep.subr.mxu0 0.0
    %5106 = vmatpush1.msra.mxu0 %v5077
    %5107 = vmatprep.subr.mxu0 0.0
    %5108 = vmatpush1.msra.mxu0 %v5078
    %5109 = vmatprep.subr.mxu0 0.0
    %5110 = vmatpush1.msra.mxu0 %v5079
    %5111 = vmatprep.subr.mxu0 0.0
    %5112 = vmatpush1.msra.mxu0 %v5080
    %5113 = vmatprep.subr.mxu0 0.0
    %5114 = vmatpush1.msra.mxu0 %v5081
    %5115 = vmatprep.subr.mxu0 0.0
    %5116 = vmatpush1.msra.mxu0 %v5082
    %5117 = vmatprep.subr.mxu0 0.0
    %5118 = vmatpush1.msra.mxu0 %v5083
    %5119 = vmatprep.subr.mxu0 0.0
    %5120 = vmatpush1.msra.mxu0 %v5084
    %5121 = vmatprep.subr.mxu0 0.0
    %5122 = vmatpush1.msra.mxu0 %v5085
    %5123 = vmatprep.subr.mxu0 0.0
    %5124 = vmatpush1.msra.mxu0 %v5086
    %5125 = vmatprep.subr.mxu0 0.0
    %5126 = vmatpush1.msra.mxu0 %v5087
    %5127 = vmatprep.subr.mxu0 0.0
    %5128 = vmatpush1.msra.mxu0 %v5088
    %5129 = vmatprep.subr.mxu0 0.0
    %5130 = vmatpush1.msra.mxu0 0.0
    %5131 = vmatprep.subr.mxu0 0.0
    %5132 = vmatpush1.msra.mxu0 0.0
    %5133 = vmatprep.subr.mxu0 0.0
    %5134 = vmatpush1.msra.mxu0 0.0
    %5135 = vmatprep.subr.mxu0 0.0
    %5136 = vmatpush1.msra.mxu0 0.0
    %5137 = vmatprep.subr.mxu0 0.0
    %5138 = vmatpush1.msra.mxu0 0.0
    %5139 = vmatprep.subr.mxu0 0.0
    %5140 = vmatpush1.msra.mxu0 0.0
    %5141 = vmatprep.subr.mxu0 0.0
    %5142 = vmatpush1.msra.mxu0 0.0
    %5143 = vmatprep.subr.mxu0 0.0
    %5144 = vmatpush1.msra.mxu0 0.0
    %5145 = vmatprep.subr.mxu0 0.0
    %5146 = vmatpush1.msra.mxu0 0.0
    %5147 = vmatprep.subr.mxu0 0.0
    %5148 = vmatpush1.msra.mxu0 0.0
    %5149 = vmatprep.subr.mxu0 0.0
    %5150 = vmatpush1.msra.mxu0 0.0
    %5151 = vmatprep.subr.mxu0 0.0
    %5152 = vmatpush1.msra.mxu0 0.0
    %5153 = vmatprep.subr.mxu0 0.0
    %5154 = vmatpush1.msra.mxu0 0.0
    %5155 = vmatprep.subr.mxu0 0.0
    %5156 = vmatpush1.msra.mxu0 0.0
    %5157 = vmatprep.subr.mxu0 0.0
    %5158 = vmatpush1.msra.mxu0 0.0
    %5159 = vmatprep.subr.mxu0 0.0
    %5160 = vmatpush1.msra.mxu0 0.0
    %5161 = vmatprep.subr.mxu0 0.0
    %5162 = vmatpush1.msra.mxu0 0.0
    %5163 = vmatprep.mubr.f32.mxu0 0.0
    %5164 = vmatmul.mubr.f32.gmra.mrb[0].mxu0 %v5097
    %v5165 = vpop.f32.mrb[0].mxu0
    %v5166 = vadd.f32 %v5094, %v5165
    %v5167 = vpop.f32.mrb[0].mxu0
    %5168 = vdwg.mxu0
    %vm5169 = vcmask 680960
    %5170 = vst.msk [vmem:[#allocation8] sm:$0x3] %vm5169, %v5166
    %v5171 = vmax.f32 %v5166, 0.0
    %v5172 = vld [vmem:[%s20] sm:$0xff]
    %v5173 = vld [vmem:[%s20 + $0x8] sm:$0xff]
    %v5174 = vld [vmem:[%s20 + $0x10] sm:$0xff]
    %v5175 = vld [vmem:[%s20 + $0x18] sm:$0xff]
    %v5176 = vld [vmem:[%s20 + $0x20] sm:$0xff]
    %v5177 = vld [vmem:[%s20 + $0x28] sm:$0xff]
    %v5178 = vld [vmem:[%s20 + $0x30] sm:$0xff]
    %v5179 = vld [vmem:[%s20 + $0x38] sm:$0xff]
    %v5180 = vld [vmem:[%s20 + $0x40] sm:$0xff]
    %v5181 = vld [vmem:[%s20 + $0x48] sm:$0xff]
    %v5182 = vld [vmem:[%s20 + $0x50] sm:$0xf]
    %v5183 = vld [vmem:[%s21] sm:$0x1]
    %v5185 = vlaneseq
    %v5186 = vshrl.u32 %v5185, 7
    %v5187 = vsub.s32 0, %v5186
    %v5188 = vrot.slane %v5183, %v5187
    %vm5190 = vcmask 687104
    %v5192 = vsel %vm5190, %v5171, 0
    %v5195 = vsel %vm689, %v5182, 0
    %5197 = vmatprep.subr.mxu0 0.0
    %5198 = vmatpush1.msra.mxu0 %v5172
    %5199 = vmatprep.subr.mxu0 0.0
    %5200 = vmatpush1.msra.mxu0 %v5173
    %5201 = vmatprep.subr.mxu0 0.0
    %5202 = vmatpush1.msra.mxu0 %v5174
    %5203 = vmatprep.subr.mxu0 0.0
    %5204 = vmatpush1.msra.mxu0 %v5175
    %5205 = vmatprep.subr.mxu0 0.0
    %5206 = vmatpush1.msra.mxu0 %v5176
    %5207 = vmatprep.subr.mxu0 0.0
    %5208 = vmatpush1.msra.mxu0 %v5177
    %5209 = vmatprep.subr.mxu0 0.0
    %5210 = vmatpush1.msra.mxu0 %v5178
    %5211 = vmatprep.subr.mxu0 0.0
    %5212 = vmatpush1.msra.mxu0 %v5179
    %5213 = vmatprep.subr.mxu0 0.0
    %5214 = vmatpush1.msra.mxu0 %v5180
    %5215 = vmatprep.subr.mxu0 0.0
    %5216 = vmatpush1.msra.mxu0 %v5181
    %5217 = vmatprep.subr.mxu0 0.0
    %5218 = vmatpush1.msra.mxu0 %v5195
    %5219 = vmatprep.subr.mxu0 0.0
    %5220 = vmatpush1.msra.mxu0 0.0
    %5221 = vmatprep.subr.mxu0 0.0
    %5222 = vmatpush1.msra.mxu0 0.0
    %5223 = vmatprep.subr.mxu0 0.0
    %5224 = vmatpush1.msra.mxu0 0.0
    %5225 = vmatprep.subr.mxu0 0.0
    %5226 = vmatpush1.msra.mxu0 0.0
    %5227 = vmatprep.subr.mxu0 0.0
    %5228 = vmatpush1.msra.mxu0 0.0
    %5229 = vmatprep.subr.mxu0 0.0
    %5230 = vmatpush1.msra.mxu0 0.0
    %5231 = vmatprep.subr.mxu0 0.0
    %5232 = vmatpush1.msra.mxu0 0.0
    %5233 = vmatprep.subr.mxu0 0.0
    %5234 = vmatpush1.msra.mxu0 0.0
    %5235 = vmatprep.subr.mxu0 0.0
    %5236 = vmatpush1.msra.mxu0 0.0
    %5237 = vmatprep.subr.mxu0 0.0
    %5238 = vmatpush1.msra.mxu0 0.0
    %5239 = vmatprep.subr.mxu0 0.0
    %5240 = vmatpush1.msra.mxu0 0.0
    %5241 = vmatprep.subr.mxu0 0.0
    %5242 = vmatpush1.msra.mxu0 0.0
    %5243 = vmatprep.subr.mxu0 0.0
    %5244 = vmatpush1.msra.mxu0 0.0
    %5245 = vmatprep.subr.mxu0 0.0
    %5246 = vmatpush1.msra.mxu0 0.0
    %5247 = vmatprep.subr.mxu0 0.0
    %5248 = vmatpush1.msra.mxu0 0.0
    %5249 = vmatprep.subr.mxu0 0.0
    %5250 = vmatpush1.msra.mxu0 0.0
    %5251 = vmatprep.subr.mxu0 0.0
    %5252 = vmatpush1.msra.mxu0 0.0
    %5253 = vmatprep.subr.mxu0 0.0
    %5254 = vmatpush1.msra.mxu0 0.0
    %5255 = vmatprep.subr.mxu0 0.0
    %5256 = vmatpush1.msra.mxu0 0.0
    %5257 = vmatprep.subr.mxu0 0.0
    %5258 = vmatpush1.msra.mxu0 0.0
    %5259 = vmatprep.subr.mxu0 0.0
    %5260 = vmatpush1.msra.mxu0 0.0
    %5261 = vmatprep.mubr.f32.mxu0 0.0
    %5262 = vmatmul.mubr.f32.gmra.mrb[0].mxu0 %v5192
    %v5263 = vpop.f32.mrb[0].mxu0
    %v5264 = vadd.f32 %v5188, %v5263
    %v5265 = vpop.f32.mrb[0].mxu0
    %5266 = vdwg.mxu0
    %vm5267 = vcmask 9216
    %5268 = vst.msk [vmem:[#allocation9] sm:$0x3] %vm5267, %v5264
    %v5269 = vsel %vm5267, %v5264, -inf
    %5270 = vmax.xlane.f32.xlu0 %v5269
    %v5271 = vpop.xlane.xlu0 %5270
    %v5272 = vsub.f32 %v5264, %v5271
    %v5273 = vmul.f32 %v5272, 1.442695
    %v5274 = vpow.pop %v5273
    %v5275 = vsel %vm5267, %v5274, 0.0
    %5276 = vadd.xlane.f32.xlu0 %v5275
    %v5277 = vpop.xlane.xlu0 %5276
    %v5278 = vrcp.pop %v5277
    %v5279 = vmul.f32 %v5274, %v5278
    %5280 = vst.msk [vmem:[#allocation11] sm:$0x3] %vm5267, %v5279
    // Predicated region
    $region94: #{convnet_forward.1} parent=1 // pred_check
      _
    $region95: #{convnet_forward.1} parent=1 // pred_check_branch
      %5282 = sbr.rel (0) target = $region97
    $region96: #{convnet_forward.1} parent=1 // pred_region
      %s5284 = ssub.s32 256, 256
      %5285 = vsyncadd [#allocation3], %s5284
      %s5287 = sshll.u32 [#allocation5], 4
      %s5288 = int_to_ptr.vmem [resolvable:$true] %s5287
      %5290 = dma.vmem_to_hbm [thread:$0]  %s5288, 256, %s22, [#allocation3]
    $region97: #{convnet_forward.1} parent=1 // pred_fallthru
      _
    // Predicated region
    $region98: #{convnet_forward.1} parent=1 // pred_check
      _
    $region99: #{convnet_forward.1} parent=1 // pred_check_branch
      %5292 = sbr.rel (0) target = $region101
    $region100: #{convnet_forward.1} parent=1 // pred_region
      %s5294 = ssub.s32 320, 320
      %5295 = vsyncadd [#allocation7], %s5294
      %s5297 = sshll.u32 [#allocation6], 4
      %s5298 = int_to_ptr.vmem [resolvable:$true] %s5297
      %5300 = dma.vmem_to_hbm [thread:$0]  %s5298, 320, %s23, [#allocation7]
    $region101: #{convnet_forward.1} parent=1 // pred_fallthru
      _
    // Predicated region
    $region102: #{convnet_forward.1} parent=1 // pred_check
      _
    $region103: #{convnet_forward.1} parent=1 // pred_check_branch
      %5302 = sbr.rel (0) target = $region105
    $region104: #{convnet_forward.1} parent=1 // pred_region
      %s5304 = ssub.s32 32, 32
      %5305 = vsyncadd [#allocation7], %s5304
      %s5307 = sshll.u32 [#allocation8], 4
      %s5308 = int_to_ptr.vmem [resolvable:$true] %s5307
      %5310 = dma.vmem_to_hbm [thread:$0]  %s5308, 32, %s24, [#allocation7]
    $region105: #{convnet_forward.1} parent=1 // pred_fallthru
      _
    // Predicated region
    $region106: #{convnet_forward.1} parent=1 // pred_check
      _
    $region107: #{convnet_forward.1} parent=1 // pred_check_branch
      %5312 = sbr.rel (0) target = $region109
    $region108: #{convnet_forward.1} parent=1 // pred_region
      %s5314 = ssub.s32 32, 32
      %5315 = vsyncadd [#allocation10], %s5314
      %s5317 = sshll.u32 [#allocation9], 4
      %s5318 = int_to_ptr.vmem [resolvable:$true] %s5317
      %5320 = dma.vmem_to_hbm [thread:$0]  %s5318, 32, %s25, [#allocation10]
    $region109: #{convnet_forward.1} parent=1 // pred_fallthru
      _
    // Predicated region
    $region110: #{convnet_forward.1} parent=1 // pred_check
      _
    $region111: #{convnet_forward.1} parent=1 // pred_check_branch
      %5322 = sbr.rel (0) target = $region113
    $region112: #{convnet_forward.1} parent=1 // pred_region
      %s5324 = ssub.s32 32, 32
      %5325 = vsyncadd [#allocation10], %s5324
      %s5327 = sshll.u32 [#allocation11], 4
      %s5328 = int_to_ptr.vmem [resolvable:$true] %s5327
      %5330 = dma.vmem_to_hbm [thread:$0]  %s5328, 32, %s26, [#allocation10]
    $region113: #{convnet_forward.1} parent=1 // pred_fallthru
      _
    // Predicated region
    $region114: #{convnet_forward.1} parent=1 // pred_check
      _
    $region115: #{convnet_forward.1} parent=1 // pred_check_branch
      %5332 = sbr.rel (0) target = $region117
    $region116: #{convnet_forward.1} parent=1 // pred_region
      %5333 = dma.done [#allocation3], 256
    $region117: #{convnet_forward.1} parent=1 // pred_fallthru
      _
    // Predicated region
    $region118: #{convnet_forward.1} parent=1 // pred_check
      _
    $region119: #{convnet_forward.1} parent=1 // pred_check_branch
      %5335 = sbr.rel (0) target = $region121
    $region120: #{convnet_forward.1} parent=1 // pred_region
      %5336 = dma.done [#allocation7], 320
    $region121: #{convnet_forward.1} parent=1 // pred_fallthru
      _
    // Predicated region
    $region122: #{convnet_forward.1} parent=1 // pred_check
      _
    $region123: #{convnet_forward.1} parent=1 // pred_check_branch
      %5338 = sbr.rel (0) target = $region125
    $region124: #{convnet_forward.1} parent=1 // pred_region
      %5339 = dma.done [#allocation7], 32
    $region125: #{convnet_forward.1} parent=1 // pred_fallthru
      _
    // Predicated region
    $region126: #{convnet_forward.1} parent=1 // pred_check
      _
    $region127: #{convnet_forward.1} parent=1 // pred_check_branch
      %5341 = sbr.rel (0) target = $region129
    $region128: #{convnet_forward.1} parent=1 // pred_region
      %5342 = dma.done [#allocation10], 32
    $region129: #{convnet_forward.1} parent=1 // pred_fallthru
      _
    // Predicated region
    $region130: #{convnet_forward.1} parent=1 // pred_check
      _
    $region131: #{convnet_forward.1} parent=1 // pred_check_branch
      %5344 = sbr.rel (0) target = $region133
    $region132: #{convnet_forward.1} parent=1 // pred_region
      %5345 = dma.done [#allocation10], 32
    $region133: #{convnet_forward.1} parent=1 // pred_fallthru
      _
    %5346 = vsyncpa [#allocation3], 1
    %5347 = vsyncpa [#allocation7], 1
    %5348 = vsyncpa [#allocation10], 1
    %5349 = vsyncpa [#allocation4], 1

</llo_original>
